<compile_context>
chip_gen: v7x
topology: tpu7x:2x2x1
jax: 0.10.0
libtpu: 0.0.40
codegen_flags: <defaults>
</compile_context>

<pallas_src>
import functools

import jax
import jax.numpy as jnp
from jax import lax
from jax.experimental import pallas as pl
from jax.experimental.pallas import tpu as pltpu


def _lstm_layer(gates_x, whh, seq_len, b_pad, hidden):
    """One LSTM layer over the whole (statically unrolled) sequence.

    gates_x: (seq_len*b_pad, 4H) precomputed x @ Wih + (b_ih + b_hh),
             gate column order [i, f, o, g].
    whh:     (H, 4H) hidden->gates weights (same column order).
    Returns  (seq_len*b_pad, H) layer outputs as a value.
    """
    H = hidden
    h = jnp.zeros((b_pad, H), jnp.float32)
    c = jnp.zeros((b_pad, H), jnp.float32)
    outs = []
    for t in range(seq_len):                       # fully unrolled, static indices
        gx_t = lax.slice(gates_x, (t * b_pad, 0), ((t + 1) * b_pad, 4 * H))
        gates = gx_t + jnp.dot(h, whh, preferred_element_type=jnp.float32)
        sig = jax.nn.sigmoid(gates[:, : 3 * H])    # i | f | o in one EUP region
        g_g = jnp.tanh(gates[:, 3 * H:])           # g in one EUP region
        i_g = sig[:, 0 * H:1 * H]
        f_g = sig[:, 1 * H:2 * H]
        o_g = sig[:, 2 * H:3 * H]
        c = f_g * c + i_g * g_g
        h = o_g * jnp.tanh(c)
        outs.append(h)
    return jnp.concatenate(outs, axis=0)           # (seq_len*b_pad, H)


def pred_lstm_kernel(x_ref,
                     wih0, whh0, b0,
                     wih1, whh1, b1,
                     wih2, whh2, b2,
                     w_out, b_out,
                     out_ref,
                     *, seq_len, b_pad, hidden, pred_len):
    """Whole PredLSTM forward in one kernel invocation.

    x_ref:   (S*B_pad, D_in)   time-major, batch padded to B_pad, flattened
    wih*:    (in, 4H)  pre-transposed, gate order [i, f, o, g]
    whh*:    (H, 4H)
    b*:      (1, 4H)   b_ih + b_hh, same gate order
    w_out:   (H, D_out_pad)    output columns zero-padded to a lane multiple
    b_out:   (1, D_out_pad)
    out_ref: (pred_len*B_pad, D_out_pad)
    """
    H = hidden

    # ---- layer 0: hoisted input projection (one matmul for all timesteps) ----
    gx0 = jnp.dot(x_ref[...], wih0[...], preferred_element_type=jnp.float32) + b0[...]
    y0 = _lstm_layer(gx0, whh0[...], seq_len, b_pad, H)

    # ---- layer 1 ----
    gx1 = jnp.dot(y0, wih1[...], preferred_element_type=jnp.float32) + b1[...]
    y1 = _lstm_layer(gx1, whh1[...], seq_len, b_pad, H)

    # ---- layer 2 ----
    gx2 = jnp.dot(y1, wih2[...], preferred_element_type=jnp.float32) + b2[...]
    y2 = _lstm_layer(gx2, whh2[...], seq_len, b_pad, H)

    # ---- linear head on the last pred_len timesteps (static contiguous rows) ----
    start = (seq_len - pred_len) * b_pad
    tail = lax.slice(y2, (start, 0), (seq_len * b_pad, H))   # (pred_len*B_pad, H)
    out_ref[...] = (jnp.dot(tail, w_out[...], preferred_element_type=jnp.float32)
                    + b_out[...])


def pred_lstm_forward(par_vals, params, pred_len='half'):
    """Wrapper: packs PyTorch-style parameters and calls the Pallas kernel."""
    seq_len, batch, input_dim = par_vals.shape
    hidden_dim = params['weight_hh_l0'].shape[1]
    output_dim = params['out_w'].shape[0]
    if pred_len == 'half':
        pred_len = int(seq_len / 2.0)

    # Pad batch so every timestep fills all 8 sublanes of a vreg.
    b_pad = max(8, -(-batch // 8) * 8)
    if b_pad != batch:
        par_vals = jnp.pad(par_vals, ((0, 0), (0, b_pad - batch), (0, 0)))
    x_flat = par_vals.reshape(seq_len * b_pad, input_dim)

    # Pad the head's output columns to a full 128-lane multiple -> unmasked
    # lane-dense stores for the kernel output; wrapper slices back afterwards.
    out_pad_dim = max(128, -(-output_dim // 128) * 128)

    # PyTorch gate row order is [i, f, g, o]; reorder to [i, f, o, g] so the
    # kernel can apply sigmoid to one contiguous 3H slice.
    def reorder(w):
        i, f, g, o = jnp.split(w, 4, axis=0)
        return jnp.concatenate([i, f, o, g], axis=0)

    def layer_args(l):
        wih = reorder(params[f'weight_ih_l{l}']).T                       # (in, 4H)
        whh = reorder(params[f'weight_hh_l{l}']).T                       # (H, 4H)
        b = reorder(params[f'bias_ih_l{l}'] + params[f'bias_hh_l{l}']).reshape(1, -1)
        return wih, whh, b

    args = []
    for l in range(3):
        args.extend(layer_args(l))
    w_out = params['out_w'].T                                            # (H, D_out)
    b_out = params['out_b'].reshape(1, -1)                               # (1, D_out)
    w_out = jnp.pad(w_out, ((0, 0), (0, out_pad_dim - output_dim)))      # (H, D_out_pad)
    b_out = jnp.pad(b_out, ((0, 0), (0, out_pad_dim - output_dim)))      # (1, D_out_pad)
    args.extend([w_out, b_out])

    kernel = functools.partial(pred_lstm_kernel,
                               seq_len=seq_len, b_pad=b_pad,
                               hidden=hidden_dim, pred_len=pred_len)

    vmem_spec = pl.BlockSpec(memory_space=pltpu.MemorySpace.VMEM)
    n_inputs = 1 + len(args)

    out_pad = pl.pallas_call(
        kernel,
        out_shape=jax.ShapeDtypeStruct((pred_len * b_pad, out_pad_dim), jnp.float32),
        in_specs=[vmem_spec] * n_inputs,
        out_specs=vmem_spec,
    )(x_flat, *args)

    # Drop padded batch rows / output columns, restore (pred_len*batch, D_out).
    out = out_pad.reshape(pred_len, b_pad, out_pad_dim)[:, :batch, :output_dim]
    return out.reshape(pred_len * batch, output_dim)


# ---------------- pure-JAX reference (for self-check) ----------------
def pred_lstm_reference(par_vals, params, pred_len='half'):
    seq_len, batch, _ = par_vals.shape
    hidden_dim = params['weight_hh_l0'].shape[1]
    x_seq = par_vals
    for l in range(3):
        wih = params[f'weight_ih_l{l}']
        whh = params[f'weight_hh_l{l}']
        b = params[f'bias_ih_l{l}'] + params[f'bias_hh_l{l}']
        h = jnp.zeros((batch, hidden_dim), jnp.float32)
        c = jnp.zeros((batch, hidden_dim), jnp.float32)
        outs = []
        for t in range(seq_len):
            gates = x_seq[t] @ wih.T + h @ whh.T + b
            i_g = jax.nn.sigmoid(gates[:, 0 * hidden_dim:1 * hidden_dim])
            f_g = jax.nn.sigmoid(gates[:, 1 * hidden_dim:2 * hidden_dim])
            g_g = jnp.tanh(gates[:, 2 * hidden_dim:3 * hidden_dim])
            o_g = jax.nn.sigmoid(gates[:, 3 * hidden_dim:4 * hidden_dim])
            c = f_g * c + i_g * g_g
            h = o_g * jnp.tanh(c)
            outs.append(h)
        x_seq = jnp.stack(outs, axis=0)
    if pred_len == 'half':
        pred_len = int(seq_len / 2.0)
    lstm_pred = x_seq[seq_len - pred_len:]
    flat = lstm_pred.reshape(-1, hidden_dim)
    return flat @ params['out_w'].T + params['out_b']


def init_params(key, input_dim, hidden_dim, output_dim, num_layers=3):
    """Deterministic init mimicking PyTorch's uniform(-1/sqrt(H), 1/sqrt(H))."""
    params = {}
    k = 1.0 / jnp.sqrt(hidden_dim)
    keys = jax.random.split(key, num_layers * 4 + 2)
    idx = 0
    for l in range(num_layers):
        in_dim = input_dim if l == 0 else hidden_dim
        params[f'weight_ih_l{l}'] = jax.random.uniform(
            keys[idx], (4 * hidden_dim, in_dim), jnp.float32, -k, k); idx += 1
        params[f'weight_hh_l{l}'] = jax.random.uniform(
            keys[idx], (4 * hidden_dim, hidden_dim), jnp.float32, -k, k); idx += 1
        params[f'bias_ih_l{l}'] = jax.random.uniform(
            keys[idx], (4 * hidden_dim,), jnp.float32, -k, k); idx += 1
        params[f'bias_hh_l{l}'] = jax.random.uniform(
            keys[idx], (4 * hidden_dim,), jnp.float32, -k, k); idx += 1
    k_lin = 1.0 / jnp.sqrt(hidden_dim)
    params['out_w'] = jax.random.uniform(
        keys[idx], (output_dim, hidden_dim), jnp.float32, -k_lin, k_lin); idx += 1
    params['out_b'] = jax.random.uniform(
        keys[idx], (output_dim,), jnp.float32, -k_lin, k_lin)
    return params


if __name__ == "__main__":
    # Shapes consistent with PredLSTM's forward: (seq, batch, input_dim)
    seq_len, batch, input_dim = 8, 2, 4
    hidden_dim, output_dim = 32, 4

    key = jax.random.PRNGKey(0)
    k_x, k_p = jax.random.split(key)
    par_vals = jax.random.normal(k_x, (seq_len, batch, input_dim), jnp.float32)
    params = init_params(k_p, input_dim, hidden_dim, output_dim, num_layers=3)

    out = pred_lstm_forward(par_vals, params)      # (pred_len*batch, output_dim) = (8, 4)
    out = jax.block_until_ready(out)

    ref = pred_lstm_reference(par_vals, params)
    assert out.shape == (int(seq_len / 2) * batch, output_dim), out.shape
    assert jnp.allclose(out, ref, atol=1e-5, rtol=1e-5), (out, ref)

    print("KERNEL_OK")
</pallas_src>

<mosaic_0001>
module attributes {stable_mosaic.version = 11 : i64} {
  func.func @pred_lstm_kernel(%arg0: memref<64x4xf32, #tpu.memory_space<vmem>>, %arg1: memref<4x128xf32, #tpu.memory_space<vmem>>, %arg2: memref<32x128xf32, #tpu.memory_space<vmem>>, %arg3: memref<1x128xf32, #tpu.memory_space<vmem>>, %arg4: memref<32x128xf32, #tpu.memory_space<vmem>>, %arg5: memref<32x128xf32, #tpu.memory_space<vmem>>, %arg6: memref<1x128xf32, #tpu.memory_space<vmem>>, %arg7: memref<32x128xf32, #tpu.memory_space<vmem>>, %arg8: memref<32x128xf32, #tpu.memory_space<vmem>>, %arg9: memref<1x128xf32, #tpu.memory_space<vmem>>, %arg10: memref<32x128xf32, #tpu.memory_space<vmem>>, %arg11: memref<1x128xf32, #tpu.memory_space<vmem>>, %arg12: memref<32x128xf32, #tpu.memory_space<vmem>>) attributes {dimension_semantics = [], scalar_prefetch = 0 : i64, scratch_operands = 0 : i64, tpu.core_type = #tpu.core_type<tc>} {
    %c0 = arith.constant 0 : index
    %c0_0 = arith.constant 0 : index
    %0 = vector.load %arg0[%c0, %c0_0] : memref<64x4xf32, #tpu.memory_space<vmem>>, vector<64x4xf32>
    %c0_1 = arith.constant 0 : index
    %c0_2 = arith.constant 0 : index
    %1 = vector.load %arg1[%c0_1, %c0_2] : memref<4x128xf32, #tpu.memory_space<vmem>>, vector<4x128xf32>
    %cst = arith.constant dense<0.000000e+00> : vector<64x128xf32>
    %2 = tpu.matmul %0, %1, %cst {dimension_numbers = #tpu.dot_dimension_numbers<[1], [0], [0], [1], [0, 0, 1, 1], [], []>} : vector<64x4xf32>, vector<4x128xf32>, vector<64x128xf32> -> vector<64x128xf32>
    %c0_3 = arith.constant 0 : index
    %c0_4 = arith.constant 0 : index
    %3 = vector.load %arg3[%c0_3, %c0_4] : memref<1x128xf32, #tpu.memory_space<vmem>>, vector<1x128xf32>
    %4 = vector.broadcast %3 : vector<1x128xf32> to vector<64x128xf32>
    %5 = arith.addf %2, %4 : vector<64x128xf32>
    %c0_5 = arith.constant 0 : index
    %c0_6 = arith.constant 0 : index
    %6 = vector.load %arg2[%c0_5, %c0_6] : memref<32x128xf32, #tpu.memory_space<vmem>>, vector<32x128xf32>
    %cst_7 = arith.constant 0.000000e+00 : f32
    %7 = vector.broadcast %cst_7 : f32 to vector<8x32xf32>
    %cst_8 = arith.constant 0.000000e+00 : f32
    %8 = vector.broadcast %cst_8 : f32 to vector<8x32xf32>
    %9 = vector.extract_strided_slice %5 {offsets = [0, 0], sizes = [8, 128], strides = [1, 1]} : vector<64x128xf32> to vector<8x128xf32>
    %cst_9 = arith.constant dense<0.000000e+00> : vector<8x128xf32>
    %10 = tpu.matmul %7, %6, %cst_9 {dimension_numbers = #tpu.dot_dimension_numbers<[1], [0], [0], [1], [0, 0, 1, 1], [], []>} : vector<8x32xf32>, vector<32x128xf32>, vector<8x128xf32> -> vector<8x128xf32>
    %11 = arith.addf %9, %10 : vector<8x128xf32>
    %12 = vector.extract_strided_slice %11 {offsets = [0, 0], sizes = [8, 96], strides = [1, 1]} : vector<8x128xf32> to vector<8x96xf32>
    %13 = arith.negf %12 : vector<8x96xf32>
    %14 = math.exp %13 : vector<8x96xf32>
    %cst_10 = arith.constant 1.000000e+00 : f32
    %15 = vector.broadcast %cst_10 : f32 to vector<8x96xf32>
    %16 = arith.addf %15, %14 : vector<8x96xf32>
    %17 = arith.divf %15, %16 : vector<8x96xf32>
    %18 = vector.extract_strided_slice %11 {offsets = [0, 96], sizes = [8, 32], strides = [1, 1]} : vector<8x128xf32> to vector<8x32xf32>
    %19 = math.tanh %18 : vector<8x32xf32>
    %20 = vector.extract_strided_slice %17 {offsets = [0, 0], sizes = [8, 32], strides = [1, 1]} : vector<8x96xf32> to vector<8x32xf32>
    %21 = vector.extract_strided_slice %17 {offsets = [0, 32], sizes = [8, 32], strides = [1, 1]} : vector<8x96xf32> to vector<8x32xf32>
    %22 = vector.extract_strided_slice %17 {offsets = [0, 64], sizes = [8, 32], strides = [1, 1]} : vector<8x96xf32> to vector<8x32xf32>
    %23 = arith.mulf %21, %8 : vector<8x32xf32>
    %24 = arith.mulf %20, %19 : vector<8x32xf32>
    %25 = arith.addf %23, %24 : vector<8x32xf32>
    %26 = math.tanh %25 : vector<8x32xf32>
    %27 = arith.mulf %22, %26 : vector<8x32xf32>
    %28 = vector.extract_strided_slice %5 {offsets = [8, 0], sizes = [8, 128], strides = [1, 1]} : vector<64x128xf32> to vector<8x128xf32>
    %cst_11 = arith.constant dense<0.000000e+00> : vector<8x128xf32>
    %29 = tpu.matmul %27, %6, %cst_11 {dimension_numbers = #tpu.dot_dimension_numbers<[1], [0], [0], [1], [0, 0, 1, 1], [], []>} : vector<8x32xf32>, vector<32x128xf32>, vector<8x128xf32> -> vector<8x128xf32>
    %30 = arith.addf %28, %29 : vector<8x128xf32>
    %31 = vector.extract_strided_slice %30 {offsets = [0, 0], sizes = [8, 96], strides = [1, 1]} : vector<8x128xf32> to vector<8x96xf32>
    %32 = arith.negf %31 : vector<8x96xf32>
    %33 = math.exp %32 : vector<8x96xf32>
    %cst_12 = arith.constant 1.000000e+00 : f32
    %34 = vector.broadcast %cst_12 : f32 to vector<8x96xf32>
    %35 = arith.addf %34, %33 : vector<8x96xf32>
    %36 = arith.divf %34, %35 : vector<8x96xf32>
    %37 = vector.extract_strided_slice %30 {offsets = [0, 96], sizes = [8, 32], strides = [1, 1]} : vector<8x128xf32> to vector<8x32xf32>
    %38 = math.tanh %37 : vector<8x32xf32>
    %39 = vector.extract_strided_slice %36 {offsets = [0, 0], sizes = [8, 32], strides = [1, 1]} : vector<8x96xf32> to vector<8x32xf32>
    %40 = vector.extract_strided_slice %36 {offsets = [0, 32], sizes = [8, 32], strides = [1, 1]} : vector<8x96xf32> to vector<8x32xf32>
    %41 = vector.extract_strided_slice %36 {offsets = [0, 64], sizes = [8, 32], strides = [1, 1]} : vector<8x96xf32> to vector<8x32xf32>
    %42 = arith.mulf %40, %25 : vector<8x32xf32>
    %43 = arith.mulf %39, %38 : vector<8x32xf32>
    %44 = arith.addf %42, %43 : vector<8x32xf32>
    %45 = math.tanh %44 : vector<8x32xf32>
    %46 = arith.mulf %41, %45 : vector<8x32xf32>
    %47 = vector.extract_strided_slice %5 {offsets = [16, 0], sizes = [8, 128], strides = [1, 1]} : vector<64x128xf32> to vector<8x128xf32>
    %cst_13 = arith.constant dense<0.000000e+00> : vector<8x128xf32>
    %48 = tpu.matmul %46, %6, %cst_13 {dimension_numbers = #tpu.dot_dimension_numbers<[1], [0], [0], [1], [0, 0, 1, 1], [], []>} : vector<8x32xf32>, vector<32x128xf32>, vector<8x128xf32> -> vector<8x128xf32>
    %49 = arith.addf %47, %48 : vector<8x128xf32>
    %50 = vector.extract_strided_slice %49 {offsets = [0, 0], sizes = [8, 96], strides = [1, 1]} : vector<8x128xf32> to vector<8x96xf32>
    %51 = arith.negf %50 : vector<8x96xf32>
    %52 = math.exp %51 : vector<8x96xf32>
    %cst_14 = arith.constant 1.000000e+00 : f32
    %53 = vector.broadcast %cst_14 : f32 to vector<8x96xf32>
    %54 = arith.addf %53, %52 : vector<8x96xf32>
    %55 = arith.divf %53, %54 : vector<8x96xf32>
    %56 = vector.extract_strided_slice %49 {offsets = [0, 96], sizes = [8, 32], strides = [1, 1]} : vector<8x128xf32> to vector<8x32xf32>
    %57 = math.tanh %56 : vector<8x32xf32>
    %58 = vector.extract_strided_slice %55 {offsets = [0, 0], sizes = [8, 32], strides = [1, 1]} : vector<8x96xf32> to vector<8x32xf32>
    %59 = vector.extract_strided_slice %55 {offsets = [0, 32], sizes = [8, 32], strides = [1, 1]} : vector<8x96xf32> to vector<8x32xf32>
    %60 = vector.extract_strided_slice %55 {offsets = [0, 64], sizes = [8, 32], strides = [1, 1]} : vector<8x96xf32> to vector<8x32xf32>
    %61 = arith.mulf %59, %44 : vector<8x32xf32>
    %62 = arith.mulf %58, %57 : vector<8x32xf32>
    %63 = arith.addf %61, %62 : vector<8x32xf32>
    %64 = math.tanh %63 : vector<8x32xf32>
    %65 = arith.mulf %60, %64 : vector<8x32xf32>
    %66 = vector.extract_strided_slice %5 {offsets = [24, 0], sizes = [8, 128], strides = [1, 1]} : vector<64x128xf32> to vector<8x128xf32>
    %cst_15 = arith.constant dense<0.000000e+00> : vector<8x128xf32>
    %67 = tpu.matmul %65, %6, %cst_15 {dimension_numbers = #tpu.dot_dimension_numbers<[1], [0], [0], [1], [0, 0, 1, 1], [], []>} : vector<8x32xf32>, vector<32x128xf32>, vector<8x128xf32> -> vector<8x128xf32>
    %68 = arith.addf %66, %67 : vector<8x128xf32>
    %69 = vector.extract_strided_slice %68 {offsets = [0, 0], sizes = [8, 96], strides = [1, 1]} : vector<8x128xf32> to vector<8x96xf32>
    %70 = arith.negf %69 : vector<8x96xf32>
    %71 = math.exp %70 : vector<8x96xf32>
    %cst_16 = arith.constant 1.000000e+00 : f32
    %72 = vector.broadcast %cst_16 : f32 to vector<8x96xf32>
    %73 = arith.addf %72, %71 : vector<8x96xf32>
    %74 = arith.divf %72, %73 : vector<8x96xf32>
    %75 = vector.extract_strided_slice %68 {offsets = [0, 96], sizes = [8, 32], strides = [1, 1]} : vector<8x128xf32> to vector<8x32xf32>
    %76 = math.tanh %75 : vector<8x32xf32>
    %77 = vector.extract_strided_slice %74 {offsets = [0, 0], sizes = [8, 32], strides = [1, 1]} : vector<8x96xf32> to vector<8x32xf32>
    %78 = vector.extract_strided_slice %74 {offsets = [0, 32], sizes = [8, 32], strides = [1, 1]} : vector<8x96xf32> to vector<8x32xf32>
    %79 = vector.extract_strided_slice %74 {offsets = [0, 64], sizes = [8, 32], strides = [1, 1]} : vector<8x96xf32> to vector<8x32xf32>
    %80 = arith.mulf %78, %63 : vector<8x32xf32>
    %81 = arith.mulf %77, %76 : vector<8x32xf32>
    %82 = arith.addf %80, %81 : vector<8x32xf32>
    %83 = math.tanh %82 : vector<8x32xf32>
    %84 = arith.mulf %79, %83 : vector<8x32xf32>
    %85 = vector.extract_strided_slice %5 {offsets = [32, 0], sizes = [8, 128], strides = [1, 1]} : vector<64x128xf32> to vector<8x128xf32>
    %cst_17 = arith.constant dense<0.000000e+00> : vector<8x128xf32>
    %86 = tpu.matmul %84, %6, %cst_17 {dimension_numbers = #tpu.dot_dimension_numbers<[1], [0], [0], [1], [0, 0, 1, 1], [], []>} : vector<8x32xf32>, vector<32x128xf32>, vector<8x128xf32> -> vector<8x128xf32>
    %87 = arith.addf %85, %86 : vector<8x128xf32>
    %88 = vector.extract_strided_slice %87 {offsets = [0, 0], sizes = [8, 96], strides = [1, 1]} : vector<8x128xf32> to vector<8x96xf32>
    %89 = arith.negf %88 : vector<8x96xf32>
    %90 = math.exp %89 : vector<8x96xf32>
    %cst_18 = arith.constant 1.000000e+00 : f32
    %91 = vector.broadcast %cst_18 : f32 to vector<8x96xf32>
    %92 = arith.addf %91, %90 : vector<8x96xf32>
    %93 = arith.divf %91, %92 : vector<8x96xf32>
    %94 = vector.extract_strided_slice %87 {offsets = [0, 96], sizes = [8, 32], strides = [1, 1]} : vector<8x128xf32> to vector<8x32xf32>
    %95 = math.tanh %94 : vector<8x32xf32>
    %96 = vector.extract_strided_slice %93 {offsets = [0, 0], sizes = [8, 32], strides = [1, 1]} : vector<8x96xf32> to vector<8x32xf32>
    %97 = vector.extract_strided_slice %93 {offsets = [0, 32], sizes = [8, 32], strides = [1, 1]} : vector<8x96xf32> to vector<8x32xf32>
    %98 = vector.extract_strided_slice %93 {offsets = [0, 64], sizes = [8, 32], strides = [1, 1]} : vector<8x96xf32> to vector<8x32xf32>
    %99 = arith.mulf %97, %82 : vector<8x32xf32>
    %100 = arith.mulf %96, %95 : vector<8x32xf32>
    %101 = arith.addf %99, %100 : vector<8x32xf32>
    %102 = math.tanh %101 : vector<8x32xf32>
    %103 = arith.mulf %98, %102 : vector<8x32xf32>
    %104 = vector.extract_strided_slice %5 {offsets = [40, 0], sizes = [8, 128], strides = [1, 1]} : vector<64x128xf32> to vector<8x128xf32>
    %cst_19 = arith.constant dense<0.000000e+00> : vector<8x128xf32>
    %105 = tpu.matmul %103, %6, %cst_19 {dimension_numbers = #tpu.dot_dimension_numbers<[1], [0], [0], [1], [0, 0, 1, 1], [], []>} : vector<8x32xf32>, vector<32x128xf32>, vector<8x128xf32> -> vector<8x128xf32>
    %106 = arith.addf %104, %105 : vector<8x128xf32>
    %107 = vector.extract_strided_slice %106 {offsets = [0, 0], sizes = [8, 96], strides = [1, 1]} : vector<8x128xf32> to vector<8x96xf32>
    %108 = arith.negf %107 : vector<8x96xf32>
    %109 = math.exp %108 : vector<8x96xf32>
    %cst_20 = arith.constant 1.000000e+00 : f32
    %110 = vector.broadcast %cst_20 : f32 to vector<8x96xf32>
    %111 = arith.addf %110, %109 : vector<8x96xf32>
    %112 = arith.divf %110, %111 : vector<8x96xf32>
    %113 = vector.extract_strided_slice %106 {offsets = [0, 96], sizes = [8, 32], strides = [1, 1]} : vector<8x128xf32> to vector<8x32xf32>
    %114 = math.tanh %113 : vector<8x32xf32>
    %115 = vector.extract_strided_slice %112 {offsets = [0, 0], sizes = [8, 32], strides = [1, 1]} : vector<8x96xf32> to vector<8x32xf32>
    %116 = vector.extract_strided_slice %112 {offsets = [0, 32], sizes = [8, 32], strides = [1, 1]} : vector<8x96xf32> to vector<8x32xf32>
    %117 = vector.extract_strided_slice %112 {offsets = [0, 64], sizes = [8, 32], strides = [1, 1]} : vector<8x96xf32> to vector<8x32xf32>
    %118 = arith.mulf %116, %101 : vector<8x32xf32>
    %119 = arith.mulf %115, %114 : vector<8x32xf32>
    %120 = arith.addf %118, %119 : vector<8x32xf32>
    %121 = math.tanh %120 : vector<8x32xf32>
    %122 = arith.mulf %117, %121 : vector<8x32xf32>
    %123 = vector.extract_strided_slice %5 {offsets = [48, 0], sizes = [8, 128], strides = [1, 1]} : vector<64x128xf32> to vector<8x128xf32>
    %cst_21 = arith.constant dense<0.000000e+00> : vector<8x128xf32>
    %124 = tpu.matmul %122, %6, %cst_21 {dimension_numbers = #tpu.dot_dimension_numbers<[1], [0], [0], [1], [0, 0, 1, 1], [], []>} : vector<8x32xf32>, vector<32x128xf32>, vector<8x128xf32> -> vector<8x128xf32>
    %125 = arith.addf %123, %124 : vector<8x128xf32>
    %126 = vector.extract_strided_slice %125 {offsets = [0, 0], sizes = [8, 96], strides = [1, 1]} : vector<8x128xf32> to vector<8x96xf32>
    %127 = arith.negf %126 : vector<8x96xf32>
    %128 = math.exp %127 : vector<8x96xf32>
    %cst_22 = arith.constant 1.000000e+00 : f32
    %129 = vector.broadcast %cst_22 : f32 to vector<8x96xf32>
    %130 = arith.addf %129, %128 : vector<8x96xf32>
    %131 = arith.divf %129, %130 : vector<8x96xf32>
    %132 = vector.extract_strided_slice %125 {offsets = [0, 96], sizes = [8, 32], strides = [1, 1]} : vector<8x128xf32> to vector<8x32xf32>
    %133 = math.tanh %132 : vector<8x32xf32>
    %134 = vector.extract_strided_slice %131 {offsets = [0, 0], sizes = [8, 32], strides = [1, 1]} : vector<8x96xf32> to vector<8x32xf32>
    %135 = vector.extract_strided_slice %131 {offsets = [0, 32], sizes = [8, 32], strides = [1, 1]} : vector<8x96xf32> to vector<8x32xf32>
    %136 = vector.extract_strided_slice %131 {offsets = [0, 64], sizes = [8, 32], strides = [1, 1]} : vector<8x96xf32> to vector<8x32xf32>
    %137 = arith.mulf %135, %120 : vector<8x32xf32>
    %138 = arith.mulf %134, %133 : vector<8x32xf32>
    %139 = arith.addf %137, %138 : vector<8x32xf32>
    %140 = math.tanh %139 : vector<8x32xf32>
    %141 = arith.mulf %136, %140 : vector<8x32xf32>
    %142 = vector.extract_strided_slice %5 {offsets = [56, 0], sizes = [8, 128], strides = [1, 1]} : vector<64x128xf32> to vector<8x128xf32>
    %cst_23 = arith.constant dense<0.000000e+00> : vector<8x128xf32>
    %143 = tpu.matmul %141, %6, %cst_23 {dimension_numbers = #tpu.dot_dimension_numbers<[1], [0], [0], [1], [0, 0, 1, 1], [], []>} : vector<8x32xf32>, vector<32x128xf32>, vector<8x128xf32> -> vector<8x128xf32>
    %144 = arith.addf %142, %143 : vector<8x128xf32>
    %145 = vector.extract_strided_slice %144 {offsets = [0, 0], sizes = [8, 96], strides = [1, 1]} : vector<8x128xf32> to vector<8x96xf32>
    %146 = arith.negf %145 : vector<8x96xf32>
    %147 = math.exp %146 : vector<8x96xf32>
    %cst_24 = arith.constant 1.000000e+00 : f32
    %148 = vector.broadcast %cst_24 : f32 to vector<8x96xf32>
    %149 = arith.addf %148, %147 : vector<8x96xf32>
    %150 = arith.divf %148, %149 : vector<8x96xf32>
    %151 = vector.extract_strided_slice %144 {offsets = [0, 96], sizes = [8, 32], strides = [1, 1]} : vector<8x128xf32> to vector<8x32xf32>
    %152 = math.tanh %151 : vector<8x32xf32>
    %153 = vector.extract_strided_slice %150 {offsets = [0, 0], sizes = [8, 32], strides = [1, 1]} : vector<8x96xf32> to vector<8x32xf32>
    %154 = vector.extract_strided_slice %150 {offsets = [0, 32], sizes = [8, 32], strides = [1, 1]} : vector<8x96xf32> to vector<8x32xf32>
    %155 = vector.extract_strided_slice %150 {offsets = [0, 64], sizes = [8, 32], strides = [1, 1]} : vector<8x96xf32> to vector<8x32xf32>
    %156 = arith.mulf %154, %139 : vector<8x32xf32>
    %157 = arith.mulf %153, %152 : vector<8x32xf32>
    %158 = arith.addf %156, %157 : vector<8x32xf32>
    %159 = math.tanh %158 : vector<8x32xf32>
    %160 = arith.mulf %155, %159 : vector<8x32xf32>
    %161 = tpu.concatenate %27, %46, %65, %84, %103, %122, %141, %160 in 0 : vector<8x32xf32>, vector<8x32xf32>, vector<8x32xf32>, vector<8x32xf32>, vector<8x32xf32>, vector<8x32xf32>, vector<8x32xf32>, vector<8x32xf32> -> vector<64x32xf32>
    %c0_25 = arith.constant 0 : index
    %c0_26 = arith.constant 0 : index
    %162 = vector.load %arg4[%c0_25, %c0_26] : memref<32x128xf32, #tpu.memory_space<vmem>>, vector<32x128xf32>
    %cst_27 = arith.constant dense<0.000000e+00> : vector<64x128xf32>
    %163 = tpu.matmul %161, %162, %cst_27 {dimension_numbers = #tpu.dot_dimension_numbers<[1], [0], [0], [1], [0, 0, 1, 1], [], []>} : vector<64x32xf32>, vector<32x128xf32>, vector<64x128xf32> -> vector<64x128xf32>
    %c0_28 = arith.constant 0 : index
    %c0_29 = arith.constant 0 : index
    %164 = vector.load %arg6[%c0_28, %c0_29] : memref<1x128xf32, #tpu.memory_space<vmem>>, vector<1x128xf32>
    %165 = vector.broadcast %164 : vector<1x128xf32> to vector<64x128xf32>
    %166 = arith.addf %163, %165 : vector<64x128xf32>
    %c0_30 = arith.constant 0 : index
    %c0_31 = arith.constant 0 : index
    %167 = vector.load %arg5[%c0_30, %c0_31] : memref<32x128xf32, #tpu.memory_space<vmem>>, vector<32x128xf32>
    %cst_32 = arith.constant 0.000000e+00 : f32
    %168 = vector.broadcast %cst_32 : f32 to vector<8x32xf32>
    %cst_33 = arith.constant 0.000000e+00 : f32
    %169 = vector.broadcast %cst_33 : f32 to vector<8x32xf32>
    %170 = vector.extract_strided_slice %166 {offsets = [0, 0], sizes = [8, 128], strides = [1, 1]} : vector<64x128xf32> to vector<8x128xf32>
    %cst_34 = arith.constant dense<0.000000e+00> : vector<8x128xf32>
    %171 = tpu.matmul %168, %167, %cst_34 {dimension_numbers = #tpu.dot_dimension_numbers<[1], [0], [0], [1], [0, 0, 1, 1], [], []>} : vector<8x32xf32>, vector<32x128xf32>, vector<8x128xf32> -> vector<8x128xf32>
    %172 = arith.addf %170, %171 : vector<8x128xf32>
    %173 = vector.extract_strided_slice %172 {offsets = [0, 0], sizes = [8, 96], strides = [1, 1]} : vector<8x128xf32> to vector<8x96xf32>
    %174 = arith.negf %173 : vector<8x96xf32>
    %175 = math.exp %174 : vector<8x96xf32>
    %cst_35 = arith.constant 1.000000e+00 : f32
    %176 = vector.broadcast %cst_35 : f32 to vector<8x96xf32>
    %177 = arith.addf %176, %175 : vector<8x96xf32>
    %178 = arith.divf %176, %177 : vector<8x96xf32>
    %179 = vector.extract_strided_slice %172 {offsets = [0, 96], sizes = [8, 32], strides = [1, 1]} : vector<8x128xf32> to vector<8x32xf32>
    %180 = math.tanh %179 : vector<8x32xf32>
    %181 = vector.extract_strided_slice %178 {offsets = [0, 0], sizes = [8, 32], strides = [1, 1]} : vector<8x96xf32> to vector<8x32xf32>
    %182 = vector.extract_strided_slice %178 {offsets = [0, 32], sizes = [8, 32], strides = [1, 1]} : vector<8x96xf32> to vector<8x32xf32>
    %183 = vector.extract_strided_slice %178 {offsets = [0, 64], sizes = [8, 32], strides = [1, 1]} : vector<8x96xf32> to vector<8x32xf32>
    %184 = arith.mulf %182, %169 : vector<8x32xf32>
    %185 = arith.mulf %181, %180 : vector<8x32xf32>
    %186 = arith.addf %184, %185 : vector<8x32xf32>
    %187 = math.tanh %186 : vector<8x32xf32>
    %188 = arith.mulf %183, %187 : vector<8x32xf32>
    %189 = vector.extract_strided_slice %166 {offsets = [8, 0], sizes = [8, 128], strides = [1, 1]} : vector<64x128xf32> to vector<8x128xf32>
    %cst_36 = arith.constant dense<0.000000e+00> : vector<8x128xf32>
    %190 = tpu.matmul %188, %167, %cst_36 {dimension_numbers = #tpu.dot_dimension_numbers<[1], [0], [0], [1], [0, 0, 1, 1], [], []>} : vector<8x32xf32>, vector<32x128xf32>, vector<8x128xf32> -> vector<8x128xf32>
    %191 = arith.addf %189, %190 : vector<8x128xf32>
    %192 = vector.extract_strided_slice %191 {offsets = [0, 0], sizes = [8, 96], strides = [1, 1]} : vector<8x128xf32> to vector<8x96xf32>
    %193 = arith.negf %192 : vector<8x96xf32>
    %194 = math.exp %193 : vector<8x96xf32>
    %cst_37 = arith.constant 1.000000e+00 : f32
    %195 = vector.broadcast %cst_37 : f32 to vector<8x96xf32>
    %196 = arith.addf %195, %194 : vector<8x96xf32>
    %197 = arith.divf %195, %196 : vector<8x96xf32>
    %198 = vector.extract_strided_slice %191 {offsets = [0, 96], sizes = [8, 32], strides = [1, 1]} : vector<8x128xf32> to vector<8x32xf32>
    %199 = math.tanh %198 : vector<8x32xf32>
    %200 = vector.extract_strided_slice %197 {offsets = [0, 0], sizes = [8, 32], strides = [1, 1]} : vector<8x96xf32> to vector<8x32xf32>
    %201 = vector.extract_strided_slice %197 {offsets = [0, 32], sizes = [8, 32], strides = [1, 1]} : vector<8x96xf32> to vector<8x32xf32>
    %202 = vector.extract_strided_slice %197 {offsets = [0, 64], sizes = [8, 32], strides = [1, 1]} : vector<8x96xf32> to vector<8x32xf32>
    %203 = arith.mulf %201, %186 : vector<8x32xf32>
    %204 = arith.mulf %200, %199 : vector<8x32xf32>
    %205 = arith.addf %203, %204 : vector<8x32xf32>
    %206 = math.tanh %205 : vector<8x32xf32>
    %207 = arith.mulf %202, %206 : vector<8x32xf32>
    %208 = vector.extract_strided_slice %166 {offsets = [16, 0], sizes = [8, 128], strides = [1, 1]} : vector<64x128xf32> to vector<8x128xf32>
    %cst_38 = arith.constant dense<0.000000e+00> : vector<8x128xf32>
    %209 = tpu.matmul %207, %167, %cst_38 {dimension_numbers = #tpu.dot_dimension_numbers<[1], [0], [0], [1], [0, 0, 1, 1], [], []>} : vector<8x32xf32>, vector<32x128xf32>, vector<8x128xf32> -> vector<8x128xf32>
    %210 = arith.addf %208, %209 : vector<8x128xf32>
    %211 = vector.extract_strided_slice %210 {offsets = [0, 0], sizes = [8, 96], strides = [1, 1]} : vector<8x128xf32> to vector<8x96xf32>
    %212 = arith.negf %211 : vector<8x96xf32>
    %213 = math.exp %212 : vector<8x96xf32>
    %cst_39 = arith.constant 1.000000e+00 : f32
    %214 = vector.broadcast %cst_39 : f32 to vector<8x96xf32>
    %215 = arith.addf %214, %213 : vector<8x96xf32>
    %216 = arith.divf %214, %215 : vector<8x96xf32>
    %217 = vector.extract_strided_slice %210 {offsets = [0, 96], sizes = [8, 32], strides = [1, 1]} : vector<8x128xf32> to vector<8x32xf32>
    %218 = math.tanh %217 : vector<8x32xf32>
    %219 = vector.extract_strided_slice %216 {offsets = [0, 0], sizes = [8, 32], strides = [1, 1]} : vector<8x96xf32> to vector<8x32xf32>
    %220 = vector.extract_strided_slice %216 {offsets = [0, 32], sizes = [8, 32], strides = [1, 1]} : vector<8x96xf32> to vector<8x32xf32>
    %221 = vector.extract_strided_slice %216 {offsets = [0, 64], sizes = [8, 32], strides = [1, 1]} : vector<8x96xf32> to vector<8x32xf32>
    %222 = arith.mulf %220, %205 : vector<8x32xf32>
    %223 = arith.mulf %219, %218 : vector<8x32xf32>
    %224 = arith.addf %222, %223 : vector<8x32xf32>
    %225 = math.tanh %224 : vector<8x32xf32>
    %226 = arith.mulf %221, %225 : vector<8x32xf32>
    %227 = vector.extract_strided_slice %166 {offsets = [24, 0], sizes = [8, 128], strides = [1, 1]} : vector<64x128xf32> to vector<8x128xf32>
    %cst_40 = arith.constant dense<0.000000e+00> : vector<8x128xf32>
    %228 = tpu.matmul %226, %167, %cst_40 {dimension_numbers = #tpu.dot_dimension_numbers<[1], [0], [0], [1], [0, 0, 1, 1], [], []>} : vector<8x32xf32>, vector<32x128xf32>, vector<8x128xf32> -> vector<8x128xf32>
    %229 = arith.addf %227, %228 : vector<8x128xf32>
    %230 = vector.extract_strided_slice %229 {offsets = [0, 0], sizes = [8, 96], strides = [1, 1]} : vector<8x128xf32> to vector<8x96xf32>
    %231 = arith.negf %230 : vector<8x96xf32>
    %232 = math.exp %231 : vector<8x96xf32>
    %cst_41 = arith.constant 1.000000e+00 : f32
    %233 = vector.broadcast %cst_41 : f32 to vector<8x96xf32>
    %234 = arith.addf %233, %232 : vector<8x96xf32>
    %235 = arith.divf %233, %234 : vector<8x96xf32>
    %236 = vector.extract_strided_slice %229 {offsets = [0, 96], sizes = [8, 32], strides = [1, 1]} : vector<8x128xf32> to vector<8x32xf32>
    %237 = math.tanh %236 : vector<8x32xf32>
    %238 = vector.extract_strided_slice %235 {offsets = [0, 0], sizes = [8, 32], strides = [1, 1]} : vector<8x96xf32> to vector<8x32xf32>
    %239 = vector.extract_strided_slice %235 {offsets = [0, 32], sizes = [8, 32], strides = [1, 1]} : vector<8x96xf32> to vector<8x32xf32>
    %240 = vector.extract_strided_slice %235 {offsets = [0, 64], sizes = [8, 32], strides = [1, 1]} : vector<8x96xf32> to vector<8x32xf32>
    %241 = arith.mulf %239, %224 : vector<8x32xf32>
    %242 = arith.mulf %238, %237 : vector<8x32xf32>
    %243 = arith.addf %241, %242 : vector<8x32xf32>
    %244 = math.tanh %243 : vector<8x32xf32>
    %245 = arith.mulf %240, %244 : vector<8x32xf32>
    %246 = vector.extract_strided_slice %166 {offsets = [32, 0], sizes = [8, 128], strides = [1, 1]} : vector<64x128xf32> to vector<8x128xf32>
    %cst_42 = arith.constant dense<0.000000e+00> : vector<8x128xf32>
    %247 = tpu.matmul %245, %167, %cst_42 {dimension_numbers = #tpu.dot_dimension_numbers<[1], [0], [0], [1], [0, 0, 1, 1], [], []>} : vector<8x32xf32>, vector<32x128xf32>, vector<8x128xf32> -> vector<8x128xf32>
    %248 = arith.addf %246, %247 : vector<8x128xf32>
    %249 = vector.extract_strided_slice %248 {offsets = [0, 0], sizes = [8, 96], strides = [1, 1]} : vector<8x128xf32> to vector<8x96xf32>
    %250 = arith.negf %249 : vector<8x96xf32>
    %251 = math.exp %250 : vector<8x96xf32>
    %cst_43 = arith.constant 1.000000e+00 : f32
    %252 = vector.broadcast %cst_43 : f32 to vector<8x96xf32>
    %253 = arith.addf %252, %251 : vector<8x96xf32>
    %254 = arith.divf %252, %253 : vector<8x96xf32>
    %255 = vector.extract_strided_slice %248 {offsets = [0, 96], sizes = [8, 32], strides = [1, 1]} : vector<8x128xf32> to vector<8x32xf32>
    %256 = math.tanh %255 : vector<8x32xf32>
    %257 = vector.extract_strided_slice %254 {offsets = [0, 0], sizes = [8, 32], strides = [1, 1]} : vector<8x96xf32> to vector<8x32xf32>
    %258 = vector.extract_strided_slice %254 {offsets = [0, 32], sizes = [8, 32], strides = [1, 1]} : vector<8x96xf32> to vector<8x32xf32>
    %259 = vector.extract_strided_slice %254 {offsets = [0, 64], sizes = [8, 32], strides = [1, 1]} : vector<8x96xf32> to vector<8x32xf32>
    %260 = arith.mulf %258, %243 : vector<8x32xf32>
    %261 = arith.mulf %257, %256 : vector<8x32xf32>
    %262 = arith.addf %260, %261 : vector<8x32xf32>
    %263 = math.tanh %262 : vector<8x32xf32>
    %264 = arith.mulf %259, %263 : vector<8x32xf32>
    %265 = vector.extract_strided_slice %166 {offsets = [40, 0], sizes = [8, 128], strides = [1, 1]} : vector<64x128xf32> to vector<8x128xf32>
    %cst_44 = arith.constant dense<0.000000e+00> : vector<8x128xf32>
    %266 = tpu.matmul %264, %167, %cst_44 {dimension_numbers = #tpu.dot_dimension_numbers<[1], [0], [0], [1], [0, 0, 1, 1], [], []>} : vector<8x32xf32>, vector<32x128xf32>, vector<8x128xf32> -> vector<8x128xf32>
    %267 = arith.addf %265, %266 : vector<8x128xf32>
    %268 = vector.extract_strided_slice %267 {offsets = [0, 0], sizes = [8, 96], strides = [1, 1]} : vector<8x128xf32> to vector<8x96xf32>
    %269 = arith.negf %268 : vector<8x96xf32>
    %270 = math.exp %269 : vector<8x96xf32>
    %cst_45 = arith.constant 1.000000e+00 : f32
    %271 = vector.broadcast %cst_45 : f32 to vector<8x96xf32>
    %272 = arith.addf %271, %270 : vector<8x96xf32>
    %273 = arith.divf %271, %272 : vector<8x96xf32>
    %274 = vector.extract_strided_slice %267 {offsets = [0, 96], sizes = [8, 32], strides = [1, 1]} : vector<8x128xf32> to vector<8x32xf32>
    %275 = math.tanh %274 : vector<8x32xf32>
    %276 = vector.extract_strided_slice %273 {offsets = [0, 0], sizes = [8, 32], strides = [1, 1]} : vector<8x96xf32> to vector<8x32xf32>
    %277 = vector.extract_strided_slice %273 {offsets = [0, 32], sizes = [8, 32], strides = [1, 1]} : vector<8x96xf32> to vector<8x32xf32>
    %278 = vector.extract_strided_slice %273 {offsets = [0, 64], sizes = [8, 32], strides = [1, 1]} : vector<8x96xf32> to vector<8x32xf32>
    %279 = arith.mulf %277, %262 : vector<8x32xf32>
    %280 = arith.mulf %276, %275 : vector<8x32xf32>
    %281 = arith.addf %279, %280 : vector<8x32xf32>
    %282 = math.tanh %281 : vector<8x32xf32>
    %283 = arith.mulf %278, %282 : vector<8x32xf32>
    %284 = vector.extract_strided_slice %166 {offsets = [48, 0], sizes = [8, 128], strides = [1, 1]} : vector<64x128xf32> to vector<8x128xf32>
    %cst_46 = arith.constant dense<0.000000e+00> : vector<8x128xf32>
    %285 = tpu.matmul %283, %167, %cst_46 {dimension_numbers = #tpu.dot_dimension_numbers<[1], [0], [0], [1], [0, 0, 1, 1], [], []>} : vector<8x32xf32>, vector<32x128xf32>, vector<8x128xf32> -> vector<8x128xf32>
    %286 = arith.addf %284, %285 : vector<8x128xf32>
    %287 = vector.extract_strided_slice %286 {offsets = [0, 0], sizes = [8, 96], strides = [1, 1]} : vector<8x128xf32> to vector<8x96xf32>
    %288 = arith.negf %287 : vector<8x96xf32>
    %289 = math.exp %288 : vector<8x96xf32>
    %cst_47 = arith.constant 1.000000e+00 : f32
    %290 = vector.broadcast %cst_47 : f32 to vector<8x96xf32>
    %291 = arith.addf %290, %289 : vector<8x96xf32>
    %292 = arith.divf %290, %291 : vector<8x96xf32>
    %293 = vector.extract_strided_slice %286 {offsets = [0, 96], sizes = [8, 32], strides = [1, 1]} : vector<8x128xf32> to vector<8x32xf32>
    %294 = math.tanh %293 : vector<8x32xf32>
    %295 = vector.extract_strided_slice %292 {offsets = [0, 0], sizes = [8, 32], strides = [1, 1]} : vector<8x96xf32> to vector<8x32xf32>
    %296 = vector.extract_strided_slice %292 {offsets = [0, 32], sizes = [8, 32], strides = [1, 1]} : vector<8x96xf32> to vector<8x32xf32>
    %297 = vector.extract_strided_slice %292 {offsets = [0, 64], sizes = [8, 32], strides = [1, 1]} : vector<8x96xf32> to vector<8x32xf32>
    %298 = arith.mulf %296, %281 : vector<8x32xf32>
    %299 = arith.mulf %295, %294 : vector<8x32xf32>
    %300 = arith.addf %298, %299 : vector<8x32xf32>
    %301 = math.tanh %300 : vector<8x32xf32>
    %302 = arith.mulf %297, %301 : vector<8x32xf32>
    %303 = vector.extract_strided_slice %166 {offsets = [56, 0], sizes = [8, 128], strides = [1, 1]} : vector<64x128xf32> to vector<8x128xf32>
    %cst_48 = arith.constant dense<0.000000e+00> : vector<8x128xf32>
    %304 = tpu.matmul %302, %167, %cst_48 {dimension_numbers = #tpu.dot_dimension_numbers<[1], [0], [0], [1], [0, 0, 1, 1], [], []>} : vector<8x32xf32>, vector<32x128xf32>, vector<8x128xf32> -> vector<8x128xf32>
    %305 = arith.addf %303, %304 : vector<8x128xf32>
    %306 = vector.extract_strided_slice %305 {offsets = [0, 0], sizes = [8, 96], strides = [1, 1]} : vector<8x128xf32> to vector<8x96xf32>
    %307 = arith.negf %306 : vector<8x96xf32>
    %308 = math.exp %307 : vector<8x96xf32>
    %cst_49 = arith.constant 1.000000e+00 : f32
    %309 = vector.broadcast %cst_49 : f32 to vector<8x96xf32>
    %310 = arith.addf %309, %308 : vector<8x96xf32>
    %311 = arith.divf %309, %310 : vector<8x96xf32>
    %312 = vector.extract_strided_slice %305 {offsets = [0, 96], sizes = [8, 32], strides = [1, 1]} : vector<8x128xf32> to vector<8x32xf32>
    %313 = math.tanh %312 : vector<8x32xf32>
    %314 = vector.extract_strided_slice %311 {offsets = [0, 0], sizes = [8, 32], strides = [1, 1]} : vector<8x96xf32> to vector<8x32xf32>
    %315 = vector.extract_strided_slice %311 {offsets = [0, 32], sizes = [8, 32], strides = [1, 1]} : vector<8x96xf32> to vector<8x32xf32>
    %316 = vector.extract_strided_slice %311 {offsets = [0, 64], sizes = [8, 32], strides = [1, 1]} : vector<8x96xf32> to vector<8x32xf32>
    %317 = arith.mulf %315, %300 : vector<8x32xf32>
    %318 = arith.mulf %314, %313 : vector<8x32xf32>
    %319 = arith.addf %317, %318 : vector<8x32xf32>
    %320 = math.tanh %319 : vector<8x32xf32>
    %321 = arith.mulf %316, %320 : vector<8x32xf32>
    %322 = tpu.concatenate %188, %207, %226, %245, %264, %283, %302, %321 in 0 : vector<8x32xf32>, vector<8x32xf32>, vector<8x32xf32>, vector<8x32xf32>, vector<8x32xf32>, vector<8x32xf32>, vector<8x32xf32>, vector<8x32xf32> -> vector<64x32xf32>
    %c0_50 = arith.constant 0 : index
    %c0_51 = arith.constant 0 : index
    %323 = vector.load %arg7[%c0_50, %c0_51] : memref<32x128xf32, #tpu.memory_space<vmem>>, vector<32x128xf32>
    %cst_52 = arith.constant dense<0.000000e+00> : vector<64x128xf32>
    %324 = tpu.matmul %322, %323, %cst_52 {dimension_numbers = #tpu.dot_dimension_numbers<[1], [0], [0], [1], [0, 0, 1, 1], [], []>} : vector<64x32xf32>, vector<32x128xf32>, vector<64x128xf32> -> vector<64x128xf32>
    %c0_53 = arith.constant 0 : index
    %c0_54 = arith.constant 0 : index
    %325 = vector.load %arg9[%c0_53, %c0_54] : memref<1x128xf32, #tpu.memory_space<vmem>>, vector<1x128xf32>
    %326 = vector.broadcast %325 : vector<1x128xf32> to vector<64x128xf32>
    %327 = arith.addf %324, %326 : vector<64x128xf32>
    %c0_55 = arith.constant 0 : index
    %c0_56 = arith.constant 0 : index
    %328 = vector.load %arg8[%c0_55, %c0_56] : memref<32x128xf32, #tpu.memory_space<vmem>>, vector<32x128xf32>
    %cst_57 = arith.constant 0.000000e+00 : f32
    %329 = vector.broadcast %cst_57 : f32 to vector<8x32xf32>
    %cst_58 = arith.constant 0.000000e+00 : f32
    %330 = vector.broadcast %cst_58 : f32 to vector<8x32xf32>
    %331 = vector.extract_strided_slice %327 {offsets = [0, 0], sizes = [8, 128], strides = [1, 1]} : vector<64x128xf32> to vector<8x128xf32>
    %cst_59 = arith.constant dense<0.000000e+00> : vector<8x128xf32>
    %332 = tpu.matmul %329, %328, %cst_59 {dimension_numbers = #tpu.dot_dimension_numbers<[1], [0], [0], [1], [0, 0, 1, 1], [], []>} : vector<8x32xf32>, vector<32x128xf32>, vector<8x128xf32> -> vector<8x128xf32>
    %333 = arith.addf %331, %332 : vector<8x128xf32>
    %334 = vector.extract_strided_slice %333 {offsets = [0, 0], sizes = [8, 96], strides = [1, 1]} : vector<8x128xf32> to vector<8x96xf32>
    %335 = arith.negf %334 : vector<8x96xf32>
    %336 = math.exp %335 : vector<8x96xf32>
    %cst_60 = arith.constant 1.000000e+00 : f32
    %337 = vector.broadcast %cst_60 : f32 to vector<8x96xf32>
    %338 = arith.addf %337, %336 : vector<8x96xf32>
    %339 = arith.divf %337, %338 : vector<8x96xf32>
    %340 = vector.extract_strided_slice %333 {offsets = [0, 96], sizes = [8, 32], strides = [1, 1]} : vector<8x128xf32> to vector<8x32xf32>
    %341 = math.tanh %340 : vector<8x32xf32>
    %342 = vector.extract_strided_slice %339 {offsets = [0, 0], sizes = [8, 32], strides = [1, 1]} : vector<8x96xf32> to vector<8x32xf32>
    %343 = vector.extract_strided_slice %339 {offsets = [0, 32], sizes = [8, 32], strides = [1, 1]} : vector<8x96xf32> to vector<8x32xf32>
    %344 = vector.extract_strided_slice %339 {offsets = [0, 64], sizes = [8, 32], strides = [1, 1]} : vector<8x96xf32> to vector<8x32xf32>
    %345 = arith.mulf %343, %330 : vector<8x32xf32>
    %346 = arith.mulf %342, %341 : vector<8x32xf32>
    %347 = arith.addf %345, %346 : vector<8x32xf32>
    %348 = math.tanh %347 : vector<8x32xf32>
    %349 = arith.mulf %344, %348 : vector<8x32xf32>
    %350 = vector.extract_strided_slice %327 {offsets = [8, 0], sizes = [8, 128], strides = [1, 1]} : vector<64x128xf32> to vector<8x128xf32>
    %cst_61 = arith.constant dense<0.000000e+00> : vector<8x128xf32>
    %351 = tpu.matmul %349, %328, %cst_61 {dimension_numbers = #tpu.dot_dimension_numbers<[1], [0], [0], [1], [0, 0, 1, 1], [], []>} : vector<8x32xf32>, vector<32x128xf32>, vector<8x128xf32> -> vector<8x128xf32>
    %352 = arith.addf %350, %351 : vector<8x128xf32>
    %353 = vector.extract_strided_slice %352 {offsets = [0, 0], sizes = [8, 96], strides = [1, 1]} : vector<8x128xf32> to vector<8x96xf32>
    %354 = arith.negf %353 : vector<8x96xf32>
    %355 = math.exp %354 : vector<8x96xf32>
    %cst_62 = arith.constant 1.000000e+00 : f32
    %356 = vector.broadcast %cst_62 : f32 to vector<8x96xf32>
    %357 = arith.addf %356, %355 : vector<8x96xf32>
    %358 = arith.divf %356, %357 : vector<8x96xf32>
    %359 = vector.extract_strided_slice %352 {offsets = [0, 96], sizes = [8, 32], strides = [1, 1]} : vector<8x128xf32> to vector<8x32xf32>
    %360 = math.tanh %359 : vector<8x32xf32>
    %361 = vector.extract_strided_slice %358 {offsets = [0, 0], sizes = [8, 32], strides = [1, 1]} : vector<8x96xf32> to vector<8x32xf32>
    %362 = vector.extract_strided_slice %358 {offsets = [0, 32], sizes = [8, 32], strides = [1, 1]} : vector<8x96xf32> to vector<8x32xf32>
    %363 = vector.extract_strided_slice %358 {offsets = [0, 64], sizes = [8, 32], strides = [1, 1]} : vector<8x96xf32> to vector<8x32xf32>
    %364 = arith.mulf %362, %347 : vector<8x32xf32>
    %365 = arith.mulf %361, %360 : vector<8x32xf32>
    %366 = arith.addf %364, %365 : vector<8x32xf32>
    %367 = math.tanh %366 : vector<8x32xf32>
    %368 = arith.mulf %363, %367 : vector<8x32xf32>
    %369 = vector.extract_strided_slice %327 {offsets = [16, 0], sizes = [8, 128], strides = [1, 1]} : vector<64x128xf32> to vector<8x128xf32>
    %cst_63 = arith.constant dense<0.000000e+00> : vector<8x128xf32>
    %370 = tpu.matmul %368, %328, %cst_63 {dimension_numbers = #tpu.dot_dimension_numbers<[1], [0], [0], [1], [0, 0, 1, 1], [], []>} : vector<8x32xf32>, vector<32x128xf32>, vector<8x128xf32> -> vector<8x128xf32>
    %371 = arith.addf %369, %370 : vector<8x128xf32>
    %372 = vector.extract_strided_slice %371 {offsets = [0, 0], sizes = [8, 96], strides = [1, 1]} : vector<8x128xf32> to vector<8x96xf32>
    %373 = arith.negf %372 : vector<8x96xf32>
    %374 = math.exp %373 : vector<8x96xf32>
    %cst_64 = arith.constant 1.000000e+00 : f32
    %375 = vector.broadcast %cst_64 : f32 to vector<8x96xf32>
    %376 = arith.addf %375, %374 : vector<8x96xf32>
    %377 = arith.divf %375, %376 : vector<8x96xf32>
    %378 = vector.extract_strided_slice %371 {offsets = [0, 96], sizes = [8, 32], strides = [1, 1]} : vector<8x128xf32> to vector<8x32xf32>
    %379 = math.tanh %378 : vector<8x32xf32>
    %380 = vector.extract_strided_slice %377 {offsets = [0, 0], sizes = [8, 32], strides = [1, 1]} : vector<8x96xf32> to vector<8x32xf32>
    %381 = vector.extract_strided_slice %377 {offsets = [0, 32], sizes = [8, 32], strides = [1, 1]} : vector<8x96xf32> to vector<8x32xf32>
    %382 = vector.extract_strided_slice %377 {offsets = [0, 64], sizes = [8, 32], strides = [1, 1]} : vector<8x96xf32> to vector<8x32xf32>
    %383 = arith.mulf %381, %366 : vector<8x32xf32>
    %384 = arith.mulf %380, %379 : vector<8x32xf32>
    %385 = arith.addf %383, %384 : vector<8x32xf32>
    %386 = math.tanh %385 : vector<8x32xf32>
    %387 = arith.mulf %382, %386 : vector<8x32xf32>
    %388 = vector.extract_strided_slice %327 {offsets = [24, 0], sizes = [8, 128], strides = [1, 1]} : vector<64x128xf32> to vector<8x128xf32>
    %cst_65 = arith.constant dense<0.000000e+00> : vector<8x128xf32>
    %389 = tpu.matmul %387, %328, %cst_65 {dimension_numbers = #tpu.dot_dimension_numbers<[1], [0], [0], [1], [0, 0, 1, 1], [], []>} : vector<8x32xf32>, vector<32x128xf32>, vector<8x128xf32> -> vector<8x128xf32>
    %390 = arith.addf %388, %389 : vector<8x128xf32>
    %391 = vector.extract_strided_slice %390 {offsets = [0, 0], sizes = [8, 96], strides = [1, 1]} : vector<8x128xf32> to vector<8x96xf32>
    %392 = arith.negf %391 : vector<8x96xf32>
    %393 = math.exp %392 : vector<8x96xf32>
    %cst_66 = arith.constant 1.000000e+00 : f32
    %394 = vector.broadcast %cst_66 : f32 to vector<8x96xf32>
    %395 = arith.addf %394, %393 : vector<8x96xf32>
    %396 = arith.divf %394, %395 : vector<8x96xf32>
    %397 = vector.extract_strided_slice %390 {offsets = [0, 96], sizes = [8, 32], strides = [1, 1]} : vector<8x128xf32> to vector<8x32xf32>
    %398 = math.tanh %397 : vector<8x32xf32>
    %399 = vector.extract_strided_slice %396 {offsets = [0, 0], sizes = [8, 32], strides = [1, 1]} : vector<8x96xf32> to vector<8x32xf32>
    %400 = vector.extract_strided_slice %396 {offsets = [0, 32], sizes = [8, 32], strides = [1, 1]} : vector<8x96xf32> to vector<8x32xf32>
    %401 = vector.extract_strided_slice %396 {offsets = [0, 64], sizes = [8, 32], strides = [1, 1]} : vector<8x96xf32> to vector<8x32xf32>
    %402 = arith.mulf %400, %385 : vector<8x32xf32>
    %403 = arith.mulf %399, %398 : vector<8x32xf32>
    %404 = arith.addf %402, %403 : vector<8x32xf32>
    %405 = math.tanh %404 : vector<8x32xf32>
    %406 = arith.mulf %401, %405 : vector<8x32xf32>
    %407 = vector.extract_strided_slice %327 {offsets = [32, 0], sizes = [8, 128], strides = [1, 1]} : vector<64x128xf32> to vector<8x128xf32>
    %cst_67 = arith.constant dense<0.000000e+00> : vector<8x128xf32>
    %408 = tpu.matmul %406, %328, %cst_67 {dimension_numbers = #tpu.dot_dimension_numbers<[1], [0], [0], [1], [0, 0, 1, 1], [], []>} : vector<8x32xf32>, vector<32x128xf32>, vector<8x128xf32> -> vector<8x128xf32>
    %409 = arith.addf %407, %408 : vector<8x128xf32>
    %410 = vector.extract_strided_slice %409 {offsets = [0, 0], sizes = [8, 96], strides = [1, 1]} : vector<8x128xf32> to vector<8x96xf32>
    %411 = arith.negf %410 : vector<8x96xf32>
    %412 = math.exp %411 : vector<8x96xf32>
    %cst_68 = arith.constant 1.000000e+00 : f32
    %413 = vector.broadcast %cst_68 : f32 to vector<8x96xf32>
    %414 = arith.addf %413, %412 : vector<8x96xf32>
    %415 = arith.divf %413, %414 : vector<8x96xf32>
    %416 = vector.extract_strided_slice %409 {offsets = [0, 96], sizes = [8, 32], strides = [1, 1]} : vector<8x128xf32> to vector<8x32xf32>
    %417 = math.tanh %416 : vector<8x32xf32>
    %418 = vector.extract_strided_slice %415 {offsets = [0, 0], sizes = [8, 32], strides = [1, 1]} : vector<8x96xf32> to vector<8x32xf32>
    %419 = vector.extract_strided_slice %415 {offsets = [0, 32], sizes = [8, 32], strides = [1, 1]} : vector<8x96xf32> to vector<8x32xf32>
    %420 = vector.extract_strided_slice %415 {offsets = [0, 64], sizes = [8, 32], strides = [1, 1]} : vector<8x96xf32> to vector<8x32xf32>
    %421 = arith.mulf %419, %404 : vector<8x32xf32>
    %422 = arith.mulf %418, %417 : vector<8x32xf32>
    %423 = arith.addf %421, %422 : vector<8x32xf32>
    %424 = math.tanh %423 : vector<8x32xf32>
    %425 = arith.mulf %420, %424 : vector<8x32xf32>
    %426 = vector.extract_strided_slice %327 {offsets = [40, 0], sizes = [8, 128], strides = [1, 1]} : vector<64x128xf32> to vector<8x128xf32>
    %cst_69 = arith.constant dense<0.000000e+00> : vector<8x128xf32>
    %427 = tpu.matmul %425, %328, %cst_69 {dimension_numbers = #tpu.dot_dimension_numbers<[1], [0], [0], [1], [0, 0, 1, 1], [], []>} : vector<8x32xf32>, vector<32x128xf32>, vector<8x128xf32> -> vector<8x128xf32>
    %428 = arith.addf %426, %427 : vector<8x128xf32>
    %429 = vector.extract_strided_slice %428 {offsets = [0, 0], sizes = [8, 96], strides = [1, 1]} : vector<8x128xf32> to vector<8x96xf32>
    %430 = arith.negf %429 : vector<8x96xf32>
    %431 = math.exp %430 : vector<8x96xf32>
    %cst_70 = arith.constant 1.000000e+00 : f32
    %432 = vector.broadcast %cst_70 : f32 to vector<8x96xf32>
    %433 = arith.addf %432, %431 : vector<8x96xf32>
    %434 = arith.divf %432, %433 : vector<8x96xf32>
    %435 = vector.extract_strided_slice %428 {offsets = [0, 96], sizes = [8, 32], strides = [1, 1]} : vector<8x128xf32> to vector<8x32xf32>
    %436 = math.tanh %435 : vector<8x32xf32>
    %437 = vector.extract_strided_slice %434 {offsets = [0, 0], sizes = [8, 32], strides = [1, 1]} : vector<8x96xf32> to vector<8x32xf32>
    %438 = vector.extract_strided_slice %434 {offsets = [0, 32], sizes = [8, 32], strides = [1, 1]} : vector<8x96xf32> to vector<8x32xf32>
    %439 = vector.extract_strided_slice %434 {offsets = [0, 64], sizes = [8, 32], strides = [1, 1]} : vector<8x96xf32> to vector<8x32xf32>
    %440 = arith.mulf %438, %423 : vector<8x32xf32>
    %441 = arith.mulf %437, %436 : vector<8x32xf32>
    %442 = arith.addf %440, %441 : vector<8x32xf32>
    %443 = math.tanh %442 : vector<8x32xf32>
    %444 = arith.mulf %439, %443 : vector<8x32xf32>
    %445 = vector.extract_strided_slice %327 {offsets = [48, 0], sizes = [8, 128], strides = [1, 1]} : vector<64x128xf32> to vector<8x128xf32>
    %cst_71 = arith.constant dense<0.000000e+00> : vector<8x128xf32>
    %446 = tpu.matmul %444, %328, %cst_71 {dimension_numbers = #tpu.dot_dimension_numbers<[1], [0], [0], [1], [0, 0, 1, 1], [], []>} : vector<8x32xf32>, vector<32x128xf32>, vector<8x128xf32> -> vector<8x128xf32>
    %447 = arith.addf %445, %446 : vector<8x128xf32>
    %448 = vector.extract_strided_slice %447 {offsets = [0, 0], sizes = [8, 96], strides = [1, 1]} : vector<8x128xf32> to vector<8x96xf32>
    %449 = arith.negf %448 : vector<8x96xf32>
    %450 = math.exp %449 : vector<8x96xf32>
    %cst_72 = arith.constant 1.000000e+00 : f32
    %451 = vector.broadcast %cst_72 : f32 to vector<8x96xf32>
    %452 = arith.addf %451, %450 : vector<8x96xf32>
    %453 = arith.divf %451, %452 : vector<8x96xf32>
    %454 = vector.extract_strided_slice %447 {offsets = [0, 96], sizes = [8, 32], strides = [1, 1]} : vector<8x128xf32> to vector<8x32xf32>
    %455 = math.tanh %454 : vector<8x32xf32>
    %456 = vector.extract_strided_slice %453 {offsets = [0, 0], sizes = [8, 32], strides = [1, 1]} : vector<8x96xf32> to vector<8x32xf32>
    %457 = vector.extract_strided_slice %453 {offsets = [0, 32], sizes = [8, 32], strides = [1, 1]} : vector<8x96xf32> to vector<8x32xf32>
    %458 = vector.extract_strided_slice %453 {offsets = [0, 64], sizes = [8, 32], strides = [1, 1]} : vector<8x96xf32> to vector<8x32xf32>
    %459 = arith.mulf %457, %442 : vector<8x32xf32>
    %460 = arith.mulf %456, %455 : vector<8x32xf32>
    %461 = arith.addf %459, %460 : vector<8x32xf32>
    %462 = math.tanh %461 : vector<8x32xf32>
    %463 = arith.mulf %458, %462 : vector<8x32xf32>
    %464 = vector.extract_strided_slice %327 {offsets = [56, 0], sizes = [8, 128], strides = [1, 1]} : vector<64x128xf32> to vector<8x128xf32>
    %cst_73 = arith.constant dense<0.000000e+00> : vector<8x128xf32>
    %465 = tpu.matmul %463, %328, %cst_73 {dimension_numbers = #tpu.dot_dimension_numbers<[1], [0], [0], [1], [0, 0, 1, 1], [], []>} : vector<8x32xf32>, vector<32x128xf32>, vector<8x128xf32> -> vector<8x128xf32>
    %466 = arith.addf %464, %465 : vector<8x128xf32>
    %467 = vector.extract_strided_slice %466 {offsets = [0, 0], sizes = [8, 96], strides = [1, 1]} : vector<8x128xf32> to vector<8x96xf32>
    %468 = arith.negf %467 : vector<8x96xf32>
    %469 = math.exp %468 : vector<8x96xf32>
    %cst_74 = arith.constant 1.000000e+00 : f32
    %470 = vector.broadcast %cst_74 : f32 to vector<8x96xf32>
    %471 = arith.addf %470, %469 : vector<8x96xf32>
    %472 = arith.divf %470, %471 : vector<8x96xf32>
    %473 = vector.extract_strided_slice %466 {offsets = [0, 96], sizes = [8, 32], strides = [1, 1]} : vector<8x128xf32> to vector<8x32xf32>
    %474 = math.tanh %473 : vector<8x32xf32>
    %475 = vector.extract_strided_slice %472 {offsets = [0, 0], sizes = [8, 32], strides = [1, 1]} : vector<8x96xf32> to vector<8x32xf32>
    %476 = vector.extract_strided_slice %472 {offsets = [0, 32], sizes = [8, 32], strides = [1, 1]} : vector<8x96xf32> to vector<8x32xf32>
    %477 = vector.extract_strided_slice %472 {offsets = [0, 64], sizes = [8, 32], strides = [1, 1]} : vector<8x96xf32> to vector<8x32xf32>
    %478 = arith.mulf %476, %461 : vector<8x32xf32>
    %479 = arith.mulf %475, %474 : vector<8x32xf32>
    %480 = arith.addf %478, %479 : vector<8x32xf32>
    %481 = math.tanh %480 : vector<8x32xf32>
    %482 = arith.mulf %477, %481 : vector<8x32xf32>
    %483 = tpu.concatenate %349, %368, %387, %406, %425, %444, %463, %482 in 0 : vector<8x32xf32>, vector<8x32xf32>, vector<8x32xf32>, vector<8x32xf32>, vector<8x32xf32>, vector<8x32xf32>, vector<8x32xf32>, vector<8x32xf32> -> vector<64x32xf32>
    %484 = vector.extract_strided_slice %483 {offsets = [32, 0], sizes = [32, 32], strides = [1, 1]} : vector<64x32xf32> to vector<32x32xf32>
    %c0_75 = arith.constant 0 : index
    %c0_76 = arith.constant 0 : index
    %485 = vector.load %arg10[%c0_75, %c0_76] : memref<32x128xf32, #tpu.memory_space<vmem>>, vector<32x128xf32>
    %cst_77 = arith.constant dense<0.000000e+00> : vector<32x128xf32>
    %486 = tpu.matmul %484, %485, %cst_77 {dimension_numbers = #tpu.dot_dimension_numbers<[1], [0], [0], [1], [0, 0, 1, 1], [], []>} : vector<32x32xf32>, vector<32x128xf32>, vector<32x128xf32> -> vector<32x128xf32>
    %c0_78 = arith.constant 0 : index
    %c0_79 = arith.constant 0 : index
    %487 = vector.load %arg11[%c0_78, %c0_79] : memref<1x128xf32, #tpu.memory_space<vmem>>, vector<1x128xf32>
    %488 = vector.broadcast %487 : vector<1x128xf32> to vector<32x128xf32>
    %489 = arith.addf %486, %488 : vector<32x128xf32>
    %c0_80 = arith.constant 0 : index
    %c0_81 = arith.constant 0 : index
    %490 = vector.load %arg12[%c0_80, %c0_81] : memref<32x128xf32, #tpu.memory_space<vmem>>, vector<32x128xf32>
    tpu.vector_store %arg12[%c0_80, %c0_81], %489 {strides = array<i32>} : memref<32x128xf32, #tpu.memory_space<vmem>>, vector<32x128xf32>,
    return
  }
}

</mosaic_0001>

<llo_original>
// kernel: tpu_custom_call.1
$region0: #{tpu_custom_call.1}
  #allocation0 [shape = 'u32[]', space=smem, size = 0x4, offset = 0x4, fixed_abs, tag = 'smem constant byte address 0x4 - core index']
  #allocation1 [shape = 'u32[144,128]{1,0:T(1,128)}', space=vmem, size = 0x12000, scoped, tag = 'internal scratch']
  %s0 = inlined_call_operand.vmem [shape: f32[64,4], index: 0, kind: input, shape index: {}]
  %s1 = inlined_call_operand.hbm [shape: f32[4,128], index: 1, kind: input, shape index: {}]
  %s2 = inlined_call_operand.vmem [shape: f32[32,128], index: 2, kind: input, shape index: {}]
  %s3 = inlined_call_operand.vmem [shape: f32[1,128], index: 3, kind: input, shape index: {}]
  %s4 = inlined_call_operand.vmem [shape: f32[32,128], index: 4, kind: input, shape index: {}]
  %s5 = inlined_call_operand.hbm [shape: f32[32,128], index: 5, kind: input, shape index: {}]
  %s6 = inlined_call_operand.vmem [shape: f32[1,128], index: 6, kind: input, shape index: {}]
  %s7 = inlined_call_operand.hbm [shape: f32[32,128], index: 7, kind: input, shape index: {}]
  %s8 = inlined_call_operand.vmem [shape: f32[32,128], index: 8, kind: input, shape index: {}]
  %s9 = inlined_call_operand.vmem [shape: f32[1,128], index: 9, kind: input, shape index: {}]
  %s10 = inlined_call_operand.hbm [shape: f32[32,128], index: 10, kind: input, shape index: {}]
  %s11 = inlined_call_operand.vmem [shape: f32[1,128], index: 11, kind: input, shape index: {}]
  %s12 = inlined_call_operand.hbm [shape: f32[32,128], index: 12, kind: output, shape index: {}]
  %s13 = sld [smem:[#allocation0]]
  $region74: #{tpu_custom_call.1} parent=0
    _
  %s15 = ssub.s32 1, %s13
  %s16 = scalar_select 0, %s15, %s13
  $region1: #{tpu_custom_call.1} parent=0
    #allocation2 [shape = 'u8[2048]{0}', space=vmem, size = 0x800, scoped, tag = 'input window, operand 1, single buffered']
    #allocation3 [shape = 's32[1]{0}', space=sflag, size = 0x4, scoped, tag = 'scoped memory for tpu_custom_call.1']
    #allocation4 [shape = 's32[1]{0}', space=sflag, size = 0x4, scoped, tag = 'scoped memory for tpu_custom_call.1']
    #allocation5 [shape = 'u8[16384]{0}', space=vmem, size = 0x4000, scoped, tag = 'input window, operand 5, single buffered']
    #allocation6 [shape = 's32[1]{0}', space=sflag, size = 0x4, scoped, tag = 'scoped memory for tpu_custom_call.1']
    #allocation7 [shape = 'u8[16384]{0}', space=vmem, size = 0x4000, scoped, tag = 'input window, operand 7, single buffered']
    #allocation8 [shape = 'u8[16384]{0}', space=vmem, size = 0x4000, scoped, tag = 'input window, operand 10, single buffered']
    #allocation9 [shape = 's32[1]{0}', space=sflag, size = 0x4, scoped, tag = 'scoped memory for tpu_custom_call.1']
    #allocation10 [shape = 'u8[16384]{0}', space=vmem, size = 0x4000, scoped, tag = 'output window, operand 0, single buffered']
    %17 = vsyncpa [#allocation3], 0
    %18 = vsyncpa [#allocation6], 0
    %19 = vsyncpa [#allocation9], 0
    %20 = vsyncpa [#allocation4], 0
    // Predicated region
    $region2: #{tpu_custom_call.1} parent=1 // pred_check
      _
    $region3: #{tpu_custom_call.1} parent=1 // pred_check_branch
      %22 = sbr.rel (0) target = $region5
    $region4: #{tpu_custom_call.1} parent=1 // pred_region
      _
    $region5: #{tpu_custom_call.1} parent=1 // pred_fallthru
      _
    // Predicated region
    $region6: #{tpu_custom_call.1} parent=1 // pred_check
      _
    $region7: #{tpu_custom_call.1} parent=1 // pred_check_branch
      %24 = sbr.rel (0) target = $region9
    $region8: #{tpu_custom_call.1} parent=1 // pred_region
      %s26 = ssub.s32 64, 64
      %27 = vsyncadd [#allocation3], %s26
      %s29 = sshll.u32 [#allocation2], 4
      %s30 = int_to_ptr.vmem [resolvable:$true] %s29
      %32 = dma.hbm_to_vmem [thread:$0]  %s1, 64, %s30, [#allocation3]
    $region9: #{tpu_custom_call.1} parent=1 // pred_fallthru
      _
    // Predicated region
    $region10: #{tpu_custom_call.1} parent=1 // pred_check
      _
    $region11: #{tpu_custom_call.1} parent=1 // pred_check_branch
      %34 = sbr.rel (0) target = $region13
    $region12: #{tpu_custom_call.1} parent=1 // pred_region
      _
    $region13: #{tpu_custom_call.1} parent=1 // pred_fallthru
      _
    // Predicated region
    $region14: #{tpu_custom_call.1} parent=1 // pred_check
      _
    $region15: #{tpu_custom_call.1} parent=1 // pred_check_branch
      %36 = sbr.rel (0) target = $region17
    $region16: #{tpu_custom_call.1} parent=1 // pred_region
      _
    $region17: #{tpu_custom_call.1} parent=1 // pred_fallthru
      _
    // Predicated region
    $region18: #{tpu_custom_call.1} parent=1 // pred_check
      _
    $region19: #{tpu_custom_call.1} parent=1 // pred_check_branch
      %38 = sbr.rel (0) target = $region21
    $region20: #{tpu_custom_call.1} parent=1 // pred_region
      _
    $region21: #{tpu_custom_call.1} parent=1 // pred_fallthru
      _
    // Predicated region
    $region22: #{tpu_custom_call.1} parent=1 // pred_check
      _
    $region23: #{tpu_custom_call.1} parent=1 // pred_check_branch
      %40 = sbr.rel (0) target = $region25
    $region24: #{tpu_custom_call.1} parent=1 // pred_region
      %s42 = ssub.s32 512, 512
      %43 = vsyncadd [#allocation6], %s42
      %s44 = sshll.u32 [#allocation5], 4
      %s45 = int_to_ptr.vmem [resolvable:$true] %s44
      %50 = dma.hbm_to_vmem [thread:$0]  %s5, 512, %s45, [#allocation6], 128, 128, 8
    $region25: #{tpu_custom_call.1} parent=1 // pred_fallthru
      _
    // Predicated region
    $region26: #{tpu_custom_call.1} parent=1 // pred_check
      _
    $region27: #{tpu_custom_call.1} parent=1 // pred_check_branch
      %52 = sbr.rel (0) target = $region29
    $region28: #{tpu_custom_call.1} parent=1 // pred_region
      _
    $region29: #{tpu_custom_call.1} parent=1 // pred_fallthru
      _
    // Predicated region
    $region30: #{tpu_custom_call.1} parent=1 // pred_check
      _
    $region31: #{tpu_custom_call.1} parent=1 // pred_check_branch
      %54 = sbr.rel (0) target = $region33
    $region32: #{tpu_custom_call.1} parent=1 // pred_region
      %s56 = ssub.s32 512, 512
      %57 = vsyncadd [#allocation6], %s56
      %s58 = sshll.u32 [#allocation7], 4
      %s59 = int_to_ptr.vmem [resolvable:$true] %s58
      %64 = dma.hbm_to_vmem [thread:$0]  %s7, 512, %s59, [#allocation6], 128, 128, 8
    $region33: #{tpu_custom_call.1} parent=1 // pred_fallthru
      _
    // Predicated region
    $region34: #{tpu_custom_call.1} parent=1 // pred_check
      _
    $region35: #{tpu_custom_call.1} parent=1 // pred_check_branch
      %66 = sbr.rel (0) target = $region37
    $region36: #{tpu_custom_call.1} parent=1 // pred_region
      _
    $region37: #{tpu_custom_call.1} parent=1 // pred_fallthru
      _
    // Predicated region
    $region38: #{tpu_custom_call.1} parent=1 // pred_check
      _
    $region39: #{tpu_custom_call.1} parent=1 // pred_check_branch
      %68 = sbr.rel (0) target = $region41
    $region40: #{tpu_custom_call.1} parent=1 // pred_region
      _
    $region41: #{tpu_custom_call.1} parent=1 // pred_fallthru
      _
    // Predicated region
    $region42: #{tpu_custom_call.1} parent=1 // pred_check
      _
    $region43: #{tpu_custom_call.1} parent=1 // pred_check_branch
      %70 = sbr.rel (0) target = $region45
    $region44: #{tpu_custom_call.1} parent=1 // pred_region
      %s72 = ssub.s32 512, 512
      %73 = vsyncadd [#allocation9], %s72
      %s74 = sshll.u32 [#allocation8], 4
      %s75 = int_to_ptr.vmem [resolvable:$true] %s74
      %80 = dma.hbm_to_vmem [thread:$0]  %s10, 512, %s75, [#allocation9], 128, 128, 8
    $region45: #{tpu_custom_call.1} parent=1 // pred_fallthru
      _
    // Predicated region
    $region46: #{tpu_custom_call.1} parent=1 // pred_check
      _
    $region47: #{tpu_custom_call.1} parent=1 // pred_check_branch
      %82 = sbr.rel (0) target = $region49
    $region48: #{tpu_custom_call.1} parent=1 // pred_region
      _
    $region49: #{tpu_custom_call.1} parent=1 // pred_fallthru
      _
    // Predicated region
    $region50: #{tpu_custom_call.1} parent=1 // pred_check
      _
    $region51: #{tpu_custom_call.1} parent=1 // pred_check_branch
      %84 = sbr.rel (0) target = $region53
    $region52: #{tpu_custom_call.1} parent=1 // pred_region
      %85 = dma.done [#allocation3], 64
    $region53: #{tpu_custom_call.1} parent=1 // pred_fallthru
      _
    // Predicated region
    $region54: #{tpu_custom_call.1} parent=1 // pred_check
      _
    $region55: #{tpu_custom_call.1} parent=1 // pred_check_branch
      %87 = sbr.rel (0) target = $region57
    $region56: #{tpu_custom_call.1} parent=1 // pred_region
      %88 = dma.done [#allocation6], 512
    $region57: #{tpu_custom_call.1} parent=1 // pred_fallthru
      _
    // Predicated region
    $region58: #{tpu_custom_call.1} parent=1 // pred_check
      _
    $region59: #{tpu_custom_call.1} parent=1 // pred_check_branch
      %90 = sbr.rel (0) target = $region61
    $region60: #{tpu_custom_call.1} parent=1 // pred_region
      %91 = dma.done [#allocation6], 512
    $region61: #{tpu_custom_call.1} parent=1 // pred_fallthru
      _
    // Predicated region
    $region62: #{tpu_custom_call.1} parent=1 // pred_check
      _
    $region63: #{tpu_custom_call.1} parent=1 // pred_check_branch
      %93 = sbr.rel (0) target = $region65
    $region64: #{tpu_custom_call.1} parent=1 // pred_region
      %94 = dma.done [#allocation9], 512
    $region65: #{tpu_custom_call.1} parent=1 // pred_fallthru
      _
    %v95 = vld [vmem:[%s0] sm:$0xff]
    %v96 = vld [vmem:[%s0 + $0x8] sm:$0xff]
    %v97 = vld [vmem:[%s0 + $0x10] sm:$0xff]
    %v98 = vld [vmem:[%s0 + $0x18] sm:$0xff]
    %v99 = vld [vmem:[%s0 + $0x20] sm:$0xff]
    %v100 = vld [vmem:[%s0 + $0x28] sm:$0xff]
    %v101 = vld [vmem:[%s0 + $0x30] sm:$0xff]
    %v102 = vld [vmem:[%s0 + $0x38] sm:$0xff]
    %v103 = vld [vmem:[#allocation2] sm:$0xf]
    %v104 = vld [vmem:[%s3] sm:$0x1]
    %v106 = vlaneseq
    %v107 = vshrl.u32 %v106, 7
    %v108 = vsub.s32 0, %v107
    %v109 = vrot.slane %v104, %v108
    %vm111 = vcmask 31744
    %v113 = vsel %vm111, %v95, 0
    %v116 = vsel %vm111, %v96, 0
    %v119 = vsel %vm111, %v97, 0
    %v122 = vsel %vm111, %v98, 0
    %v125 = vsel %vm111, %v99, 0
    %v128 = vsel %vm111, %v100, 0
    %v131 = vsel %vm111, %v101, 0
    %v134 = vsel %vm111, %v102, 0
    %vm136 = vcmask 1043456
    %v138 = vsel %vm136, %v103, 0
    %140 = vmatprep.subr.mxu0 0.0
    %141 = vmatpush1.msra.mxu0 %v138
    %142 = vmatprep.subr.mxu0 0.0
    %143 = vmatpush1.msra.mxu0 0.0
    %144 = vmatprep.subr.mxu0 0.0
    %145 = vmatpush1.msra.mxu0 0.0
    %146 = vmatprep.subr.mxu0 0.0
    %147 = vmatpush1.msra.mxu0 0.0
    %148 = vmatprep.subr.mxu0 0.0
    %149 = vmatpush1.msra.mxu0 0.0
    %150 = vmatprep.subr.mxu0 0.0
    %151 = vmatpush1.msra.mxu0 0.0
    %152 = vmatprep.subr.mxu0 0.0
    %153 = vmatpush1.msra.mxu0 0.0
    %154 = vmatprep.subr.mxu0 0.0
    %155 = vmatpush1.msra.mxu0 0.0
    %156 = vmatprep.subr.mxu0 0.0
    %157 = vmatpush1.msra.mxu0 0.0
    %158 = vmatprep.subr.mxu0 0.0
    %159 = vmatpush1.msra.mxu0 0.0
    %160 = vmatprep.subr.mxu0 0.0
    %161 = vmatpush1.msra.mxu0 0.0
    %162 = vmatprep.subr.mxu0 0.0
    %163 = vmatpush1.msra.mxu0 0.0
    %164 = vmatprep.subr.mxu0 0.0
    %165 = vmatpush1.msra.mxu0 0.0
    %166 = vmatprep.subr.mxu0 0.0
    %167 = vmatpush1.msra.mxu0 0.0
    %168 = vmatprep.subr.mxu0 0.0
    %169 = vmatpush1.msra.mxu0 0.0
    %170 = vmatprep.subr.mxu0 0.0
    %171 = vmatpush1.msra.mxu0 0.0
    %172 = vmatprep.subr.mxu0 0.0
    %173 = vmatpush1.msra.mxu0 0.0
    %174 = vmatprep.subr.mxu0 0.0
    %175 = vmatpush1.msra.mxu0 0.0
    %176 = vmatprep.subr.mxu0 0.0
    %177 = vmatpush1.msra.mxu0 0.0
    %178 = vmatprep.subr.mxu0 0.0
    %179 = vmatpush1.msra.mxu0 0.0
    %180 = vmatprep.subr.mxu0 0.0
    %181 = vmatpush1.msra.mxu0 0.0
    %182 = vmatprep.subr.mxu0 0.0
    %183 = vmatpush1.msra.mxu0 0.0
    %184 = vmatprep.subr.mxu0 0.0
    %185 = vmatpush1.msra.mxu0 0.0
    %186 = vmatprep.subr.mxu0 0.0
    %187 = vmatpush1.msra.mxu0 0.0
    %188 = vmatprep.subr.mxu0 0.0
    %189 = vmatpush1.msra.mxu0 0.0
    %190 = vmatprep.subr.mxu0 0.0
    %191 = vmatpush1.msra.mxu0 0.0
    %192 = vmatprep.subr.mxu0 0.0
    %193 = vmatpush1.msra.mxu0 0.0
    %194 = vmatprep.subr.mxu0 0.0
    %195 = vmatpush1.msra.mxu0 0.0
    %196 = vmatprep.subr.mxu0 0.0
    %197 = vmatpush1.msra.mxu0 0.0
    %198 = vmatprep.subr.mxu0 0.0
    %199 = vmatpush1.msra.mxu0 0.0
    %200 = vmatprep.subr.mxu0 0.0
    %201 = vmatpush1.msra.mxu0 0.0
    %202 = vmatprep.subr.mxu0 0.0
    %203 = vmatpush1.msra.mxu0 0.0
    %204 = vmatprep.mubr.f32.mxu0 0.0
    %205 = vmatmul.mubr.f32.gmra.mrb[0].mxu0 %v113
    %v206 = vpop.f32.mrb[0].mxu0
    %v207 = vadd.f32 %v109, %v206
    %v208 = vpop.f32.mrb[0].mxu0
    %209 = vmatprep.mubr.f32.mxu0 0.0
    %210 = vmatmul.mubr.f32.gmra.mrb[0].mxu0 %v116
    %v211 = vpop.f32.mrb[0].mxu0
    %v212 = vadd.f32 %v109, %v211
    %v213 = vpop.f32.mrb[0].mxu0
    %214 = vmatprep.mubr.f32.mxu0 0.0
    %215 = vmatmul.mubr.f32.gmra.mrb[0].mxu0 %v119
    %v216 = vpop.f32.mrb[0].mxu0
    %v217 = vadd.f32 %v109, %v216
    %v218 = vpop.f32.mrb[0].mxu0
    %219 = vmatprep.mubr.f32.mxu0 0.0
    %220 = vmatmul.mubr.f32.gmra.mrb[0].mxu0 %v122
    %v221 = vpop.f32.mrb[0].mxu0
    %v222 = vadd.f32 %v109, %v221
    %v223 = vpop.f32.mrb[0].mxu0
    %224 = vmatprep.mubr.f32.mxu0 0.0
    %225 = vmatmul.mubr.f32.gmra.mrb[0].mxu0 %v125
    %v226 = vpop.f32.mrb[0].mxu0
    %v227 = vadd.f32 %v109, %v226
    %v228 = vpop.f32.mrb[0].mxu0
    %229 = vmatprep.mubr.f32.mxu0 0.0
    %230 = vmatmul.mubr.f32.gmra.mrb[0].mxu0 %v128
    %v231 = vpop.f32.mrb[0].mxu0
    %v232 = vadd.f32 %v109, %v231
    %v233 = vpop.f32.mrb[0].mxu0
    %234 = vmatprep.mubr.f32.mxu0 0.0
    %235 = vmatmul.mubr.f32.gmra.mrb[0].mxu0 %v131
    %v236 = vpop.f32.mrb[0].mxu0
    %v237 = vadd.f32 %v109, %v236
    %v238 = vpop.f32.mrb[0].mxu0
    %239 = vmatprep.mubr.f32.mxu0 0.0
    %240 = vmatmul.mubr.f32.gmra.mrb[0].mxu0 %v134
    %v241 = vpop.f32.mrb[0].mxu0
    %v242 = vadd.f32 %v109, %v241
    %v243 = vpop.f32.mrb[0].mxu0
    %244 = vdwg.mxu0
    %v245 = vld [vmem:[%s2] sm:$0xff]
    %v246 = vld [vmem:[%s2 + $0x8] sm:$0xff]
    %v247 = vld [vmem:[%s2 + $0x10] sm:$0xff]
    %v248 = vld [vmem:[%s2 + $0x18] sm:$0xff]
    %vm249 = vcmask 261120
    %v251 = vsel %vm249, 0.0, 0
    %253 = vmatprep.subr.mxu0 0.0
    %254 = vmatpush1.msra.mxu0 %v245
    %255 = vmatprep.subr.mxu0 0.0
    %256 = vmatpush1.msra.mxu0 %v246
    %257 = vmatprep.subr.mxu0 0.0
    %258 = vmatpush1.msra.mxu0 %v247
    %259 = vmatprep.subr.mxu0 0.0
    %260 = vmatpush1.msra.mxu0 %v248
    %261 = vmatprep.subr.mxu0 0.0
    %262 = vmatpush1.msra.mxu0 0.0
    %263 = vmatprep.subr.mxu0 0.0
    %264 = vmatpush1.msra.mxu0 0.0
    %265 = vmatprep.subr.mxu0 0.0
    %266 = vmatpush1.msra.mxu0 0.0
    %267 = vmatprep.subr.mxu0 0.0
    %268 = vmatpush1.msra.mxu0 0.0
    %269 = vmatprep.subr.mxu0 0.0
    %270 = vmatpush1.msra.mxu0 0.0
    %271 = vmatprep.subr.mxu0 0.0
    %272 = vmatpush1.msra.mxu0 0.0
    %273 = vmatprep.subr.mxu0 0.0
    %274 = vmatpush1.msra.mxu0 0.0
    %275 = vmatprep.subr.mxu0 0.0
    %276 = vmatpush1.msra.mxu0 0.0
    %277 = vmatprep.subr.mxu0 0.0
    %278 = vmatpush1.msra.mxu0 0.0
    %279 = vmatprep.subr.mxu0 0.0
    %280 = vmatpush1.msra.mxu0 0.0
    %281 = vmatprep.subr.mxu0 0.0
    %282 = vmatpush1.msra.mxu0 0.0
    %283 = vmatprep.subr.mxu0 0.0
    %284 = vmatpush1.msra.mxu0 0.0
    %285 = vmatprep.subr.mxu0 0.0
    %286 = vmatpush1.msra.mxu0 0.0
    %287 = vmatprep.subr.mxu0 0.0
    %288 = vmatpush1.msra.mxu0 0.0
    %289 = vmatprep.subr.mxu0 0.0
    %290 = vmatpush1.msra.mxu0 0.0
    %291 = vmatprep.subr.mxu0 0.0
    %292 = vmatpush1.msra.mxu0 0.0
    %293 = vmatprep.subr.mxu0 0.0
    %294 = vmatpush1.msra.mxu0 0.0
    %295 = vmatprep.subr.mxu0 0.0
    %296 = vmatpush1.msra.mxu0 0.0
    %297 = vmatprep.subr.mxu0 0.0
    %298 = vmatpush1.msra.mxu0 0.0
    %299 = vmatprep.subr.mxu0 0.0
    %300 = vmatpush1.msra.mxu0 0.0
    %301 = vmatprep.subr.mxu0 0.0
    %302 = vmatpush1.msra.mxu0 0.0
    %303 = vmatprep.subr.mxu0 0.0
    %304 = vmatpush1.msra.mxu0 0.0
    %305 = vmatprep.subr.mxu0 0.0
    %306 = vmatpush1.msra.mxu0 0.0
    %307 = vmatprep.subr.mxu0 0.0
    %308 = vmatpush1.msra.mxu0 0.0
    %309 = vmatprep.subr.mxu0 0.0
    %310 = vmatpush1.msra.mxu0 0.0
    %311 = vmatprep.subr.mxu0 0.0
    %312 = vmatpush1.msra.mxu0 0.0
    %313 = vmatprep.subr.mxu0 0.0
    %314 = vmatpush1.msra.mxu0 0.0
    %315 = vmatprep.subr.mxu0 0.0
    %316 = vmatpush1.msra.mxu0 0.0
    %317 = vmatprep.mubr.f32.mxu0 0.0
    %318 = vmatmul.mubr.f32.gmra.mrb[0].mxu0 %v251
    %v319 = vpop.f32.mrb[0].mxu0
    %v320 = vadd.f32 0.0, %v319
    %v321 = vpop.f32.mrb[0].mxu0
    %322 = vdwg.mxu0
    %v323 = vadd.f32 %v207, %v320
    %v324 = vxor.u32 %v323, 2147483648
    %v325 = vmul.f32 %v324, 1.442695
    %v326 = vpow.pop %v325
    %v327 = vadd.f32 %v326, 1.0
    %v328 = vrcp.pop %v327
    %v329 = vmul.f32 1.0, %v328
    %v330 = vtanh.pop %v323
    %v331 = vmul.f32 %v329, 0.0
    %333 = vrot.lane.b32.xlu0 %v330, 32
    %v334 = vpop.permute.xlu0 %333
    %v336 = vmul.f32 %v329, %v334
    %338 = vrot.lane.b32.xlu0 %v336, 32
    %v339 = vpop.permute.xlu0 %338
    %v341 = vadd.f32 %v331, %v339
    %v342 = vtanh.pop %v341
    %344 = vrot.lane.b32.xlu0 %v342, 32
    %v345 = vpop.permute.xlu0 %344
    %v347 = vmul.f32 %v329, %v345
    %349 = vrot.lane.b32.xlu0 %v347, 64
    %v350 = vpop.permute.xlu0 %349
    %v351 = vsel %vm249, %v350, 0
    %353 = vmatprep.subr.mxu0 0.0
    %354 = vmatpush1.msra.mxu0 %v245
    %355 = vmatprep.subr.mxu0 0.0
    %356 = vmatpush1.msra.mxu0 %v246
    %357 = vmatprep.subr.mxu0 0.0
    %358 = vmatpush1.msra.mxu0 %v247
    %359 = vmatprep.subr.mxu0 0.0
    %360 = vmatpush1.msra.mxu0 %v248
    %361 = vmatprep.subr.mxu0 0.0
    %362 = vmatpush1.msra.mxu0 0.0
    %363 = vmatprep.subr.mxu0 0.0
    %364 = vmatpush1.msra.mxu0 0.0
    %365 = vmatprep.subr.mxu0 0.0
    %366 = vmatpush1.msra.mxu0 0.0
    %367 = vmatprep.subr.mxu0 0.0
    %368 = vmatpush1.msra.mxu0 0.0
    %369 = vmatprep.subr.mxu0 0.0
    %370 = vmatpush1.msra.mxu0 0.0
    %371 = vmatprep.subr.mxu0 0.0
    %372 = vmatpush1.msra.mxu0 0.0
    %373 = vmatprep.subr.mxu0 0.0
    %374 = vmatpush1.msra.mxu0 0.0
    %375 = vmatprep.subr.mxu0 0.0
    %376 = vmatpush1.msra.mxu0 0.0
    %377 = vmatprep.subr.mxu0 0.0
    %378 = vmatpush1.msra.mxu0 0.0
    %379 = vmatprep.subr.mxu0 0.0
    %380 = vmatpush1.msra.mxu0 0.0
    %381 = vmatprep.subr.mxu0 0.0
    %382 = vmatpush1.msra.mxu0 0.0
    %383 = vmatprep.subr.mxu0 0.0
    %384 = vmatpush1.msra.mxu0 0.0
    %385 = vmatprep.subr.mxu0 0.0
    %386 = vmatpush1.msra.mxu0 0.0
    %387 = vmatprep.subr.mxu0 0.0
    %388 = vmatpush1.msra.mxu0 0.0
    %389 = vmatprep.subr.mxu0 0.0
    %390 = vmatpush1.msra.mxu0 0.0
    %391 = vmatprep.subr.mxu0 0.0
    %392 = vmatpush1.msra.mxu0 0.0
    %393 = vmatprep.subr.mxu0 0.0
    %394 = vmatpush1.msra.mxu0 0.0
    %395 = vmatprep.subr.mxu0 0.0
    %396 = vmatpush1.msra.mxu0 0.0
    %397 = vmatprep.subr.mxu0 0.0
    %398 = vmatpush1.msra.mxu0 0.0
    %399 = vmatprep.subr.mxu0 0.0
    %400 = vmatpush1.msra.mxu0 0.0
    %401 = vmatprep.subr.mxu0 0.0
    %402 = vmatpush1.msra.mxu0 0.0
    %403 = vmatprep.subr.mxu0 0.0
    %404 = vmatpush1.msra.mxu0 0.0
    %405 = vmatprep.subr.mxu0 0.0
    %406 = vmatpush1.msra.mxu0 0.0
    %407 = vmatprep.subr.mxu0 0.0
    %408 = vmatpush1.msra.mxu0 0.0
    %409 = vmatprep.subr.mxu0 0.0
    %410 = vmatpush1.msra.mxu0 0.0
    %411 = vmatprep.subr.mxu0 0.0
    %412 = vmatpush1.msra.mxu0 0.0
    %413 = vmatprep.subr.mxu0 0.0
    %414 = vmatpush1.msra.mxu0 0.0
    %415 = vmatprep.subr.mxu0 0.0
    %416 = vmatpush1.msra.mxu0 0.0
    %417 = vmatprep.mubr.f32.mxu0 0.0
    %418 = vmatmul.mubr.f32.gmra.mrb[0].mxu0 %v351
    %v419 = vpop.f32.mrb[0].mxu0
    %v420 = vadd.f32 0.0, %v419
    %v421 = vpop.f32.mrb[0].mxu0
    %422 = vdwg.mxu0
    %v423 = vadd.f32 %v212, %v420
    %v424 = vxor.u32 %v423, 2147483648
    %v425 = vmul.f32 %v424, 1.442695
    %v426 = vpow.pop %v425
    %v427 = vadd.f32 %v426, 1.0
    %v428 = vrcp.pop %v427
    %v429 = vmul.f32 1.0, %v428
    %v430 = vtanh.pop %v423
    %v431 = vmul.f32 %v429, %v341
    %433 = vrot.lane.b32.xlu0 %v430, 32
    %v434 = vpop.permute.xlu0 %433
    %v436 = vmul.f32 %v429, %v434
    %438 = vrot.lane.b32.xlu0 %v436, 32
    %v439 = vpop.permute.xlu0 %438
    %v441 = vadd.f32 %v431, %v439
    %v442 = vtanh.pop %v441
    %444 = vrot.lane.b32.xlu0 %v442, 32
    %v445 = vpop.permute.xlu0 %444
    %v447 = vmul.f32 %v429, %v445
    %449 = vrot.lane.b32.xlu0 %v447, 64
    %v450 = vpop.permute.xlu0 %449
    %v451 = vsel %vm249, %v450, 0
    %453 = vmatprep.subr.mxu0 0.0
    %454 = vmatpush1.msra.mxu0 %v245
    %455 = vmatprep.subr.mxu0 0.0
    %456 = vmatpush1.msra.mxu0 %v246
    %457 = vmatprep.subr.mxu0 0.0
    %458 = vmatpush1.msra.mxu0 %v247
    %459 = vmatprep.subr.mxu0 0.0
    %460 = vmatpush1.msra.mxu0 %v248
    %461 = vmatprep.subr.mxu0 0.0
    %462 = vmatpush1.msra.mxu0 0.0
    %463 = vmatprep.subr.mxu0 0.0
    %464 = vmatpush1.msra.mxu0 0.0
    %465 = vmatprep.subr.mxu0 0.0
    %466 = vmatpush1.msra.mxu0 0.0
    %467 = vmatprep.subr.mxu0 0.0
    %468 = vmatpush1.msra.mxu0 0.0
    %469 = vmatprep.subr.mxu0 0.0
    %470 = vmatpush1.msra.mxu0 0.0
    %471 = vmatprep.subr.mxu0 0.0
    %472 = vmatpush1.msra.mxu0 0.0
    %473 = vmatprep.subr.mxu0 0.0
    %474 = vmatpush1.msra.mxu0 0.0
    %475 = vmatprep.subr.mxu0 0.0
    %476 = vmatpush1.msra.mxu0 0.0
    %477 = vmatprep.subr.mxu0 0.0
    %478 = vmatpush1.msra.mxu0 0.0
    %479 = vmatprep.subr.mxu0 0.0
    %480 = vmatpush1.msra.mxu0 0.0
    %481 = vmatprep.subr.mxu0 0.0
    %482 = vmatpush1.msra.mxu0 0.0
    %483 = vmatprep.subr.mxu0 0.0
    %484 = vmatpush1.msra.mxu0 0.0
    %485 = vmatprep.subr.mxu0 0.0
    %486 = vmatpush1.msra.mxu0 0.0
    %487 = vmatprep.subr.mxu0 0.0
    %488 = vmatpush1.msra.mxu0 0.0
    %489 = vmatprep.subr.mxu0 0.0
    %490 = vmatpush1.msra.mxu0 0.0
    %491 = vmatprep.subr.mxu0 0.0
    %492 = vmatpush1.msra.mxu0 0.0
    %493 = vmatprep.subr.mxu0 0.0
    %494 = vmatpush1.msra.mxu0 0.0
    %495 = vmatprep.subr.mxu0 0.0
    %496 = vmatpush1.msra.mxu0 0.0
    %497 = vmatprep.subr.mxu0 0.0
    %498 = vmatpush1.msra.mxu0 0.0
    %499 = vmatprep.subr.mxu0 0.0
    %500 = vmatpush1.msra.mxu0 0.0
    %501 = vmatprep.subr.mxu0 0.0
    %502 = vmatpush1.msra.mxu0 0.0
    %503 = vmatprep.subr.mxu0 0.0
    %504 = vmatpush1.msra.mxu0 0.0
    %505 = vmatprep.subr.mxu0 0.0
    %506 = vmatpush1.msra.mxu0 0.0
    %507 = vmatprep.subr.mxu0 0.0
    %508 = vmatpush1.msra.mxu0 0.0
    %509 = vmatprep.subr.mxu0 0.0
    %510 = vmatpush1.msra.mxu0 0.0
    %511 = vmatprep.subr.mxu0 0.0
    %512 = vmatpush1.msra.mxu0 0.0
    %513 = vmatprep.subr.mxu0 0.0
    %514 = vmatpush1.msra.mxu0 0.0
    %515 = vmatprep.subr.mxu0 0.0
    %516 = vmatpush1.msra.mxu0 0.0
    %517 = vmatprep.mubr.f32.mxu0 0.0
    %518 = vmatmul.mubr.f32.gmra.mrb[0].mxu0 %v451
    %v519 = vpop.f32.mrb[0].mxu0
    %v520 = vadd.f32 0.0, %v519
    %v521 = vpop.f32.mrb[0].mxu0
    %522 = vdwg.mxu0
    %v523 = vadd.f32 %v217, %v520
    %v524 = vxor.u32 %v523, 2147483648
    %v525 = vmul.f32 %v524, 1.442695
    %v526 = vpow.pop %v525
    %v527 = vadd.f32 %v526, 1.0
    %v528 = vrcp.pop %v527
    %v529 = vmul.f32 1.0, %v528
    %v530 = vtanh.pop %v523
    %v531 = vmul.f32 %v529, %v441
    %533 = vrot.lane.b32.xlu0 %v530, 32
    %v534 = vpop.permute.xlu0 %533
    %v536 = vmul.f32 %v529, %v534
    %538 = vrot.lane.b32.xlu0 %v536, 32
    %v539 = vpop.permute.xlu0 %538
    %v541 = vadd.f32 %v531, %v539
    %v542 = vtanh.pop %v541
    %544 = vrot.lane.b32.xlu0 %v542, 32
    %v545 = vpop.permute.xlu0 %544
    %v547 = vmul.f32 %v529, %v545
    %549 = vrot.lane.b32.xlu0 %v547, 64
    %v550 = vpop.permute.xlu0 %549
    %v551 = vsel %vm249, %v550, 0
    %553 = vmatprep.subr.mxu0 0.0
    %554 = vmatpush1.msra.mxu0 %v245
    %555 = vmatprep.subr.mxu0 0.0
    %556 = vmatpush1.msra.mxu0 %v246
    %557 = vmatprep.subr.mxu0 0.0
    %558 = vmatpush1.msra.mxu0 %v247
    %559 = vmatprep.subr.mxu0 0.0
    %560 = vmatpush1.msra.mxu0 %v248
    %561 = vmatprep.subr.mxu0 0.0
    %562 = vmatpush1.msra.mxu0 0.0
    %563 = vmatprep.subr.mxu0 0.0
    %564 = vmatpush1.msra.mxu0 0.0
    %565 = vmatprep.subr.mxu0 0.0
    %566 = vmatpush1.msra.mxu0 0.0
    %567 = vmatprep.subr.mxu0 0.0
    %568 = vmatpush1.msra.mxu0 0.0
    %569 = vmatprep.subr.mxu0 0.0
    %570 = vmatpush1.msra.mxu0 0.0
    %571 = vmatprep.subr.mxu0 0.0
    %572 = vmatpush1.msra.mxu0 0.0
    %573 = vmatprep.subr.mxu0 0.0
    %574 = vmatpush1.msra.mxu0 0.0
    %575 = vmatprep.subr.mxu0 0.0
    %576 = vmatpush1.msra.mxu0 0.0
    %577 = vmatprep.subr.mxu0 0.0
    %578 = vmatpush1.msra.mxu0 0.0
    %579 = vmatprep.subr.mxu0 0.0
    %580 = vmatpush1.msra.mxu0 0.0
    %581 = vmatprep.subr.mxu0 0.0
    %582 = vmatpush1.msra.mxu0 0.0
    %583 = vmatprep.subr.mxu0 0.0
    %584 = vmatpush1.msra.mxu0 0.0
    %585 = vmatprep.subr.mxu0 0.0
    %586 = vmatpush1.msra.mxu0 0.0
    %587 = vmatprep.subr.mxu0 0.0
    %588 = vmatpush1.msra.mxu0 0.0
    %589 = vmatprep.subr.mxu0 0.0
    %590 = vmatpush1.msra.mxu0 0.0
    %591 = vmatprep.subr.mxu0 0.0
    %592 = vmatpush1.msra.mxu0 0.0
    %593 = vmatprep.subr.mxu0 0.0
    %594 = vmatpush1.msra.mxu0 0.0
    %595 = vmatprep.subr.mxu0 0.0
    %596 = vmatpush1.msra.mxu0 0.0
    %597 = vmatprep.subr.mxu0 0.0
    %598 = vmatpush1.msra.mxu0 0.0
    %599 = vmatprep.subr.mxu0 0.0
    %600 = vmatpush1.msra.mxu0 0.0
    %601 = vmatprep.subr.mxu0 0.0
    %602 = vmatpush1.msra.mxu0 0.0
    %603 = vmatprep.subr.mxu0 0.0
    %604 = vmatpush1.msra.mxu0 0.0
    %605 = vmatprep.subr.mxu0 0.0
    %606 = vmatpush1.msra.mxu0 0.0
    %607 = vmatprep.subr.mxu0 0.0
    %608 = vmatpush1.msra.mxu0 0.0
    %609 = vmatprep.subr.mxu0 0.0
    %610 = vmatpush1.msra.mxu0 0.0
    %611 = vmatprep.subr.mxu0 0.0
    %612 = vmatpush1.msra.mxu0 0.0
    %613 = vmatprep.subr.mxu0 0.0
    %614 = vmatpush1.msra.mxu0 0.0
    %615 = vmatprep.subr.mxu0 0.0
    %616 = vmatpush1.msra.mxu0 0.0
    %617 = vmatprep.mubr.f32.mxu0 0.0
    %618 = vmatmul.mubr.f32.gmra.mrb[0].mxu0 %v551
    %v619 = vpop.f32.mrb[0].mxu0
    %v620 = vadd.f32 0.0, %v619
    %v621 = vpop.f32.mrb[0].mxu0
    %622 = vdwg.mxu0
    %v623 = vadd.f32 %v222, %v620
    %v624 = vxor.u32 %v623, 2147483648
    %v625 = vmul.f32 %v624, 1.442695
    %v626 = vpow.pop %v625
    %v627 = vadd.f32 %v626, 1.0
    %v628 = vrcp.pop %v627
    %v629 = vmul.f32 1.0, %v628
    %v630 = vtanh.pop %v623
    %v631 = vmul.f32 %v629, %v541
    %633 = vrot.lane.b32.xlu0 %v630, 32
    %v634 = vpop.permute.xlu0 %633
    %v636 = vmul.f32 %v629, %v634
    %638 = vrot.lane.b32.xlu0 %v636, 32
    %v639 = vpop.permute.xlu0 %638
    %v641 = vadd.f32 %v631, %v639
    %v642 = vtanh.pop %v641
    %644 = vrot.lane.b32.xlu0 %v642, 32
    %v645 = vpop.permute.xlu0 %644
    %v647 = vmul.f32 %v629, %v645
    %649 = vrot.lane.b32.xlu0 %v647, 64
    %v650 = vpop.permute.xlu0 %649
    %v651 = vsel %vm249, %v650, 0
    %653 = vmatprep.subr.mxu0 0.0
    %654 = vmatpush1.msra.mxu0 %v245
    %655 = vmatprep.subr.mxu0 0.0
    %656 = vmatpush1.msra.mxu0 %v246
    %657 = vmatprep.subr.mxu0 0.0
    %658 = vmatpush1.msra.mxu0 %v247
    %659 = vmatprep.subr.mxu0 0.0
    %660 = vmatpush1.msra.mxu0 %v248
    %661 = vmatprep.subr.mxu0 0.0
    %662 = vmatpush1.msra.mxu0 0.0
    %663 = vmatprep.subr.mxu0 0.0
    %664 = vmatpush1.msra.mxu0 0.0
    %665 = vmatprep.subr.mxu0 0.0
    %666 = vmatpush1.msra.mxu0 0.0
    %667 = vmatprep.subr.mxu0 0.0
    %668 = vmatpush1.msra.mxu0 0.0
    %669 = vmatprep.subr.mxu0 0.0
    %670 = vmatpush1.msra.mxu0 0.0
    %671 = vmatprep.subr.mxu0 0.0
    %672 = vmatpush1.msra.mxu0 0.0
    %673 = vmatprep.subr.mxu0 0.0
    %674 = vmatpush1.msra.mxu0 0.0
    %675 = vmatprep.subr.mxu0 0.0
    %676 = vmatpush1.msra.mxu0 0.0
    %677 = vmatprep.subr.mxu0 0.0
    %678 = vmatpush1.msra.mxu0 0.0
    %679 = vmatprep.subr.mxu0 0.0
    %680 = vmatpush1.msra.mxu0 0.0
    %681 = vmatprep.subr.mxu0 0.0
    %682 = vmatpush1.msra.mxu0 0.0
    %683 = vmatprep.subr.mxu0 0.0
    %684 = vmatpush1.msra.mxu0 0.0
    %685 = vmatprep.subr.mxu0 0.0
    %686 = vmatpush1.msra.mxu0 0.0
    %687 = vmatprep.subr.mxu0 0.0
    %688 = vmatpush1.msra.mxu0 0.0
    %689 = vmatprep.subr.mxu0 0.0
    %690 = vmatpush1.msra.mxu0 0.0
    %691 = vmatprep.subr.mxu0 0.0
    %692 = vmatpush1.msra.mxu0 0.0
    %693 = vmatprep.subr.mxu0 0.0
    %694 = vmatpush1.msra.mxu0 0.0
    %695 = vmatprep.subr.mxu0 0.0
    %696 = vmatpush1.msra.mxu0 0.0
    %697 = vmatprep.subr.mxu0 0.0
    %698 = vmatpush1.msra.mxu0 0.0
    %699 = vmatprep.subr.mxu0 0.0
    %700 = vmatpush1.msra.mxu0 0.0
    %701 = vmatprep.subr.mxu0 0.0
    %702 = vmatpush1.msra.mxu0 0.0
    %703 = vmatprep.subr.mxu0 0.0
    %704 = vmatpush1.msra.mxu0 0.0
    %705 = vmatprep.subr.mxu0 0.0
    %706 = vmatpush1.msra.mxu0 0.0
    %707 = vmatprep.subr.mxu0 0.0
    %708 = vmatpush1.msra.mxu0 0.0
    %709 = vmatprep.subr.mxu0 0.0
    %710 = vmatpush1.msra.mxu0 0.0
    %711 = vmatprep.subr.mxu0 0.0
    %712 = vmatpush1.msra.mxu0 0.0
    %713 = vmatprep.subr.mxu0 0.0
    %714 = vmatpush1.msra.mxu0 0.0
    %715 = vmatprep.subr.mxu0 0.0
    %716 = vmatpush1.msra.mxu0 0.0
    %717 = vmatprep.mubr.f32.mxu0 0.0
    %718 = vmatmul.mubr.f32.gmra.mrb[0].mxu0 %v651
    %v719 = vpop.f32.mrb[0].mxu0
    %v720 = vadd.f32 0.0, %v719
    %v721 = vpop.f32.mrb[0].mxu0
    %722 = vdwg.mxu0
    %v723 = vadd.f32 %v227, %v720
    %v724 = vxor.u32 %v723, 2147483648
    %v725 = vmul.f32 %v724, 1.442695
    %v726 = vpow.pop %v725
    %v727 = vadd.f32 %v726, 1.0
    %v728 = vrcp.pop %v727
    %v729 = vmul.f32 1.0, %v728
    %v730 = vtanh.pop %v723
    %v731 = vmul.f32 %v729, %v641
    %733 = vrot.lane.b32.xlu0 %v730, 32
    %v734 = vpop.permute.xlu0 %733
    %v736 = vmul.f32 %v729, %v734
    %738 = vrot.lane.b32.xlu0 %v736, 32
    %v739 = vpop.permute.xlu0 %738
    %v741 = vadd.f32 %v731, %v739
    %v742 = vtanh.pop %v741
    %744 = vrot.lane.b32.xlu0 %v742, 32
    %v745 = vpop.permute.xlu0 %744
    %v747 = vmul.f32 %v729, %v745
    %749 = vrot.lane.b32.xlu0 %v747, 64
    %v750 = vpop.permute.xlu0 %749
    %v751 = vsel %vm249, %v750, 0
    %753 = vmatprep.subr.mxu0 0.0
    %754 = vmatpush1.msra.mxu0 %v245
    %755 = vmatprep.subr.mxu0 0.0
    %756 = vmatpush1.msra.mxu0 %v246
    %757 = vmatprep.subr.mxu0 0.0
    %758 = vmatpush1.msra.mxu0 %v247
    %759 = vmatprep.subr.mxu0 0.0
    %760 = vmatpush1.msra.mxu0 %v248
    %761 = vmatprep.subr.mxu0 0.0
    %762 = vmatpush1.msra.mxu0 0.0
    %763 = vmatprep.subr.mxu0 0.0
    %764 = vmatpush1.msra.mxu0 0.0
    %765 = vmatprep.subr.mxu0 0.0
    %766 = vmatpush1.msra.mxu0 0.0
    %767 = vmatprep.subr.mxu0 0.0
    %768 = vmatpush1.msra.mxu0 0.0
    %769 = vmatprep.subr.mxu0 0.0
    %770 = vmatpush1.msra.mxu0 0.0
    %771 = vmatprep.subr.mxu0 0.0
    %772 = vmatpush1.msra.mxu0 0.0
    %773 = vmatprep.subr.mxu0 0.0
    %774 = vmatpush1.msra.mxu0 0.0
    %775 = vmatprep.subr.mxu0 0.0
    %776 = vmatpush1.msra.mxu0 0.0
    %777 = vmatprep.subr.mxu0 0.0
    %778 = vmatpush1.msra.mxu0 0.0
    %779 = vmatprep.subr.mxu0 0.0
    %780 = vmatpush1.msra.mxu0 0.0
    %781 = vmatprep.subr.mxu0 0.0
    %782 = vmatpush1.msra.mxu0 0.0
    %783 = vmatprep.subr.mxu0 0.0
    %784 = vmatpush1.msra.mxu0 0.0
    %785 = vmatprep.subr.mxu0 0.0
    %786 = vmatpush1.msra.mxu0 0.0
    %787 = vmatprep.subr.mxu0 0.0
    %788 = vmatpush1.msra.mxu0 0.0
    %789 = vmatprep.subr.mxu0 0.0
    %790 = vmatpush1.msra.mxu0 0.0
    %791 = vmatprep.subr.mxu0 0.0
    %792 = vmatpush1.msra.mxu0 0.0
    %793 = vmatprep.subr.mxu0 0.0
    %794 = vmatpush1.msra.mxu0 0.0
    %795 = vmatprep.subr.mxu0 0.0
    %796 = vmatpush1.msra.mxu0 0.0
    %797 = vmatprep.subr.mxu0 0.0
    %798 = vmatpush1.msra.mxu0 0.0
    %799 = vmatprep.subr.mxu0 0.0
    %800 = vmatpush1.msra.mxu0 0.0
    %801 = vmatprep.subr.mxu0 0.0
    %802 = vmatpush1.msra.mxu0 0.0
    %803 = vmatprep.subr.mxu0 0.0
    %804 = vmatpush1.msra.mxu0 0.0
    %805 = vmatprep.subr.mxu0 0.0
    %806 = vmatpush1.msra.mxu0 0.0
    %807 = vmatprep.subr.mxu0 0.0
    %808 = vmatpush1.msra.mxu0 0.0
    %809 = vmatprep.subr.mxu0 0.0
    %810 = vmatpush1.msra.mxu0 0.0
    %811 = vmatprep.subr.mxu0 0.0
    %812 = vmatpush1.msra.mxu0 0.0
    %813 = vmatprep.subr.mxu0 0.0
    %814 = vmatpush1.msra.mxu0 0.0
    %815 = vmatprep.subr.mxu0 0.0
    %816 = vmatpush1.msra.mxu0 0.0
    %817 = vmatprep.mubr.f32.mxu0 0.0
    %818 = vmatmul.mubr.f32.gmra.mrb[0].mxu0 %v751
    %v819 = vpop.f32.mrb[0].mxu0
    %v820 = vadd.f32 0.0, %v819
    %v821 = vpop.f32.mrb[0].mxu0
    %822 = vdwg.mxu0
    %v823 = vadd.f32 %v232, %v820
    %v824 = vxor.u32 %v823, 2147483648
    %v825 = vmul.f32 %v824, 1.442695
    %v826 = vpow.pop %v825
    %v827 = vadd.f32 %v826, 1.0
    %v828 = vrcp.pop %v827
    %v829 = vmul.f32 1.0, %v828
    %v830 = vtanh.pop %v823
    %v831 = vmul.f32 %v829, %v741
    %833 = vrot.lane.b32.xlu0 %v830, 32
    %v834 = vpop.permute.xlu0 %833
    %v836 = vmul.f32 %v829, %v834
    %838 = vrot.lane.b32.xlu0 %v836, 32
    %v839 = vpop.permute.xlu0 %838
    %v841 = vadd.f32 %v831, %v839
    %v842 = vtanh.pop %v841
    %844 = vrot.lane.b32.xlu0 %v842, 32
    %v845 = vpop.permute.xlu0 %844
    %v847 = vmul.f32 %v829, %v845
    %849 = vrot.lane.b32.xlu0 %v847, 64
    %v850 = vpop.permute.xlu0 %849
    %v851 = vsel %vm249, %v850, 0
    %853 = vmatprep.subr.mxu0 0.0
    %854 = vmatpush1.msra.mxu0 %v245
    %855 = vmatprep.subr.mxu0 0.0
    %856 = vmatpush1.msra.mxu0 %v246
    %857 = vmatprep.subr.mxu0 0.0
    %858 = vmatpush1.msra.mxu0 %v247
    %859 = vmatprep.subr.mxu0 0.0
    %860 = vmatpush1.msra.mxu0 %v248
    %861 = vmatprep.subr.mxu0 0.0
    %862 = vmatpush1.msra.mxu0 0.0
    %863 = vmatprep.subr.mxu0 0.0
    %864 = vmatpush1.msra.mxu0 0.0
    %865 = vmatprep.subr.mxu0 0.0
    %866 = vmatpush1.msra.mxu0 0.0
    %867 = vmatprep.subr.mxu0 0.0
    %868 = vmatpush1.msra.mxu0 0.0
    %869 = vmatprep.subr.mxu0 0.0
    %870 = vmatpush1.msra.mxu0 0.0
    %871 = vmatprep.subr.mxu0 0.0
    %872 = vmatpush1.msra.mxu0 0.0
    %873 = vmatprep.subr.mxu0 0.0
    %874 = vmatpush1.msra.mxu0 0.0
    %875 = vmatprep.subr.mxu0 0.0
    %876 = vmatpush1.msra.mxu0 0.0
    %877 = vmatprep.subr.mxu0 0.0
    %878 = vmatpush1.msra.mxu0 0.0
    %879 = vmatprep.subr.mxu0 0.0
    %880 = vmatpush1.msra.mxu0 0.0
    %881 = vmatprep.subr.mxu0 0.0
    %882 = vmatpush1.msra.mxu0 0.0
    %883 = vmatprep.subr.mxu0 0.0
    %884 = vmatpush1.msra.mxu0 0.0
    %885 = vmatprep.subr.mxu0 0.0
    %886 = vmatpush1.msra.mxu0 0.0
    %887 = vmatprep.subr.mxu0 0.0
    %888 = vmatpush1.msra.mxu0 0.0
    %889 = vmatprep.subr.mxu0 0.0
    %890 = vmatpush1.msra.mxu0 0.0
    %891 = vmatprep.subr.mxu0 0.0
    %892 = vmatpush1.msra.mxu0 0.0
    %893 = vmatprep.subr.mxu0 0.0
    %894 = vmatpush1.msra.mxu0 0.0
    %895 = vmatprep.subr.mxu0 0.0
    %896 = vmatpush1.msra.mxu0 0.0
    %897 = vmatprep.subr.mxu0 0.0
    %898 = vmatpush1.msra.mxu0 0.0
    %899 = vmatprep.subr.mxu0 0.0
    %900 = vmatpush1.msra.mxu0 0.0
    %901 = vmatprep.subr.mxu0 0.0
    %902 = vmatpush1.msra.mxu0 0.0
    %903 = vmatprep.subr.mxu0 0.0
    %904 = vmatpush1.msra.mxu0 0.0
    %905 = vmatprep.subr.mxu0 0.0
    %906 = vmatpush1.msra.mxu0 0.0
    %907 = vmatprep.subr.mxu0 0.0
    %908 = vmatpush1.msra.mxu0 0.0
    %909 = vmatprep.subr.mxu0 0.0
    %910 = vmatpush1.msra.mxu0 0.0
    %911 = vmatprep.subr.mxu0 0.0
    %912 = vmatpush1.msra.mxu0 0.0
    %913 = vmatprep.subr.mxu0 0.0
    %914 = vmatpush1.msra.mxu0 0.0
    %915 = vmatprep.subr.mxu0 0.0
    %916 = vmatpush1.msra.mxu0 0.0
    %917 = vmatprep.mubr.f32.mxu0 0.0
    %918 = vmatmul.mubr.f32.gmra.mrb[0].mxu0 %v851
    %v919 = vpop.f32.mrb[0].mxu0
    %v920 = vadd.f32 0.0, %v919
    %v921 = vpop.f32.mrb[0].mxu0
    %922 = vdwg.mxu0
    %v923 = vadd.f32 %v237, %v920
    %v924 = vxor.u32 %v923, 2147483648
    %v925 = vmul.f32 %v924, 1.442695
    %v926 = vpow.pop %v925
    %v927 = vadd.f32 %v926, 1.0
    %v928 = vrcp.pop %v927
    %v929 = vmul.f32 1.0, %v928
    %v930 = vtanh.pop %v923
    %v931 = vmul.f32 %v929, %v841
    %933 = vrot.lane.b32.xlu0 %v930, 32
    %v934 = vpop.permute.xlu0 %933
    %v936 = vmul.f32 %v929, %v934
    %938 = vrot.lane.b32.xlu0 %v936, 32
    %v939 = vpop.permute.xlu0 %938
    %v941 = vadd.f32 %v931, %v939
    %v942 = vtanh.pop %v941
    %944 = vrot.lane.b32.xlu0 %v942, 32
    %v945 = vpop.permute.xlu0 %944
    %v947 = vmul.f32 %v929, %v945
    %949 = vrot.lane.b32.xlu0 %v947, 64
    %v950 = vpop.permute.xlu0 %949
    %v951 = vsel %vm249, %v950, 0
    %953 = vmatprep.subr.mxu0 0.0
    %954 = vmatpush1.msra.mxu0 %v245
    %955 = vmatprep.subr.mxu0 0.0
    %956 = vmatpush1.msra.mxu0 %v246
    %957 = vmatprep.subr.mxu0 0.0
    %958 = vmatpush1.msra.mxu0 %v247
    %959 = vmatprep.subr.mxu0 0.0
    %960 = vmatpush1.msra.mxu0 %v248
    %961 = vmatprep.subr.mxu0 0.0
    %962 = vmatpush1.msra.mxu0 0.0
    %963 = vmatprep.subr.mxu0 0.0
    %964 = vmatpush1.msra.mxu0 0.0
    %965 = vmatprep.subr.mxu0 0.0
    %966 = vmatpush1.msra.mxu0 0.0
    %967 = vmatprep.subr.mxu0 0.0
    %968 = vmatpush1.msra.mxu0 0.0
    %969 = vmatprep.subr.mxu0 0.0
    %970 = vmatpush1.msra.mxu0 0.0
    %971 = vmatprep.subr.mxu0 0.0
    %972 = vmatpush1.msra.mxu0 0.0
    %973 = vmatprep.subr.mxu0 0.0
    %974 = vmatpush1.msra.mxu0 0.0
    %975 = vmatprep.subr.mxu0 0.0
    %976 = vmatpush1.msra.mxu0 0.0
    %977 = vmatprep.subr.mxu0 0.0
    %978 = vmatpush1.msra.mxu0 0.0
    %979 = vmatprep.subr.mxu0 0.0
    %980 = vmatpush1.msra.mxu0 0.0
    %981 = vmatprep.subr.mxu0 0.0
    %982 = vmatpush1.msra.mxu0 0.0
    %983 = vmatprep.subr.mxu0 0.0
    %984 = vmatpush1.msra.mxu0 0.0
    %985 = vmatprep.subr.mxu0 0.0
    %986 = vmatpush1.msra.mxu0 0.0
    %987 = vmatprep.subr.mxu0 0.0
    %988 = vmatpush1.msra.mxu0 0.0
    %989 = vmatprep.subr.mxu0 0.0
    %990 = vmatpush1.msra.mxu0 0.0
    %991 = vmatprep.subr.mxu0 0.0
    %992 = vmatpush1.msra.mxu0 0.0
    %993 = vmatprep.subr.mxu0 0.0
    %994 = vmatpush1.msra.mxu0 0.0
    %995 = vmatprep.subr.mxu0 0.0
    %996 = vmatpush1.msra.mxu0 0.0
    %997 = vmatprep.subr.mxu0 0.0
    %998 = vmatpush1.msra.mxu0 0.0
    %999 = vmatprep.subr.mxu0 0.0
    %1000 = vmatpush1.msra.mxu0 0.0
    %1001 = vmatprep.subr.mxu0 0.0
    %1002 = vmatpush1.msra.mxu0 0.0
    %1003 = vmatprep.subr.mxu0 0.0
    %1004 = vmatpush1.msra.mxu0 0.0
    %1005 = vmatprep.subr.mxu0 0.0
    %1006 = vmatpush1.msra.mxu0 0.0
    %1007 = vmatprep.subr.mxu0 0.0
    %1008 = vmatpush1.msra.mxu0 0.0
    %1009 = vmatprep.subr.mxu0 0.0
    %1010 = vmatpush1.msra.mxu0 0.0
    %1011 = vmatprep.subr.mxu0 0.0
    %1012 = vmatpush1.msra.mxu0 0.0
    %1013 = vmatprep.subr.mxu0 0.0
    %1014 = vmatpush1.msra.mxu0 0.0
    %1015 = vmatprep.subr.mxu0 0.0
    %1016 = vmatpush1.msra.mxu0 0.0
    %1017 = vmatprep.mubr.f32.mxu0 0.0
    %1018 = vmatmul.mubr.f32.gmra.mrb[0].mxu0 %v951
    %v1019 = vpop.f32.mrb[0].mxu0
    %v1020 = vadd.f32 0.0, %v1019
    %v1021 = vpop.f32.mrb[0].mxu0
    %1022 = vdwg.mxu0
    %v1023 = vadd.f32 %v242, %v1020
    %v1024 = vxor.u32 %v1023, 2147483648
    %v1025 = vmul.f32 %v1024, 1.442695
    %v1026 = vpow.pop %v1025
    %v1027 = vadd.f32 %v1026, 1.0
    %v1028 = vrcp.pop %v1027
    %v1029 = vmul.f32 1.0, %v1028
    %v1030 = vtanh.pop %v1023
    %v1031 = vmul.f32 %v1029, %v941
    %1033 = vrot.lane.b32.xlu0 %v1030, 32
    %v1034 = vpop.permute.xlu0 %1033
    %v1036 = vmul.f32 %v1029, %v1034
    %1038 = vrot.lane.b32.xlu0 %v1036, 32
    %v1039 = vpop.permute.xlu0 %1038
    %v1041 = vadd.f32 %v1031, %v1039
    %v1042 = vtanh.pop %v1041
    %1044 = vrot.lane.b32.xlu0 %v1042, 32
    %v1045 = vpop.permute.xlu0 %1044
    %v1047 = vmul.f32 %v1029, %v1045
    %v1048 = vld [vmem:[%s4] sm:$0xff]
    %v1049 = vld [vmem:[%s4 + $0x8] sm:$0xff]
    %v1050 = vld [vmem:[%s4 + $0x10] sm:$0xff]
    %v1051 = vld [vmem:[%s4 + $0x18] sm:$0xff]
    %v1052 = vld [vmem:[%s6] sm:$0x1]
    %v1054 = vlaneseq
    %v1055 = vshrl.u32 %v1054, 7
    %v1056 = vsub.s32 0, %v1055
    %v1057 = vrot.slane %v1052, %v1056
    %1060 = vrot.lane.b32.xlu0 %v1047, 64
    %v1061 = vpop.permute.xlu0 %1060
    %v1062 = vsel %vm249, %v1061, 0
    %1064 = vmatprep.subr.mxu0 0.0
    %1065 = vmatpush1.msra.mxu0 %v1048
    %1066 = vmatprep.subr.mxu0 0.0
    %1067 = vmatpush1.msra.mxu0 %v1049
    %1068 = vmatprep.subr.mxu0 0.0
    %1069 = vmatpush1.msra.mxu0 %v1050
    %1070 = vmatprep.subr.mxu0 0.0
    %1071 = vmatpush1.msra.mxu0 %v1051
    %1072 = vmatprep.subr.mxu0 0.0
    %1073 = vmatpush1.msra.mxu0 0.0
    %1074 = vmatprep.subr.mxu0 0.0
    %1075 = vmatpush1.msra.mxu0 0.0
    %1076 = vmatprep.subr.mxu0 0.0
    %1077 = vmatpush1.msra.mxu0 0.0
    %1078 = vmatprep.subr.mxu0 0.0
    %1079 = vmatpush1.msra.mxu0 0.0
    %1080 = vmatprep.subr.mxu0 0.0
    %1081 = vmatpush1.msra.mxu0 0.0
    %1082 = vmatprep.subr.mxu0 0.0
    %1083 = vmatpush1.msra.mxu0 0.0
    %1084 = vmatprep.subr.mxu0 0.0
    %1085 = vmatpush1.msra.mxu0 0.0
    %1086 = vmatprep.subr.mxu0 0.0
    %1087 = vmatpush1.msra.mxu0 0.0
    %1088 = vmatprep.subr.mxu0 0.0
    %1089 = vmatpush1.msra.mxu0 0.0
    %1090 = vmatprep.subr.mxu0 0.0
    %1091 = vmatpush1.msra.mxu0 0.0
    %1092 = vmatprep.subr.mxu0 0.0
    %1093 = vmatpush1.msra.mxu0 0.0
    %1094 = vmatprep.subr.mxu0 0.0
    %1095 = vmatpush1.msra.mxu0 0.0
    %1096 = vmatprep.subr.mxu0 0.0
    %1097 = vmatpush1.msra.mxu0 0.0
    %1098 = vmatprep.subr.mxu0 0.0
    %1099 = vmatpush1.msra.mxu0 0.0
    %1100 = vmatprep.subr.mxu0 0.0
    %1101 = vmatpush1.msra.mxu0 0.0
    %1102 = vmatprep.subr.mxu0 0.0
    %1103 = vmatpush1.msra.mxu0 0.0
    %1104 = vmatprep.subr.mxu0 0.0
    %1105 = vmatpush1.msra.mxu0 0.0
    %1106 = vmatprep.subr.mxu0 0.0
    %1107 = vmatpush1.msra.mxu0 0.0
    %1108 = vmatprep.subr.mxu0 0.0
    %1109 = vmatpush1.msra.mxu0 0.0
    %1110 = vmatprep.subr.mxu0 0.0
    %1111 = vmatpush1.msra.mxu0 0.0
    %1112 = vmatprep.subr.mxu0 0.0
    %1113 = vmatpush1.msra.mxu0 0.0
    %1114 = vmatprep.subr.mxu0 0.0
    %1115 = vmatpush1.msra.mxu0 0.0
    %1116 = vmatprep.subr.mxu0 0.0
    %1117 = vmatpush1.msra.mxu0 0.0
    %1118 = vmatprep.subr.mxu0 0.0
    %1119 = vmatpush1.msra.mxu0 0.0
    %1120 = vmatprep.subr.mxu0 0.0
    %1121 = vmatpush1.msra.mxu0 0.0
    %1122 = vmatprep.subr.mxu0 0.0
    %1123 = vmatpush1.msra.mxu0 0.0
    %1124 = vmatprep.subr.mxu0 0.0
    %1125 = vmatpush1.msra.mxu0 0.0
    %1126 = vmatprep.subr.mxu0 0.0
    %1127 = vmatpush1.msra.mxu0 0.0
    %1128 = vmatprep.mubr.f32.mxu0 0.0
    %1129 = vmatmul.mubr.f32.gmra.mrb[0].mxu0 %v351
    %v1130 = vpop.f32.mrb[0].mxu0
    %v1131 = vadd.f32 %v1057, %v1130
    %v1132 = vpop.f32.mrb[0].mxu0
    %1133 = vmatprep.mubr.f32.mxu0 0.0
    %1134 = vmatmul.mubr.f32.gmra.mrb[0].mxu0 %v451
    %v1135 = vpop.f32.mrb[0].mxu0
    %v1136 = vadd.f32 %v1057, %v1135
    %v1137 = vpop.f32.mrb[0].mxu0
    %1138 = vmatprep.mubr.f32.mxu0 0.0
    %1139 = vmatmul.mubr.f32.gmra.mrb[0].mxu0 %v551
    %v1140 = vpop.f32.mrb[0].mxu0
    %v1141 = vadd.f32 %v1057, %v1140
    %v1142 = vpop.f32.mrb[0].mxu0
    %1143 = vmatprep.mubr.f32.mxu0 0.0
    %1144 = vmatmul.mubr.f32.gmra.mrb[0].mxu0 %v651
    %v1145 = vpop.f32.mrb[0].mxu0
    %v1146 = vadd.f32 %v1057, %v1145
    %v1147 = vpop.f32.mrb[0].mxu0
    %1148 = vmatprep.mubr.f32.mxu0 0.0
    %1149 = vmatmul.mubr.f32.gmra.mrb[0].mxu0 %v751
    %v1150 = vpop.f32.mrb[0].mxu0
    %v1151 = vadd.f32 %v1057, %v1150
    %v1152 = vpop.f32.mrb[0].mxu0
    %1153 = vmatprep.mubr.f32.mxu0 0.0
    %1154 = vmatmul.mubr.f32.gmra.mrb[0].mxu0 %v851
    %v1155 = vpop.f32.mrb[0].mxu0
    %v1156 = vadd.f32 %v1057, %v1155
    %v1157 = vpop.f32.mrb[0].mxu0
    %1158 = vmatprep.mubr.f32.mxu0 0.0
    %1159 = vmatmul.mubr.f32.gmra.mrb[0].mxu0 %v951
    %v1160 = vpop.f32.mrb[0].mxu0
    %v1161 = vadd.f32 %v1057, %v1160
    %v1162 = vpop.f32.mrb[0].mxu0
    %1163 = vmatprep.mubr.f32.mxu0 0.0
    %1164 = vmatmul.mubr.f32.gmra.mrb[0].mxu0 %v1062
    %v1165 = vpop.f32.mrb[0].mxu0
    %v1166 = vadd.f32 %v1057, %v1165
    %v1167 = vpop.f32.mrb[0].mxu0
    %1168 = vdwg.mxu0
    %v1169 = vld [vmem:[#allocation5] sm:$0xff]
    %v1170 = vld [vmem:[#allocation5 + $0x8] sm:$0xff]
    %v1171 = vld [vmem:[#allocation5 + $0x10] sm:$0xff]
    %v1172 = vld [vmem:[#allocation5 + $0x18] sm:$0xff]
    %1173 = vmatprep.subr.mxu0 0.0
    %1174 = vmatpush1.msra.mxu0 %v1169
    %1175 = vmatprep.subr.mxu0 0.0
    %1176 = vmatpush1.msra.mxu0 %v1170
    %1177 = vmatprep.subr.mxu0 0.0
    %1178 = vmatpush1.msra.mxu0 %v1171
    %1179 = vmatprep.subr.mxu0 0.0
    %1180 = vmatpush1.msra.mxu0 %v1172
    %1181 = vmatprep.subr.mxu0 0.0
    %1182 = vmatpush1.msra.mxu0 0.0
    %1183 = vmatprep.subr.mxu0 0.0
    %1184 = vmatpush1.msra.mxu0 0.0
    %1185 = vmatprep.subr.mxu0 0.0
    %1186 = vmatpush1.msra.mxu0 0.0
    %1187 = vmatprep.subr.mxu0 0.0
    %1188 = vmatpush1.msra.mxu0 0.0
    %1189 = vmatprep.subr.mxu0 0.0
    %1190 = vmatpush1.msra.mxu0 0.0
    %1191 = vmatprep.subr.mxu0 0.0
    %1192 = vmatpush1.msra.mxu0 0.0
    %1193 = vmatprep.subr.mxu0 0.0
    %1194 = vmatpush1.msra.mxu0 0.0
    %1195 = vmatprep.subr.mxu0 0.0
    %1196 = vmatpush1.msra.mxu0 0.0
    %1197 = vmatprep.subr.mxu0 0.0
    %1198 = vmatpush1.msra.mxu0 0.0
    %1199 = vmatprep.subr.mxu0 0.0
    %1200 = vmatpush1.msra.mxu0 0.0
    %1201 = vmatprep.subr.mxu0 0.0
    %1202 = vmatpush1.msra.mxu0 0.0
    %1203 = vmatprep.subr.mxu0 0.0
    %1204 = vmatpush1.msra.mxu0 0.0
    %1205 = vmatprep.subr.mxu0 0.0
    %1206 = vmatpush1.msra.mxu0 0.0
    %1207 = vmatprep.subr.mxu0 0.0
    %1208 = vmatpush1.msra.mxu0 0.0
    %1209 = vmatprep.subr.mxu0 0.0
    %1210 = vmatpush1.msra.mxu0 0.0
    %1211 = vmatprep.subr.mxu0 0.0
    %1212 = vmatpush1.msra.mxu0 0.0
    %1213 = vmatprep.subr.mxu0 0.0
    %1214 = vmatpush1.msra.mxu0 0.0
    %1215 = vmatprep.subr.mxu0 0.0
    %1216 = vmatpush1.msra.mxu0 0.0
    %1217 = vmatprep.subr.mxu0 0.0
    %1218 = vmatpush1.msra.mxu0 0.0
    %1219 = vmatprep.subr.mxu0 0.0
    %1220 = vmatpush1.msra.mxu0 0.0
    %1221 = vmatprep.subr.mxu0 0.0
    %1222 = vmatpush1.msra.mxu0 0.0
    %1223 = vmatprep.subr.mxu0 0.0
    %1224 = vmatpush1.msra.mxu0 0.0
    %1225 = vmatprep.subr.mxu0 0.0
    %1226 = vmatpush1.msra.mxu0 0.0
    %1227 = vmatprep.subr.mxu0 0.0
    %1228 = vmatpush1.msra.mxu0 0.0
    %1229 = vmatprep.subr.mxu0 0.0
    %1230 = vmatpush1.msra.mxu0 0.0
    %1231 = vmatprep.subr.mxu0 0.0
    %1232 = vmatpush1.msra.mxu0 0.0
    %1233 = vmatprep.subr.mxu0 0.0
    %1234 = vmatpush1.msra.mxu0 0.0
    %1235 = vmatprep.subr.mxu0 0.0
    %1236 = vmatpush1.msra.mxu0 0.0
    %1237 = vmatprep.mubr.f32.mxu0 0.0
    %1238 = vmatmul.mubr.f32.gmra.mrb[0].mxu0 %v251
    %v1239 = vpop.f32.mrb[0].mxu0
    %v1240 = vadd.f32 0.0, %v1239
    %v1241 = vpop.f32.mrb[0].mxu0
    %1242 = vdwg.mxu0
    %v1243 = vadd.f32 %v1131, %v1240
    %v1244 = vxor.u32 %v1243, 2147483648
    %v1245 = vmul.f32 %v1244, 1.442695
    %v1246 = vpow.pop %v1245
    %v1247 = vadd.f32 %v1246, 1.0
    %v1248 = vrcp.pop %v1247
    %v1249 = vmul.f32 1.0, %v1248
    %v1250 = vtanh.pop %v1243
    %v1251 = vmul.f32 %v1249, 0.0
    %1253 = vrot.lane.b32.xlu0 %v1250, 32
    %v1254 = vpop.permute.xlu0 %1253
    %v1256 = vmul.f32 %v1249, %v1254
    %1258 = vrot.lane.b32.xlu0 %v1256, 32
    %v1259 = vpop.permute.xlu0 %1258
    %v1261 = vadd.f32 %v1251, %v1259
    %v1262 = vtanh.pop %v1261
    %1264 = vrot.lane.b32.xlu0 %v1262, 32
    %v1265 = vpop.permute.xlu0 %1264
    %v1267 = vmul.f32 %v1249, %v1265
    %1269 = vrot.lane.b32.xlu0 %v1267, 64
    %v1270 = vpop.permute.xlu0 %1269
    %v1271 = vsel %vm249, %v1270, 0
    %1273 = vmatprep.subr.mxu0 0.0
    %1274 = vmatpush1.msra.mxu0 %v1169
    %1275 = vmatprep.subr.mxu0 0.0
    %1276 = vmatpush1.msra.mxu0 %v1170
    %1277 = vmatprep.subr.mxu0 0.0
    %1278 = vmatpush1.msra.mxu0 %v1171
    %1279 = vmatprep.subr.mxu0 0.0
    %1280 = vmatpush1.msra.mxu0 %v1172
    %1281 = vmatprep.subr.mxu0 0.0
    %1282 = vmatpush1.msra.mxu0 0.0
    %1283 = vmatprep.subr.mxu0 0.0
    %1284 = vmatpush1.msra.mxu0 0.0
    %1285 = vmatprep.subr.mxu0 0.0
    %1286 = vmatpush1.msra.mxu0 0.0
    %1287 = vmatprep.subr.mxu0 0.0
    %1288 = vmatpush1.msra.mxu0 0.0
    %1289 = vmatprep.subr.mxu0 0.0
    %1290 = vmatpush1.msra.mxu0 0.0
    %1291 = vmatprep.subr.mxu0 0.0
    %1292 = vmatpush1.msra.mxu0 0.0
    %1293 = vmatprep.subr.mxu0 0.0
    %1294 = vmatpush1.msra.mxu0 0.0
    %1295 = vmatprep.subr.mxu0 0.0
    %1296 = vmatpush1.msra.mxu0 0.0
    %1297 = vmatprep.subr.mxu0 0.0
    %1298 = vmatpush1.msra.mxu0 0.0
    %1299 = vmatprep.subr.mxu0 0.0
    %1300 = vmatpush1.msra.mxu0 0.0
    %1301 = vmatprep.subr.mxu0 0.0
    %1302 = vmatpush1.msra.mxu0 0.0
    %1303 = vmatprep.subr.mxu0 0.0
    %1304 = vmatpush1.msra.mxu0 0.0
    %1305 = vmatprep.subr.mxu0 0.0
    %1306 = vmatpush1.msra.mxu0 0.0
    %1307 = vmatprep.subr.mxu0 0.0
    %1308 = vmatpush1.msra.mxu0 0.0
    %1309 = vmatprep.subr.mxu0 0.0
    %1310 = vmatpush1.msra.mxu0 0.0
    %1311 = vmatprep.subr.mxu0 0.0
    %1312 = vmatpush1.msra.mxu0 0.0
    %1313 = vmatprep.subr.mxu0 0.0
    %1314 = vmatpush1.msra.mxu0 0.0
    %1315 = vmatprep.subr.mxu0 0.0
    %1316 = vmatpush1.msra.mxu0 0.0
    %1317 = vmatprep.subr.mxu0 0.0
    %1318 = vmatpush1.msra.mxu0 0.0
    %1319 = vmatprep.subr.mxu0 0.0
    %1320 = vmatpush1.msra.mxu0 0.0
    %1321 = vmatprep.subr.mxu0 0.0
    %1322 = vmatpush1.msra.mxu0 0.0
    %1323 = vmatprep.subr.mxu0 0.0
    %1324 = vmatpush1.msra.mxu0 0.0
    %1325 = vmatprep.subr.mxu0 0.0
    %1326 = vmatpush1.msra.mxu0 0.0
    %1327 = vmatprep.subr.mxu0 0.0
    %1328 = vmatpush1.msra.mxu0 0.0
    %1329 = vmatprep.subr.mxu0 0.0
    %1330 = vmatpush1.msra.mxu0 0.0
    %1331 = vmatprep.subr.mxu0 0.0
    %1332 = vmatpush1.msra.mxu0 0.0
    %1333 = vmatprep.subr.mxu0 0.0
    %1334 = vmatpush1.msra.mxu0 0.0
    %1335 = vmatprep.subr.mxu0 0.0
    %1336 = vmatpush1.msra.mxu0 0.0
    %1337 = vmatprep.mubr.f32.mxu0 0.0
    %1338 = vmatmul.mubr.f32.gmra.mrb[0].mxu0 %v1271
    %v1339 = vpop.f32.mrb[0].mxu0
    %v1340 = vadd.f32 0.0, %v1339
    %v1341 = vpop.f32.mrb[0].mxu0
    %1342 = vdwg.mxu0
    %v1343 = vadd.f32 %v1136, %v1340
    %v1344 = vxor.u32 %v1343, 2147483648
    %v1345 = vmul.f32 %v1344, 1.442695
    %v1346 = vpow.pop %v1345
    %v1347 = vadd.f32 %v1346, 1.0
    %v1348 = vrcp.pop %v1347
    %v1349 = vmul.f32 1.0, %v1348
    %v1350 = vtanh.pop %v1343
    %v1351 = vmul.f32 %v1349, %v1261
    %1353 = vrot.lane.b32.xlu0 %v1350, 32
    %v1354 = vpop.permute.xlu0 %1353
    %v1356 = vmul.f32 %v1349, %v1354
    %1358 = vrot.lane.b32.xlu0 %v1356, 32
    %v1359 = vpop.permute.xlu0 %1358
    %v1361 = vadd.f32 %v1351, %v1359
    %v1362 = vtanh.pop %v1361
    %1364 = vrot.lane.b32.xlu0 %v1362, 32
    %v1365 = vpop.permute.xlu0 %1364
    %v1367 = vmul.f32 %v1349, %v1365
    %1369 = vrot.lane.b32.xlu0 %v1367, 64
    %v1370 = vpop.permute.xlu0 %1369
    %v1371 = vsel %vm249, %v1370, 0
    %1373 = vmatprep.subr.mxu0 0.0
    %1374 = vmatpush1.msra.mxu0 %v1169
    %1375 = vmatprep.subr.mxu0 0.0
    %1376 = vmatpush1.msra.mxu0 %v1170
    %1377 = vmatprep.subr.mxu0 0.0
    %1378 = vmatpush1.msra.mxu0 %v1171
    %1379 = vmatprep.subr.mxu0 0.0
    %1380 = vmatpush1.msra.mxu0 %v1172
    %1381 = vmatprep.subr.mxu0 0.0
    %1382 = vmatpush1.msra.mxu0 0.0
    %1383 = vmatprep.subr.mxu0 0.0
    %1384 = vmatpush1.msra.mxu0 0.0
    %1385 = vmatprep.subr.mxu0 0.0
    %1386 = vmatpush1.msra.mxu0 0.0
    %1387 = vmatprep.subr.mxu0 0.0
    %1388 = vmatpush1.msra.mxu0 0.0
    %1389 = vmatprep.subr.mxu0 0.0
    %1390 = vmatpush1.msra.mxu0 0.0
    %1391 = vmatprep.subr.mxu0 0.0
    %1392 = vmatpush1.msra.mxu0 0.0
    %1393 = vmatprep.subr.mxu0 0.0
    %1394 = vmatpush1.msra.mxu0 0.0
    %1395 = vmatprep.subr.mxu0 0.0
    %1396 = vmatpush1.msra.mxu0 0.0
    %1397 = vmatprep.subr.mxu0 0.0
    %1398 = vmatpush1.msra.mxu0 0.0
    %1399 = vmatprep.subr.mxu0 0.0
    %1400 = vmatpush1.msra.mxu0 0.0
    %1401 = vmatprep.subr.mxu0 0.0
    %1402 = vmatpush1.msra.mxu0 0.0
    %1403 = vmatprep.subr.mxu0 0.0
    %1404 = vmatpush1.msra.mxu0 0.0
    %1405 = vmatprep.subr.mxu0 0.0
    %1406 = vmatpush1.msra.mxu0 0.0
    %1407 = vmatprep.subr.mxu0 0.0
    %1408 = vmatpush1.msra.mxu0 0.0
    %1409 = vmatprep.subr.mxu0 0.0
    %1410 = vmatpush1.msra.mxu0 0.0
    %1411 = vmatprep.subr.mxu0 0.0
    %1412 = vmatpush1.msra.mxu0 0.0
    %1413 = vmatprep.subr.mxu0 0.0
    %1414 = vmatpush1.msra.mxu0 0.0
    %1415 = vmatprep.subr.mxu0 0.0
    %1416 = vmatpush1.msra.mxu0 0.0
    %1417 = vmatprep.subr.mxu0 0.0
    %1418 = vmatpush1.msra.mxu0 0.0
    %1419 = vmatprep.subr.mxu0 0.0
    %1420 = vmatpush1.msra.mxu0 0.0
    %1421 = vmatprep.subr.mxu0 0.0
    %1422 = vmatpush1.msra.mxu0 0.0
    %1423 = vmatprep.subr.mxu0 0.0
    %1424 = vmatpush1.msra.mxu0 0.0
    %1425 = vmatprep.subr.mxu0 0.0
    %1426 = vmatpush1.msra.mxu0 0.0
    %1427 = vmatprep.subr.mxu0 0.0
    %1428 = vmatpush1.msra.mxu0 0.0
    %1429 = vmatprep.subr.mxu0 0.0
    %1430 = vmatpush1.msra.mxu0 0.0
    %1431 = vmatprep.subr.mxu0 0.0
    %1432 = vmatpush1.msra.mxu0 0.0
    %1433 = vmatprep.subr.mxu0 0.0
    %1434 = vmatpush1.msra.mxu0 0.0
    %1435 = vmatprep.subr.mxu0 0.0
    %1436 = vmatpush1.msra.mxu0 0.0
    %1437 = vmatprep.mubr.f32.mxu0 0.0
    %1438 = vmatmul.mubr.f32.gmra.mrb[0].mxu0 %v1371
    %v1439 = vpop.f32.mrb[0].mxu0
    %v1440 = vadd.f32 0.0, %v1439
    %v1441 = vpop.f32.mrb[0].mxu0
    %1442 = vdwg.mxu0
    %v1443 = vadd.f32 %v1141, %v1440
    %v1444 = vxor.u32 %v1443, 2147483648
    %v1445 = vmul.f32 %v1444, 1.442695
    %v1446 = vpow.pop %v1445
    %v1447 = vadd.f32 %v1446, 1.0
    %v1448 = vrcp.pop %v1447
    %v1449 = vmul.f32 1.0, %v1448
    %v1450 = vtanh.pop %v1443
    %v1451 = vmul.f32 %v1449, %v1361
    %1453 = vrot.lane.b32.xlu0 %v1450, 32
    %v1454 = vpop.permute.xlu0 %1453
    %v1456 = vmul.f32 %v1449, %v1454
    %1458 = vrot.lane.b32.xlu0 %v1456, 32
    %v1459 = vpop.permute.xlu0 %1458
    %v1461 = vadd.f32 %v1451, %v1459
    %v1462 = vtanh.pop %v1461
    %1464 = vrot.lane.b32.xlu0 %v1462, 32
    %v1465 = vpop.permute.xlu0 %1464
    %v1467 = vmul.f32 %v1449, %v1465
    %1469 = vrot.lane.b32.xlu0 %v1467, 64
    %v1470 = vpop.permute.xlu0 %1469
    %v1471 = vsel %vm249, %v1470, 0
    %1473 = vmatprep.subr.mxu0 0.0
    %1474 = vmatpush1.msra.mxu0 %v1169
    %1475 = vmatprep.subr.mxu0 0.0
    %1476 = vmatpush1.msra.mxu0 %v1170
    %1477 = vmatprep.subr.mxu0 0.0
    %1478 = vmatpush1.msra.mxu0 %v1171
    %1479 = vmatprep.subr.mxu0 0.0
    %1480 = vmatpush1.msra.mxu0 %v1172
    %1481 = vmatprep.subr.mxu0 0.0
    %1482 = vmatpush1.msra.mxu0 0.0
    %1483 = vmatprep.subr.mxu0 0.0
    %1484 = vmatpush1.msra.mxu0 0.0
    %1485 = vmatprep.subr.mxu0 0.0
    %1486 = vmatpush1.msra.mxu0 0.0
    %1487 = vmatprep.subr.mxu0 0.0
    %1488 = vmatpush1.msra.mxu0 0.0
    %1489 = vmatprep.subr.mxu0 0.0
    %1490 = vmatpush1.msra.mxu0 0.0
    %1491 = vmatprep.subr.mxu0 0.0
    %1492 = vmatpush1.msra.mxu0 0.0
    %1493 = vmatprep.subr.mxu0 0.0
    %1494 = vmatpush1.msra.mxu0 0.0
    %1495 = vmatprep.subr.mxu0 0.0
    %1496 = vmatpush1.msra.mxu0 0.0
    %1497 = vmatprep.subr.mxu0 0.0
    %1498 = vmatpush1.msra.mxu0 0.0
    %1499 = vmatprep.subr.mxu0 0.0
    %1500 = vmatpush1.msra.mxu0 0.0
    %1501 = vmatprep.subr.mxu0 0.0
    %1502 = vmatpush1.msra.mxu0 0.0
    %1503 = vmatprep.subr.mxu0 0.0
    %1504 = vmatpush1.msra.mxu0 0.0
    %1505 = vmatprep.subr.mxu0 0.0
    %1506 = vmatpush1.msra.mxu0 0.0
    %1507 = vmatprep.subr.mxu0 0.0
    %1508 = vmatpush1.msra.mxu0 0.0
    %1509 = vmatprep.subr.mxu0 0.0
    %1510 = vmatpush1.msra.mxu0 0.0
    %1511 = vmatprep.subr.mxu0 0.0
    %1512 = vmatpush1.msra.mxu0 0.0
    %1513 = vmatprep.subr.mxu0 0.0
    %1514 = vmatpush1.msra.mxu0 0.0
    %1515 = vmatprep.subr.mxu0 0.0
    %1516 = vmatpush1.msra.mxu0 0.0
    %1517 = vmatprep.subr.mxu0 0.0
    %1518 = vmatpush1.msra.mxu0 0.0
    %1519 = vmatprep.subr.mxu0 0.0
    %1520 = vmatpush1.msra.mxu0 0.0
    %1521 = vmatprep.subr.mxu0 0.0
    %1522 = vmatpush1.msra.mxu0 0.0
    %1523 = vmatprep.subr.mxu0 0.0
    %1524 = vmatpush1.msra.mxu0 0.0
    %1525 = vmatprep.subr.mxu0 0.0
    %1526 = vmatpush1.msra.mxu0 0.0
    %1527 = vmatprep.subr.mxu0 0.0
    %1528 = vmatpush1.msra.mxu0 0.0
    %1529 = vmatprep.subr.mxu0 0.0
    %1530 = vmatpush1.msra.mxu0 0.0
    %1531 = vmatprep.subr.mxu0 0.0
    %1532 = vmatpush1.msra.mxu0 0.0
    %1533 = vmatprep.subr.mxu0 0.0
    %1534 = vmatpush1.msra.mxu0 0.0
    %1535 = vmatprep.subr.mxu0 0.0
    %1536 = vmatpush1.msra.mxu0 0.0
    %1537 = vmatprep.mubr.f32.mxu0 0.0
    %1538 = vmatmul.mubr.f32.gmra.mrb[0].mxu0 %v1471
    %v1539 = vpop.f32.mrb[0].mxu0
    %v1540 = vadd.f32 0.0, %v1539
    %v1541 = vpop.f32.mrb[0].mxu0
    %1542 = vdwg.mxu0
    %v1543 = vadd.f32 %v1146, %v1540
    %v1544 = vxor.u32 %v1543, 2147483648
    %v1545 = vmul.f32 %v1544, 1.442695
    %v1546 = vpow.pop %v1545
    %v1547 = vadd.f32 %v1546, 1.0
    %v1548 = vrcp.pop %v1547
    %v1549 = vmul.f32 1.0, %v1548
    %v1550 = vtanh.pop %v1543
    %v1551 = vmul.f32 %v1549, %v1461
    %1553 = vrot.lane.b32.xlu0 %v1550, 32
    %v1554 = vpop.permute.xlu0 %1553
    %v1556 = vmul.f32 %v1549, %v1554
    %1558 = vrot.lane.b32.xlu0 %v1556, 32
    %v1559 = vpop.permute.xlu0 %1558
    %v1561 = vadd.f32 %v1551, %v1559
    %v1562 = vtanh.pop %v1561
    %1564 = vrot.lane.b32.xlu0 %v1562, 32
    %v1565 = vpop.permute.xlu0 %1564
    %v1567 = vmul.f32 %v1549, %v1565
    %1569 = vrot.lane.b32.xlu0 %v1567, 64
    %v1570 = vpop.permute.xlu0 %1569
    %v1571 = vsel %vm249, %v1570, 0
    %1573 = vmatprep.subr.mxu0 0.0
    %1574 = vmatpush1.msra.mxu0 %v1169
    %1575 = vmatprep.subr.mxu0 0.0
    %1576 = vmatpush1.msra.mxu0 %v1170
    %1577 = vmatprep.subr.mxu0 0.0
    %1578 = vmatpush1.msra.mxu0 %v1171
    %1579 = vmatprep.subr.mxu0 0.0
    %1580 = vmatpush1.msra.mxu0 %v1172
    %1581 = vmatprep.subr.mxu0 0.0
    %1582 = vmatpush1.msra.mxu0 0.0
    %1583 = vmatprep.subr.mxu0 0.0
    %1584 = vmatpush1.msra.mxu0 0.0
    %1585 = vmatprep.subr.mxu0 0.0
    %1586 = vmatpush1.msra.mxu0 0.0
    %1587 = vmatprep.subr.mxu0 0.0
    %1588 = vmatpush1.msra.mxu0 0.0
    %1589 = vmatprep.subr.mxu0 0.0
    %1590 = vmatpush1.msra.mxu0 0.0
    %1591 = vmatprep.subr.mxu0 0.0
    %1592 = vmatpush1.msra.mxu0 0.0
    %1593 = vmatprep.subr.mxu0 0.0
    %1594 = vmatpush1.msra.mxu0 0.0
    %1595 = vmatprep.subr.mxu0 0.0
    %1596 = vmatpush1.msra.mxu0 0.0
    %1597 = vmatprep.subr.mxu0 0.0
    %1598 = vmatpush1.msra.mxu0 0.0
    %1599 = vmatprep.subr.mxu0 0.0
    %1600 = vmatpush1.msra.mxu0 0.0
    %1601 = vmatprep.subr.mxu0 0.0
    %1602 = vmatpush1.msra.mxu0 0.0
    %1603 = vmatprep.subr.mxu0 0.0
    %1604 = vmatpush1.msra.mxu0 0.0
    %1605 = vmatprep.subr.mxu0 0.0
    %1606 = vmatpush1.msra.mxu0 0.0
    %1607 = vmatprep.subr.mxu0 0.0
    %1608 = vmatpush1.msra.mxu0 0.0
    %1609 = vmatprep.subr.mxu0 0.0
    %1610 = vmatpush1.msra.mxu0 0.0
    %1611 = vmatprep.subr.mxu0 0.0
    %1612 = vmatpush1.msra.mxu0 0.0
    %1613 = vmatprep.subr.mxu0 0.0
    %1614 = vmatpush1.msra.mxu0 0.0
    %1615 = vmatprep.subr.mxu0 0.0
    %1616 = vmatpush1.msra.mxu0 0.0
    %1617 = vmatprep.subr.mxu0 0.0
    %1618 = vmatpush1.msra.mxu0 0.0
    %1619 = vmatprep.subr.mxu0 0.0
    %1620 = vmatpush1.msra.mxu0 0.0
    %1621 = vmatprep.subr.mxu0 0.0
    %1622 = vmatpush1.msra.mxu0 0.0
    %1623 = vmatprep.subr.mxu0 0.0
    %1624 = vmatpush1.msra.mxu0 0.0
    %1625 = vmatprep.subr.mxu0 0.0
    %1626 = vmatpush1.msra.mxu0 0.0
    %1627 = vmatprep.subr.mxu0 0.0
    %1628 = vmatpush1.msra.mxu0 0.0
    %1629 = vmatprep.subr.mxu0 0.0
    %1630 = vmatpush1.msra.mxu0 0.0
    %1631 = vmatprep.subr.mxu0 0.0
    %1632 = vmatpush1.msra.mxu0 0.0
    %1633 = vmatprep.subr.mxu0 0.0
    %1634 = vmatpush1.msra.mxu0 0.0
    %1635 = vmatprep.subr.mxu0 0.0
    %1636 = vmatpush1.msra.mxu0 0.0
    %1637 = vmatprep.mubr.f32.mxu0 0.0
    %1638 = vmatmul.mubr.f32.gmra.mrb[0].mxu0 %v1571
    %v1639 = vpop.f32.mrb[0].mxu0
    %v1640 = vadd.f32 0.0, %v1639
    %v1641 = vpop.f32.mrb[0].mxu0
    %1642 = vdwg.mxu0
    %v1643 = vadd.f32 %v1151, %v1640
    %v1644 = vxor.u32 %v1643, 2147483648
    %v1645 = vmul.f32 %v1644, 1.442695
    %v1646 = vpow.pop %v1645
    %v1647 = vadd.f32 %v1646, 1.0
    %v1648 = vrcp.pop %v1647
    %v1649 = vmul.f32 1.0, %v1648
    %v1650 = vtanh.pop %v1643
    %v1651 = vmul.f32 %v1649, %v1561
    %1653 = vrot.lane.b32.xlu0 %v1650, 32
    %v1654 = vpop.permute.xlu0 %1653
    %v1656 = vmul.f32 %v1649, %v1654
    %1658 = vrot.lane.b32.xlu0 %v1656, 32
    %v1659 = vpop.permute.xlu0 %1658
    %v1661 = vadd.f32 %v1651, %v1659
    %v1662 = vtanh.pop %v1661
    %1664 = vrot.lane.b32.xlu0 %v1662, 32
    %v1665 = vpop.permute.xlu0 %1664
    %v1667 = vmul.f32 %v1649, %v1665
    %1669 = vrot.lane.b32.xlu0 %v1667, 64
    %v1670 = vpop.permute.xlu0 %1669
    %v1671 = vsel %vm249, %v1670, 0
    %1673 = vmatprep.subr.mxu0 0.0
    %1674 = vmatpush1.msra.mxu0 %v1169
    %1675 = vmatprep.subr.mxu0 0.0
    %1676 = vmatpush1.msra.mxu0 %v1170
    %1677 = vmatprep.subr.mxu0 0.0
    %1678 = vmatpush1.msra.mxu0 %v1171
    %1679 = vmatprep.subr.mxu0 0.0
    %1680 = vmatpush1.msra.mxu0 %v1172
    %1681 = vmatprep.subr.mxu0 0.0
    %1682 = vmatpush1.msra.mxu0 0.0
    %1683 = vmatprep.subr.mxu0 0.0
    %1684 = vmatpush1.msra.mxu0 0.0
    %1685 = vmatprep.subr.mxu0 0.0
    %1686 = vmatpush1.msra.mxu0 0.0
    %1687 = vmatprep.subr.mxu0 0.0
    %1688 = vmatpush1.msra.mxu0 0.0
    %1689 = vmatprep.subr.mxu0 0.0
    %1690 = vmatpush1.msra.mxu0 0.0
    %1691 = vmatprep.subr.mxu0 0.0
    %1692 = vmatpush1.msra.mxu0 0.0
    %1693 = vmatprep.subr.mxu0 0.0
    %1694 = vmatpush1.msra.mxu0 0.0
    %1695 = vmatprep.subr.mxu0 0.0
    %1696 = vmatpush1.msra.mxu0 0.0
    %1697 = vmatprep.subr.mxu0 0.0
    %1698 = vmatpush1.msra.mxu0 0.0
    %1699 = vmatprep.subr.mxu0 0.0
    %1700 = vmatpush1.msra.mxu0 0.0
    %1701 = vmatprep.subr.mxu0 0.0
    %1702 = vmatpush1.msra.mxu0 0.0
    %1703 = vmatprep.subr.mxu0 0.0
    %1704 = vmatpush1.msra.mxu0 0.0
    %1705 = vmatprep.subr.mxu0 0.0
    %1706 = vmatpush1.msra.mxu0 0.0
    %1707 = vmatprep.subr.mxu0 0.0
    %1708 = vmatpush1.msra.mxu0 0.0
    %1709 = vmatprep.subr.mxu0 0.0
    %1710 = vmatpush1.msra.mxu0 0.0
    %1711 = vmatprep.subr.mxu0 0.0
    %1712 = vmatpush1.msra.mxu0 0.0
    %1713 = vmatprep.subr.mxu0 0.0
    %1714 = vmatpush1.msra.mxu0 0.0
    %1715 = vmatprep.subr.mxu0 0.0
    %1716 = vmatpush1.msra.mxu0 0.0
    %1717 = vmatprep.subr.mxu0 0.0
    %1718 = vmatpush1.msra.mxu0 0.0
    %1719 = vmatprep.subr.mxu0 0.0
    %1720 = vmatpush1.msra.mxu0 0.0
    %1721 = vmatprep.subr.mxu0 0.0
    %1722 = vmatpush1.msra.mxu0 0.0
    %1723 = vmatprep.subr.mxu0 0.0
    %1724 = vmatpush1.msra.mxu0 0.0
    %1725 = vmatprep.subr.mxu0 0.0
    %1726 = vmatpush1.msra.mxu0 0.0
    %1727 = vmatprep.subr.mxu0 0.0
    %1728 = vmatpush1.msra.mxu0 0.0
    %1729 = vmatprep.subr.mxu0 0.0
    %1730 = vmatpush1.msra.mxu0 0.0
    %1731 = vmatprep.subr.mxu0 0.0
    %1732 = vmatpush1.msra.mxu0 0.0
    %1733 = vmatprep.subr.mxu0 0.0
    %1734 = vmatpush1.msra.mxu0 0.0
    %1735 = vmatprep.subr.mxu0 0.0
    %1736 = vmatpush1.msra.mxu0 0.0
    %1737 = vmatprep.mubr.f32.mxu0 0.0
    %1738 = vmatmul.mubr.f32.gmra.mrb[0].mxu0 %v1671
    %v1739 = vpop.f32.mrb[0].mxu0
    %v1740 = vadd.f32 0.0, %v1739
    %v1741 = vpop.f32.mrb[0].mxu0
    %1742 = vdwg.mxu0
    %v1743 = vadd.f32 %v1156, %v1740
    %v1744 = vxor.u32 %v1743, 2147483648
    %v1745 = vmul.f32 %v1744, 1.442695
    %v1746 = vpow.pop %v1745
    %v1747 = vadd.f32 %v1746, 1.0
    %v1748 = vrcp.pop %v1747
    %v1749 = vmul.f32 1.0, %v1748
    %v1750 = vtanh.pop %v1743
    %v1751 = vmul.f32 %v1749, %v1661
    %1753 = vrot.lane.b32.xlu0 %v1750, 32
    %v1754 = vpop.permute.xlu0 %1753
    %v1756 = vmul.f32 %v1749, %v1754
    %1758 = vrot.lane.b32.xlu0 %v1756, 32
    %v1759 = vpop.permute.xlu0 %1758
    %v1761 = vadd.f32 %v1751, %v1759
    %v1762 = vtanh.pop %v1761
    %1764 = vrot.lane.b32.xlu0 %v1762, 32
    %v1765 = vpop.permute.xlu0 %1764
    %v1767 = vmul.f32 %v1749, %v1765
    %1769 = vrot.lane.b32.xlu0 %v1767, 64
    %v1770 = vpop.permute.xlu0 %1769
    %v1771 = vsel %vm249, %v1770, 0
    %1773 = vmatprep.subr.mxu0 0.0
    %1774 = vmatpush1.msra.mxu0 %v1169
    %1775 = vmatprep.subr.mxu0 0.0
    %1776 = vmatpush1.msra.mxu0 %v1170
    %1777 = vmatprep.subr.mxu0 0.0
    %1778 = vmatpush1.msra.mxu0 %v1171
    %1779 = vmatprep.subr.mxu0 0.0
    %1780 = vmatpush1.msra.mxu0 %v1172
    %1781 = vmatprep.subr.mxu0 0.0
    %1782 = vmatpush1.msra.mxu0 0.0
    %1783 = vmatprep.subr.mxu0 0.0
    %1784 = vmatpush1.msra.mxu0 0.0
    %1785 = vmatprep.subr.mxu0 0.0
    %1786 = vmatpush1.msra.mxu0 0.0
    %1787 = vmatprep.subr.mxu0 0.0
    %1788 = vmatpush1.msra.mxu0 0.0
    %1789 = vmatprep.subr.mxu0 0.0
    %1790 = vmatpush1.msra.mxu0 0.0
    %1791 = vmatprep.subr.mxu0 0.0
    %1792 = vmatpush1.msra.mxu0 0.0
    %1793 = vmatprep.subr.mxu0 0.0
    %1794 = vmatpush1.msra.mxu0 0.0
    %1795 = vmatprep.subr.mxu0 0.0
    %1796 = vmatpush1.msra.mxu0 0.0
    %1797 = vmatprep.subr.mxu0 0.0
    %1798 = vmatpush1.msra.mxu0 0.0
    %1799 = vmatprep.subr.mxu0 0.0
    %1800 = vmatpush1.msra.mxu0 0.0
    %1801 = vmatprep.subr.mxu0 0.0
    %1802 = vmatpush1.msra.mxu0 0.0
    %1803 = vmatprep.subr.mxu0 0.0
    %1804 = vmatpush1.msra.mxu0 0.0
    %1805 = vmatprep.subr.mxu0 0.0
    %1806 = vmatpush1.msra.mxu0 0.0
    %1807 = vmatprep.subr.mxu0 0.0
    %1808 = vmatpush1.msra.mxu0 0.0
    %1809 = vmatprep.subr.mxu0 0.0
    %1810 = vmatpush1.msra.mxu0 0.0
    %1811 = vmatprep.subr.mxu0 0.0
    %1812 = vmatpush1.msra.mxu0 0.0
    %1813 = vmatprep.subr.mxu0 0.0
    %1814 = vmatpush1.msra.mxu0 0.0
    %1815 = vmatprep.subr.mxu0 0.0
    %1816 = vmatpush1.msra.mxu0 0.0
    %1817 = vmatprep.subr.mxu0 0.0
    %1818 = vmatpush1.msra.mxu0 0.0
    %1819 = vmatprep.subr.mxu0 0.0
    %1820 = vmatpush1.msra.mxu0 0.0
    %1821 = vmatprep.subr.mxu0 0.0
    %1822 = vmatpush1.msra.mxu0 0.0
    %1823 = vmatprep.subr.mxu0 0.0
    %1824 = vmatpush1.msra.mxu0 0.0
    %1825 = vmatprep.subr.mxu0 0.0
    %1826 = vmatpush1.msra.mxu0 0.0
    %1827 = vmatprep.subr.mxu0 0.0
    %1828 = vmatpush1.msra.mxu0 0.0
    %1829 = vmatprep.subr.mxu0 0.0
    %1830 = vmatpush1.msra.mxu0 0.0
    %1831 = vmatprep.subr.mxu0 0.0
    %1832 = vmatpush1.msra.mxu0 0.0
    %1833 = vmatprep.subr.mxu0 0.0
    %1834 = vmatpush1.msra.mxu0 0.0
    %1835 = vmatprep.subr.mxu0 0.0
    %1836 = vmatpush1.msra.mxu0 0.0
    %1837 = vmatprep.mubr.f32.mxu0 0.0
    %1838 = vmatmul.mubr.f32.gmra.mrb[0].mxu0 %v1771
    %v1839 = vpop.f32.mrb[0].mxu0
    %v1840 = vadd.f32 0.0, %v1839
    %v1841 = vpop.f32.mrb[0].mxu0
    %1842 = vdwg.mxu0
    %v1843 = vadd.f32 %v1161, %v1840
    %v1844 = vxor.u32 %v1843, 2147483648
    %v1845 = vmul.f32 %v1844, 1.442695
    %v1846 = vpow.pop %v1845
    %v1847 = vadd.f32 %v1846, 1.0
    %v1848 = vrcp.pop %v1847
    %v1849 = vmul.f32 1.0, %v1848
    %v1850 = vtanh.pop %v1843
    %v1851 = vmul.f32 %v1849, %v1761
    %1853 = vrot.lane.b32.xlu0 %v1850, 32
    %v1854 = vpop.permute.xlu0 %1853
    %v1856 = vmul.f32 %v1849, %v1854
    %1858 = vrot.lane.b32.xlu0 %v1856, 32
    %v1859 = vpop.permute.xlu0 %1858
    %v1861 = vadd.f32 %v1851, %v1859
    %v1862 = vtanh.pop %v1861
    %1864 = vrot.lane.b32.xlu0 %v1862, 32
    %v1865 = vpop.permute.xlu0 %1864
    %v1867 = vmul.f32 %v1849, %v1865
    %1869 = vrot.lane.b32.xlu0 %v1867, 64
    %v1870 = vpop.permute.xlu0 %1869
    %v1871 = vsel %vm249, %v1870, 0
    %1873 = vmatprep.subr.mxu0 0.0
    %1874 = vmatpush1.msra.mxu0 %v1169
    %1875 = vmatprep.subr.mxu0 0.0
    %1876 = vmatpush1.msra.mxu0 %v1170
    %1877 = vmatprep.subr.mxu0 0.0
    %1878 = vmatpush1.msra.mxu0 %v1171
    %1879 = vmatprep.subr.mxu0 0.0
    %1880 = vmatpush1.msra.mxu0 %v1172
    %1881 = vmatprep.subr.mxu0 0.0
    %1882 = vmatpush1.msra.mxu0 0.0
    %1883 = vmatprep.subr.mxu0 0.0
    %1884 = vmatpush1.msra.mxu0 0.0
    %1885 = vmatprep.subr.mxu0 0.0
    %1886 = vmatpush1.msra.mxu0 0.0
    %1887 = vmatprep.subr.mxu0 0.0
    %1888 = vmatpush1.msra.mxu0 0.0
    %1889 = vmatprep.subr.mxu0 0.0
    %1890 = vmatpush1.msra.mxu0 0.0
    %1891 = vmatprep.subr.mxu0 0.0
    %1892 = vmatpush1.msra.mxu0 0.0
    %1893 = vmatprep.subr.mxu0 0.0
    %1894 = vmatpush1.msra.mxu0 0.0
    %1895 = vmatprep.subr.mxu0 0.0
    %1896 = vmatpush1.msra.mxu0 0.0
    %1897 = vmatprep.subr.mxu0 0.0
    %1898 = vmatpush1.msra.mxu0 0.0
    %1899 = vmatprep.subr.mxu0 0.0
    %1900 = vmatpush1.msra.mxu0 0.0
    %1901 = vmatprep.subr.mxu0 0.0
    %1902 = vmatpush1.msra.mxu0 0.0
    %1903 = vmatprep.subr.mxu0 0.0
    %1904 = vmatpush1.msra.mxu0 0.0
    %1905 = vmatprep.subr.mxu0 0.0
    %1906 = vmatpush1.msra.mxu0 0.0
    %1907 = vmatprep.subr.mxu0 0.0
    %1908 = vmatpush1.msra.mxu0 0.0
    %1909 = vmatprep.subr.mxu0 0.0
    %1910 = vmatpush1.msra.mxu0 0.0
    %1911 = vmatprep.subr.mxu0 0.0
    %1912 = vmatpush1.msra.mxu0 0.0
    %1913 = vmatprep.subr.mxu0 0.0
    %1914 = vmatpush1.msra.mxu0 0.0
    %1915 = vmatprep.subr.mxu0 0.0
    %1916 = vmatpush1.msra.mxu0 0.0
    %1917 = vmatprep.subr.mxu0 0.0
    %1918 = vmatpush1.msra.mxu0 0.0
    %1919 = vmatprep.subr.mxu0 0.0
    %1920 = vmatpush1.msra.mxu0 0.0
    %1921 = vmatprep.subr.mxu0 0.0
    %1922 = vmatpush1.msra.mxu0 0.0
    %1923 = vmatprep.subr.mxu0 0.0
    %1924 = vmatpush1.msra.mxu0 0.0
    %1925 = vmatprep.subr.mxu0 0.0
    %1926 = vmatpush1.msra.mxu0 0.0
    %1927 = vmatprep.subr.mxu0 0.0
    %1928 = vmatpush1.msra.mxu0 0.0
    %1929 = vmatprep.subr.mxu0 0.0
    %1930 = vmatpush1.msra.mxu0 0.0
    %1931 = vmatprep.subr.mxu0 0.0
    %1932 = vmatpush1.msra.mxu0 0.0
    %1933 = vmatprep.subr.mxu0 0.0
    %1934 = vmatpush1.msra.mxu0 0.0
    %1935 = vmatprep.subr.mxu0 0.0
    %1936 = vmatpush1.msra.mxu0 0.0
    %1937 = vmatprep.mubr.f32.mxu0 0.0
    %1938 = vmatmul.mubr.f32.gmra.mrb[0].mxu0 %v1871
    %v1939 = vpop.f32.mrb[0].mxu0
    %v1940 = vadd.f32 0.0, %v1939
    %v1941 = vpop.f32.mrb[0].mxu0
    %1942 = vdwg.mxu0
    %v1943 = vadd.f32 %v1166, %v1940
    %v1944 = vxor.u32 %v1943, 2147483648
    %v1945 = vmul.f32 %v1944, 1.442695
    %v1946 = vpow.pop %v1945
    %v1947 = vadd.f32 %v1946, 1.0
    %v1948 = vrcp.pop %v1947
    %v1949 = vmul.f32 1.0, %v1948
    %v1950 = vtanh.pop %v1943
    %v1951 = vmul.f32 %v1949, %v1861
    %1953 = vrot.lane.b32.xlu0 %v1950, 32
    %v1954 = vpop.permute.xlu0 %1953
    %v1956 = vmul.f32 %v1949, %v1954
    %1958 = vrot.lane.b32.xlu0 %v1956, 32
    %v1959 = vpop.permute.xlu0 %1958
    %v1961 = vadd.f32 %v1951, %v1959
    %v1962 = vtanh.pop %v1961
    %1964 = vrot.lane.b32.xlu0 %v1962, 32
    %v1965 = vpop.permute.xlu0 %1964
    %v1967 = vmul.f32 %v1949, %v1965
    %v1968 = vld [vmem:[#allocation7] sm:$0xff]
    %v1969 = vld [vmem:[#allocation7 + $0x8] sm:$0xff]
    %v1970 = vld [vmem:[#allocation7 + $0x10] sm:$0xff]
    %v1971 = vld [vmem:[#allocation7 + $0x18] sm:$0xff]
    %v1972 = vld [vmem:[%s9] sm:$0x1]
    %v1974 = vlaneseq
    %v1975 = vshrl.u32 %v1974, 7
    %v1976 = vsub.s32 0, %v1975
    %v1977 = vrot.slane %v1972, %v1976
    %1980 = vrot.lane.b32.xlu0 %v1967, 64
    %v1981 = vpop.permute.xlu0 %1980
    %v1982 = vsel %vm249, %v1981, 0
    %1984 = vmatprep.subr.mxu0 0.0
    %1985 = vmatpush1.msra.mxu0 %v1968
    %1986 = vmatprep.subr.mxu0 0.0
    %1987 = vmatpush1.msra.mxu0 %v1969
    %1988 = vmatprep.subr.mxu0 0.0
    %1989 = vmatpush1.msra.mxu0 %v1970
    %1990 = vmatprep.subr.mxu0 0.0
    %1991 = vmatpush1.msra.mxu0 %v1971
    %1992 = vmatprep.subr.mxu0 0.0
    %1993 = vmatpush1.msra.mxu0 0.0
    %1994 = vmatprep.subr.mxu0 0.0
    %1995 = vmatpush1.msra.mxu0 0.0
    %1996 = vmatprep.subr.mxu0 0.0
    %1997 = vmatpush1.msra.mxu0 0.0
    %1998 = vmatprep.subr.mxu0 0.0
    %1999 = vmatpush1.msra.mxu0 0.0
    %2000 = vmatprep.subr.mxu0 0.0
    %2001 = vmatpush1.msra.mxu0 0.0
    %2002 = vmatprep.subr.mxu0 0.0
    %2003 = vmatpush1.msra.mxu0 0.0
    %2004 = vmatprep.subr.mxu0 0.0
    %2005 = vmatpush1.msra.mxu0 0.0
    %2006 = vmatprep.subr.mxu0 0.0
    %2007 = vmatpush1.msra.mxu0 0.0
    %2008 = vmatprep.subr.mxu0 0.0
    %2009 = vmatpush1.msra.mxu0 0.0
    %2010 = vmatprep.subr.mxu0 0.0
    %2011 = vmatpush1.msra.mxu0 0.0
    %2012 = vmatprep.subr.mxu0 0.0
    %2013 = vmatpush1.msra.mxu0 0.0
    %2014 = vmatprep.subr.mxu0 0.0
    %2015 = vmatpush1.msra.mxu0 0.0
    %2016 = vmatprep.subr.mxu0 0.0
    %2017 = vmatpush1.msra.mxu0 0.0
    %2018 = vmatprep.subr.mxu0 0.0
    %2019 = vmatpush1.msra.mxu0 0.0
    %2020 = vmatprep.subr.mxu0 0.0
    %2021 = vmatpush1.msra.mxu0 0.0
    %2022 = vmatprep.subr.mxu0 0.0
    %2023 = vmatpush1.msra.mxu0 0.0
    %2024 = vmatprep.subr.mxu0 0.0
    %2025 = vmatpush1.msra.mxu0 0.0
    %2026 = vmatprep.subr.mxu0 0.0
    %2027 = vmatpush1.msra.mxu0 0.0
    %2028 = vmatprep.subr.mxu0 0.0
    %2029 = vmatpush1.msra.mxu0 0.0
    %2030 = vmatprep.subr.mxu0 0.0
    %2031 = vmatpush1.msra.mxu0 0.0
    %2032 = vmatprep.subr.mxu0 0.0
    %2033 = vmatpush1.msra.mxu0 0.0
    %2034 = vmatprep.subr.mxu0 0.0
    %2035 = vmatpush1.msra.mxu0 0.0
    %2036 = vmatprep.subr.mxu0 0.0
    %2037 = vmatpush1.msra.mxu0 0.0
    %2038 = vmatprep.subr.mxu0 0.0
    %2039 = vmatpush1.msra.mxu0 0.0
    %2040 = vmatprep.subr.mxu0 0.0
    %2041 = vmatpush1.msra.mxu0 0.0
    %2042 = vmatprep.subr.mxu0 0.0
    %2043 = vmatpush1.msra.mxu0 0.0
    %2044 = vmatprep.subr.mxu0 0.0
    %2045 = vmatpush1.msra.mxu0 0.0
    %2046 = vmatprep.subr.mxu0 0.0
    %2047 = vmatpush1.msra.mxu0 0.0
    %2048 = vmatprep.mubr.f32.mxu0 0.0
    %2049 = vmatmul.mubr.f32.gmra.mrb[0].mxu0 %v1271
    %v2050 = vpop.f32.mrb[0].mxu0
    %v2051 = vadd.f32 %v1977, %v2050
    %v2052 = vpop.f32.mrb[0].mxu0
    %2053 = vmatprep.mubr.f32.mxu0 0.0
    %2054 = vmatmul.mubr.f32.gmra.mrb[0].mxu0 %v1371
    %v2055 = vpop.f32.mrb[0].mxu0
    %v2056 = vadd.f32 %v1977, %v2055
    %v2057 = vpop.f32.mrb[0].mxu0
    %2058 = vmatprep.mubr.f32.mxu0 0.0
    %2059 = vmatmul.mubr.f32.gmra.mrb[0].mxu0 %v1471
    %v2060 = vpop.f32.mrb[0].mxu0
    %v2061 = vadd.f32 %v1977, %v2060
    %v2062 = vpop.f32.mrb[0].mxu0
    %2063 = vmatprep.mubr.f32.mxu0 0.0
    %2064 = vmatmul.mubr.f32.gmra.mrb[0].mxu0 %v1571
    %v2065 = vpop.f32.mrb[0].mxu0
    %v2066 = vadd.f32 %v1977, %v2065
    %v2067 = vpop.f32.mrb[0].mxu0
    %2068 = vmatprep.mubr.f32.mxu0 0.0
    %2069 = vmatmul.mubr.f32.gmra.mrb[0].mxu0 %v1671
    %v2070 = vpop.f32.mrb[0].mxu0
    %v2071 = vadd.f32 %v1977, %v2070
    %v2072 = vpop.f32.mrb[0].mxu0
    %2073 = vmatprep.mubr.f32.mxu0 0.0
    %2074 = vmatmul.mubr.f32.gmra.mrb[0].mxu0 %v1771
    %v2075 = vpop.f32.mrb[0].mxu0
    %v2076 = vadd.f32 %v1977, %v2075
    %v2077 = vpop.f32.mrb[0].mxu0
    %2078 = vmatprep.mubr.f32.mxu0 0.0
    %2079 = vmatmul.mubr.f32.gmra.mrb[0].mxu0 %v1871
    %v2080 = vpop.f32.mrb[0].mxu0
    %v2081 = vadd.f32 %v1977, %v2080
    %v2082 = vpop.f32.mrb[0].mxu0
    %2083 = vmatprep.mubr.f32.mxu0 0.0
    %2084 = vmatmul.mubr.f32.gmra.mrb[0].mxu0 %v1982
    %v2085 = vpop.f32.mrb[0].mxu0
    %v2086 = vadd.f32 %v1977, %v2085
    %v2087 = vpop.f32.mrb[0].mxu0
    %2088 = vdwg.mxu0
    %v2089 = vld [vmem:[%s8] sm:$0xff]
    %v2090 = vld [vmem:[%s8 + $0x8] sm:$0xff]
    %v2091 = vld [vmem:[%s8 + $0x10] sm:$0xff]
    %v2092 = vld [vmem:[%s8 + $0x18] sm:$0xff]
    %2093 = vmatprep.subr.mxu0 0.0
    %2094 = vmatpush1.msra.mxu0 %v2089
    %2095 = vmatprep.subr.mxu0 0.0
    %2096 = vmatpush1.msra.mxu0 %v2090
    %2097 = vmatprep.subr.mxu0 0.0
    %2098 = vmatpush1.msra.mxu0 %v2091
    %2099 = vmatprep.subr.mxu0 0.0
    %2100 = vmatpush1.msra.mxu0 %v2092
    %2101 = vmatprep.subr.mxu0 0.0
    %2102 = vmatpush1.msra.mxu0 0.0
    %2103 = vmatprep.subr.mxu0 0.0
    %2104 = vmatpush1.msra.mxu0 0.0
    %2105 = vmatprep.subr.mxu0 0.0
    %2106 = vmatpush1.msra.mxu0 0.0
    %2107 = vmatprep.subr.mxu0 0.0
    %2108 = vmatpush1.msra.mxu0 0.0
    %2109 = vmatprep.subr.mxu0 0.0
    %2110 = vmatpush1.msra.mxu0 0.0
    %2111 = vmatprep.subr.mxu0 0.0
    %2112 = vmatpush1.msra.mxu0 0.0
    %2113 = vmatprep.subr.mxu0 0.0
    %2114 = vmatpush1.msra.mxu0 0.0
    %2115 = vmatprep.subr.mxu0 0.0
    %2116 = vmatpush1.msra.mxu0 0.0
    %2117 = vmatprep.subr.mxu0 0.0
    %2118 = vmatpush1.msra.mxu0 0.0
    %2119 = vmatprep.subr.mxu0 0.0
    %2120 = vmatpush1.msra.mxu0 0.0
    %2121 = vmatprep.subr.mxu0 0.0
    %2122 = vmatpush1.msra.mxu0 0.0
    %2123 = vmatprep.subr.mxu0 0.0
    %2124 = vmatpush1.msra.mxu0 0.0
    %2125 = vmatprep.subr.mxu0 0.0
    %2126 = vmatpush1.msra.mxu0 0.0
    %2127 = vmatprep.subr.mxu0 0.0
    %2128 = vmatpush1.msra.mxu0 0.0
    %2129 = vmatprep.subr.mxu0 0.0
    %2130 = vmatpush1.msra.mxu0 0.0
    %2131 = vmatprep.subr.mxu0 0.0
    %2132 = vmatpush1.msra.mxu0 0.0
    %2133 = vmatprep.subr.mxu0 0.0
    %2134 = vmatpush1.msra.mxu0 0.0
    %2135 = vmatprep.subr.mxu0 0.0
    %2136 = vmatpush1.msra.mxu0 0.0
    %2137 = vmatprep.subr.mxu0 0.0
    %2138 = vmatpush1.msra.mxu0 0.0
    %2139 = vmatprep.subr.mxu0 0.0
    %2140 = vmatpush1.msra.mxu0 0.0
    %2141 = vmatprep.subr.mxu0 0.0
    %2142 = vmatpush1.msra.mxu0 0.0
    %2143 = vmatprep.subr.mxu0 0.0
    %2144 = vmatpush1.msra.mxu0 0.0
    %2145 = vmatprep.subr.mxu0 0.0
    %2146 = vmatpush1.msra.mxu0 0.0
    %2147 = vmatprep.subr.mxu0 0.0
    %2148 = vmatpush1.msra.mxu0 0.0
    %2149 = vmatprep.subr.mxu0 0.0
    %2150 = vmatpush1.msra.mxu0 0.0
    %2151 = vmatprep.subr.mxu0 0.0
    %2152 = vmatpush1.msra.mxu0 0.0
    %2153 = vmatprep.subr.mxu0 0.0
    %2154 = vmatpush1.msra.mxu0 0.0
    %2155 = vmatprep.subr.mxu0 0.0
    %2156 = vmatpush1.msra.mxu0 0.0
    %2157 = vmatprep.mubr.f32.mxu0 0.0
    %2158 = vmatmul.mubr.f32.gmra.mrb[0].mxu0 %v251
    %v2159 = vpop.f32.mrb[0].mxu0
    %v2160 = vadd.f32 0.0, %v2159
    %v2161 = vpop.f32.mrb[0].mxu0
    %2162 = vdwg.mxu0
    %v2163 = vadd.f32 %v2051, %v2160
    %v2164 = vxor.u32 %v2163, 2147483648
    %v2165 = vmul.f32 %v2164, 1.442695
    %v2166 = vpow.pop %v2165
    %v2167 = vadd.f32 %v2166, 1.0
    %v2168 = vrcp.pop %v2167
    %v2169 = vmul.f32 1.0, %v2168
    %v2170 = vtanh.pop %v2163
    %v2171 = vmul.f32 %v2169, 0.0
    %2173 = vrot.lane.b32.xlu0 %v2170, 32
    %v2174 = vpop.permute.xlu0 %2173
    %v2176 = vmul.f32 %v2169, %v2174
    %2178 = vrot.lane.b32.xlu0 %v2176, 32
    %v2179 = vpop.permute.xlu0 %2178
    %v2181 = vadd.f32 %v2171, %v2179
    %v2182 = vtanh.pop %v2181
    %2184 = vrot.lane.b32.xlu0 %v2182, 32
    %v2185 = vpop.permute.xlu0 %2184
    %v2187 = vmul.f32 %v2169, %v2185
    %2189 = vrot.lane.b32.xlu0 %v2187, 64
    %v2190 = vpop.permute.xlu0 %2189
    %v2191 = vsel %vm249, %v2190, 0
    %2193 = vmatprep.subr.mxu0 0.0
    %2194 = vmatpush1.msra.mxu0 %v2089
    %2195 = vmatprep.subr.mxu0 0.0
    %2196 = vmatpush1.msra.mxu0 %v2090
    %2197 = vmatprep.subr.mxu0 0.0
    %2198 = vmatpush1.msra.mxu0 %v2091
    %2199 = vmatprep.subr.mxu0 0.0
    %2200 = vmatpush1.msra.mxu0 %v2092
    %2201 = vmatprep.subr.mxu0 0.0
    %2202 = vmatpush1.msra.mxu0 0.0
    %2203 = vmatprep.subr.mxu0 0.0
    %2204 = vmatpush1.msra.mxu0 0.0
    %2205 = vmatprep.subr.mxu0 0.0
    %2206 = vmatpush1.msra.mxu0 0.0
    %2207 = vmatprep.subr.mxu0 0.0
    %2208 = vmatpush1.msra.mxu0 0.0
    %2209 = vmatprep.subr.mxu0 0.0
    %2210 = vmatpush1.msra.mxu0 0.0
    %2211 = vmatprep.subr.mxu0 0.0
    %2212 = vmatpush1.msra.mxu0 0.0
    %2213 = vmatprep.subr.mxu0 0.0
    %2214 = vmatpush1.msra.mxu0 0.0
    %2215 = vmatprep.subr.mxu0 0.0
    %2216 = vmatpush1.msra.mxu0 0.0
    %2217 = vmatprep.subr.mxu0 0.0
    %2218 = vmatpush1.msra.mxu0 0.0
    %2219 = vmatprep.subr.mxu0 0.0
    %2220 = vmatpush1.msra.mxu0 0.0
    %2221 = vmatprep.subr.mxu0 0.0
    %2222 = vmatpush1.msra.mxu0 0.0
    %2223 = vmatprep.subr.mxu0 0.0
    %2224 = vmatpush1.msra.mxu0 0.0
    %2225 = vmatprep.subr.mxu0 0.0
    %2226 = vmatpush1.msra.mxu0 0.0
    %2227 = vmatprep.subr.mxu0 0.0
    %2228 = vmatpush1.msra.mxu0 0.0
    %2229 = vmatprep.subr.mxu0 0.0
    %2230 = vmatpush1.msra.mxu0 0.0
    %2231 = vmatprep.subr.mxu0 0.0
    %2232 = vmatpush1.msra.mxu0 0.0
    %2233 = vmatprep.subr.mxu0 0.0
    %2234 = vmatpush1.msra.mxu0 0.0
    %2235 = vmatprep.subr.mxu0 0.0
    %2236 = vmatpush1.msra.mxu0 0.0
    %2237 = vmatprep.subr.mxu0 0.0
    %2238 = vmatpush1.msra.mxu0 0.0
    %2239 = vmatprep.subr.mxu0 0.0
    %2240 = vmatpush1.msra.mxu0 0.0
    %2241 = vmatprep.subr.mxu0 0.0
    %2242 = vmatpush1.msra.mxu0 0.0
    %2243 = vmatprep.subr.mxu0 0.0
    %2244 = vmatpush1.msra.mxu0 0.0
    %2245 = vmatprep.subr.mxu0 0.0
    %2246 = vmatpush1.msra.mxu0 0.0
    %2247 = vmatprep.subr.mxu0 0.0
    %2248 = vmatpush1.msra.mxu0 0.0
    %2249 = vmatprep.subr.mxu0 0.0
    %2250 = vmatpush1.msra.mxu0 0.0
    %2251 = vmatprep.subr.mxu0 0.0
    %2252 = vmatpush1.msra.mxu0 0.0
    %2253 = vmatprep.subr.mxu0 0.0
    %2254 = vmatpush1.msra.mxu0 0.0
    %2255 = vmatprep.subr.mxu0 0.0
    %2256 = vmatpush1.msra.mxu0 0.0
    %2257 = vmatprep.mubr.f32.mxu0 0.0
    %2258 = vmatmul.mubr.f32.gmra.mrb[0].mxu0 %v2191
    %v2259 = vpop.f32.mrb[0].mxu0
    %v2260 = vadd.f32 0.0, %v2259
    %v2261 = vpop.f32.mrb[0].mxu0
    %2262 = vdwg.mxu0
    %v2263 = vadd.f32 %v2056, %v2260
    %v2264 = vxor.u32 %v2263, 2147483648
    %v2265 = vmul.f32 %v2264, 1.442695
    %v2266 = vpow.pop %v2265
    %v2267 = vadd.f32 %v2266, 1.0
    %v2268 = vrcp.pop %v2267
    %v2269 = vmul.f32 1.0, %v2268
    %v2270 = vtanh.pop %v2263
    %v2271 = vmul.f32 %v2269, %v2181
    %2273 = vrot.lane.b32.xlu0 %v2270, 32
    %v2274 = vpop.permute.xlu0 %2273
    %v2276 = vmul.f32 %v2269, %v2274
    %2278 = vrot.lane.b32.xlu0 %v2276, 32
    %v2279 = vpop.permute.xlu0 %2278
    %v2281 = vadd.f32 %v2271, %v2279
    %v2282 = vtanh.pop %v2281
    %2284 = vrot.lane.b32.xlu0 %v2282, 32
    %v2285 = vpop.permute.xlu0 %2284
    %v2287 = vmul.f32 %v2269, %v2285
    %2289 = vrot.lane.b32.xlu0 %v2287, 64
    %v2290 = vpop.permute.xlu0 %2289
    %v2291 = vsel %vm249, %v2290, 0
    %2293 = vmatprep.subr.mxu0 0.0
    %2294 = vmatpush1.msra.mxu0 %v2089
    %2295 = vmatprep.subr.mxu0 0.0
    %2296 = vmatpush1.msra.mxu0 %v2090
    %2297 = vmatprep.subr.mxu0 0.0
    %2298 = vmatpush1.msra.mxu0 %v2091
    %2299 = vmatprep.subr.mxu0 0.0
    %2300 = vmatpush1.msra.mxu0 %v2092
    %2301 = vmatprep.subr.mxu0 0.0
    %2302 = vmatpush1.msra.mxu0 0.0
    %2303 = vmatprep.subr.mxu0 0.0
    %2304 = vmatpush1.msra.mxu0 0.0
    %2305 = vmatprep.subr.mxu0 0.0
    %2306 = vmatpush1.msra.mxu0 0.0
    %2307 = vmatprep.subr.mxu0 0.0
    %2308 = vmatpush1.msra.mxu0 0.0
    %2309 = vmatprep.subr.mxu0 0.0
    %2310 = vmatpush1.msra.mxu0 0.0
    %2311 = vmatprep.subr.mxu0 0.0
    %2312 = vmatpush1.msra.mxu0 0.0
    %2313 = vmatprep.subr.mxu0 0.0
    %2314 = vmatpush1.msra.mxu0 0.0
    %2315 = vmatprep.subr.mxu0 0.0
    %2316 = vmatpush1.msra.mxu0 0.0
    %2317 = vmatprep.subr.mxu0 0.0
    %2318 = vmatpush1.msra.mxu0 0.0
    %2319 = vmatprep.subr.mxu0 0.0
    %2320 = vmatpush1.msra.mxu0 0.0
    %2321 = vmatprep.subr.mxu0 0.0
    %2322 = vmatpush1.msra.mxu0 0.0
    %2323 = vmatprep.subr.mxu0 0.0
    %2324 = vmatpush1.msra.mxu0 0.0
    %2325 = vmatprep.subr.mxu0 0.0
    %2326 = vmatpush1.msra.mxu0 0.0
    %2327 = vmatprep.subr.mxu0 0.0
    %2328 = vmatpush1.msra.mxu0 0.0
    %2329 = vmatprep.subr.mxu0 0.0
    %2330 = vmatpush1.msra.mxu0 0.0
    %2331 = vmatprep.subr.mxu0 0.0
    %2332 = vmatpush1.msra.mxu0 0.0
    %2333 = vmatprep.subr.mxu0 0.0
    %2334 = vmatpush1.msra.mxu0 0.0
    %2335 = vmatprep.subr.mxu0 0.0
    %2336 = vmatpush1.msra.mxu0 0.0
    %2337 = vmatprep.subr.mxu0 0.0
    %2338 = vmatpush1.msra.mxu0 0.0
    %2339 = vmatprep.subr.mxu0 0.0
    %2340 = vmatpush1.msra.mxu0 0.0
    %2341 = vmatprep.subr.mxu0 0.0
    %2342 = vmatpush1.msra.mxu0 0.0
    %2343 = vmatprep.subr.mxu0 0.0
    %2344 = vmatpush1.msra.mxu0 0.0
    %2345 = vmatprep.subr.mxu0 0.0
    %2346 = vmatpush1.msra.mxu0 0.0
    %2347 = vmatprep.subr.mxu0 0.0
    %2348 = vmatpush1.msra.mxu0 0.0
    %2349 = vmatprep.subr.mxu0 0.0
    %2350 = vmatpush1.msra.mxu0 0.0
    %2351 = vmatprep.subr.mxu0 0.0
    %2352 = vmatpush1.msra.mxu0 0.0
    %2353 = vmatprep.subr.mxu0 0.0
    %2354 = vmatpush1.msra.mxu0 0.0
    %2355 = vmatprep.subr.mxu0 0.0
    %2356 = vmatpush1.msra.mxu0 0.0
    %2357 = vmatprep.mubr.f32.mxu0 0.0
    %2358 = vmatmul.mubr.f32.gmra.mrb[0].mxu0 %v2291
    %v2359 = vpop.f32.mrb[0].mxu0
    %v2360 = vadd.f32 0.0, %v2359
    %v2361 = vpop.f32.mrb[0].mxu0
    %2362 = vdwg.mxu0
    %v2363 = vadd.f32 %v2061, %v2360
    %v2364 = vxor.u32 %v2363, 2147483648
    %v2365 = vmul.f32 %v2364, 1.442695
    %v2366 = vpow.pop %v2365
    %v2367 = vadd.f32 %v2366, 1.0
    %v2368 = vrcp.pop %v2367
    %v2369 = vmul.f32 1.0, %v2368
    %v2370 = vtanh.pop %v2363
    %v2371 = vmul.f32 %v2369, %v2281
    %2373 = vrot.lane.b32.xlu0 %v2370, 32
    %v2374 = vpop.permute.xlu0 %2373
    %v2376 = vmul.f32 %v2369, %v2374
    %2378 = vrot.lane.b32.xlu0 %v2376, 32
    %v2379 = vpop.permute.xlu0 %2378
    %v2381 = vadd.f32 %v2371, %v2379
    %v2382 = vtanh.pop %v2381
    %2384 = vrot.lane.b32.xlu0 %v2382, 32
    %v2385 = vpop.permute.xlu0 %2384
    %v2387 = vmul.f32 %v2369, %v2385
    %2389 = vrot.lane.b32.xlu0 %v2387, 64
    %v2390 = vpop.permute.xlu0 %2389
    %v2391 = vsel %vm249, %v2390, 0
    %2393 = vmatprep.subr.mxu0 0.0
    %2394 = vmatpush1.msra.mxu0 %v2089
    %2395 = vmatprep.subr.mxu0 0.0
    %2396 = vmatpush1.msra.mxu0 %v2090
    %2397 = vmatprep.subr.mxu0 0.0
    %2398 = vmatpush1.msra.mxu0 %v2091
    %2399 = vmatprep.subr.mxu0 0.0
    %2400 = vmatpush1.msra.mxu0 %v2092
    %2401 = vmatprep.subr.mxu0 0.0
    %2402 = vmatpush1.msra.mxu0 0.0
    %2403 = vmatprep.subr.mxu0 0.0
    %2404 = vmatpush1.msra.mxu0 0.0
    %2405 = vmatprep.subr.mxu0 0.0
    %2406 = vmatpush1.msra.mxu0 0.0
    %2407 = vmatprep.subr.mxu0 0.0
    %2408 = vmatpush1.msra.mxu0 0.0
    %2409 = vmatprep.subr.mxu0 0.0
    %2410 = vmatpush1.msra.mxu0 0.0
    %2411 = vmatprep.subr.mxu0 0.0
    %2412 = vmatpush1.msra.mxu0 0.0
    %2413 = vmatprep.subr.mxu0 0.0
    %2414 = vmatpush1.msra.mxu0 0.0
    %2415 = vmatprep.subr.mxu0 0.0
    %2416 = vmatpush1.msra.mxu0 0.0
    %2417 = vmatprep.subr.mxu0 0.0
    %2418 = vmatpush1.msra.mxu0 0.0
    %2419 = vmatprep.subr.mxu0 0.0
    %2420 = vmatpush1.msra.mxu0 0.0
    %2421 = vmatprep.subr.mxu0 0.0
    %2422 = vmatpush1.msra.mxu0 0.0
    %2423 = vmatprep.subr.mxu0 0.0
    %2424 = vmatpush1.msra.mxu0 0.0
    %2425 = vmatprep.subr.mxu0 0.0
    %2426 = vmatpush1.msra.mxu0 0.0
    %2427 = vmatprep.subr.mxu0 0.0
    %2428 = vmatpush1.msra.mxu0 0.0
    %2429 = vmatprep.subr.mxu0 0.0
    %2430 = vmatpush1.msra.mxu0 0.0
    %2431 = vmatprep.subr.mxu0 0.0
    %2432 = vmatpush1.msra.mxu0 0.0
    %2433 = vmatprep.subr.mxu0 0.0
    %2434 = vmatpush1.msra.mxu0 0.0
    %2435 = vmatprep.subr.mxu0 0.0
    %2436 = vmatpush1.msra.mxu0 0.0
    %2437 = vmatprep.subr.mxu0 0.0
    %2438 = vmatpush1.msra.mxu0 0.0
    %2439 = vmatprep.subr.mxu0 0.0
    %2440 = vmatpush1.msra.mxu0 0.0
    %2441 = vmatprep.subr.mxu0 0.0
    %2442 = vmatpush1.msra.mxu0 0.0
    %2443 = vmatprep.subr.mxu0 0.0
    %2444 = vmatpush1.msra.mxu0 0.0
    %2445 = vmatprep.subr.mxu0 0.0
    %2446 = vmatpush1.msra.mxu0 0.0
    %2447 = vmatprep.subr.mxu0 0.0
    %2448 = vmatpush1.msra.mxu0 0.0
    %2449 = vmatprep.subr.mxu0 0.0
    %2450 = vmatpush1.msra.mxu0 0.0
    %2451 = vmatprep.subr.mxu0 0.0
    %2452 = vmatpush1.msra.mxu0 0.0
    %2453 = vmatprep.subr.mxu0 0.0
    %2454 = vmatpush1.msra.mxu0 0.0
    %2455 = vmatprep.subr.mxu0 0.0
    %2456 = vmatpush1.msra.mxu0 0.0
    %2457 = vmatprep.mubr.f32.mxu0 0.0
    %2458 = vmatmul.mubr.f32.gmra.mrb[0].mxu0 %v2391
    %v2459 = vpop.f32.mrb[0].mxu0
    %v2460 = vadd.f32 0.0, %v2459
    %v2461 = vpop.f32.mrb[0].mxu0
    %2462 = vdwg.mxu0
    %v2463 = vadd.f32 %v2066, %v2460
    %v2464 = vxor.u32 %v2463, 2147483648
    %v2465 = vmul.f32 %v2464, 1.442695
    %v2466 = vpow.pop %v2465
    %v2467 = vadd.f32 %v2466, 1.0
    %v2468 = vrcp.pop %v2467
    %v2469 = vmul.f32 1.0, %v2468
    %v2470 = vtanh.pop %v2463
    %v2471 = vmul.f32 %v2469, %v2381
    %2473 = vrot.lane.b32.xlu0 %v2470, 32
    %v2474 = vpop.permute.xlu0 %2473
    %v2476 = vmul.f32 %v2469, %v2474
    %2478 = vrot.lane.b32.xlu0 %v2476, 32
    %v2479 = vpop.permute.xlu0 %2478
    %v2481 = vadd.f32 %v2471, %v2479
    %v2482 = vtanh.pop %v2481
    %2484 = vrot.lane.b32.xlu0 %v2482, 32
    %v2485 = vpop.permute.xlu0 %2484
    %v2487 = vmul.f32 %v2469, %v2485
    %2489 = vrot.lane.b32.xlu0 %v2487, 64
    %v2490 = vpop.permute.xlu0 %2489
    %v2491 = vsel %vm249, %v2490, 0
    %2493 = vmatprep.subr.mxu0 0.0
    %2494 = vmatpush1.msra.mxu0 %v2089
    %2495 = vmatprep.subr.mxu0 0.0
    %2496 = vmatpush1.msra.mxu0 %v2090
    %2497 = vmatprep.subr.mxu0 0.0
    %2498 = vmatpush1.msra.mxu0 %v2091
    %2499 = vmatprep.subr.mxu0 0.0
    %2500 = vmatpush1.msra.mxu0 %v2092
    %2501 = vmatprep.subr.mxu0 0.0
    %2502 = vmatpush1.msra.mxu0 0.0
    %2503 = vmatprep.subr.mxu0 0.0
    %2504 = vmatpush1.msra.mxu0 0.0
    %2505 = vmatprep.subr.mxu0 0.0
    %2506 = vmatpush1.msra.mxu0 0.0
    %2507 = vmatprep.subr.mxu0 0.0
    %2508 = vmatpush1.msra.mxu0 0.0
    %2509 = vmatprep.subr.mxu0 0.0
    %2510 = vmatpush1.msra.mxu0 0.0
    %2511 = vmatprep.subr.mxu0 0.0
    %2512 = vmatpush1.msra.mxu0 0.0
    %2513 = vmatprep.subr.mxu0 0.0
    %2514 = vmatpush1.msra.mxu0 0.0
    %2515 = vmatprep.subr.mxu0 0.0
    %2516 = vmatpush1.msra.mxu0 0.0
    %2517 = vmatprep.subr.mxu0 0.0
    %2518 = vmatpush1.msra.mxu0 0.0
    %2519 = vmatprep.subr.mxu0 0.0
    %2520 = vmatpush1.msra.mxu0 0.0
    %2521 = vmatprep.subr.mxu0 0.0
    %2522 = vmatpush1.msra.mxu0 0.0
    %2523 = vmatprep.subr.mxu0 0.0
    %2524 = vmatpush1.msra.mxu0 0.0
    %2525 = vmatprep.subr.mxu0 0.0
    %2526 = vmatpush1.msra.mxu0 0.0
    %2527 = vmatprep.subr.mxu0 0.0
    %2528 = vmatpush1.msra.mxu0 0.0
    %2529 = vmatprep.subr.mxu0 0.0
    %2530 = vmatpush1.msra.mxu0 0.0
    %2531 = vmatprep.subr.mxu0 0.0
    %2532 = vmatpush1.msra.mxu0 0.0
    %2533 = vmatprep.subr.mxu0 0.0
    %2534 = vmatpush1.msra.mxu0 0.0
    %2535 = vmatprep.subr.mxu0 0.0
    %2536 = vmatpush1.msra.mxu0 0.0
    %2537 = vmatprep.subr.mxu0 0.0
    %2538 = vmatpush1.msra.mxu0 0.0
    %2539 = vmatprep.subr.mxu0 0.0
    %2540 = vmatpush1.msra.mxu0 0.0
    %2541 = vmatprep.subr.mxu0 0.0
    %2542 = vmatpush1.msra.mxu0 0.0
    %2543 = vmatprep.subr.mxu0 0.0
    %2544 = vmatpush1.msra.mxu0 0.0
    %2545 = vmatprep.subr.mxu0 0.0
    %2546 = vmatpush1.msra.mxu0 0.0
    %2547 = vmatprep.subr.mxu0 0.0
    %2548 = vmatpush1.msra.mxu0 0.0
    %2549 = vmatprep.subr.mxu0 0.0
    %2550 = vmatpush1.msra.mxu0 0.0
    %2551 = vmatprep.subr.mxu0 0.0
    %2552 = vmatpush1.msra.mxu0 0.0
    %2553 = vmatprep.subr.mxu0 0.0
    %2554 = vmatpush1.msra.mxu0 0.0
    %2555 = vmatprep.subr.mxu0 0.0
    %2556 = vmatpush1.msra.mxu0 0.0
    %2557 = vmatprep.mubr.f32.mxu0 0.0
    %2558 = vmatmul.mubr.f32.gmra.mrb[0].mxu0 %v2491
    %v2559 = vpop.f32.mrb[0].mxu0
    %v2560 = vadd.f32 0.0, %v2559
    %v2561 = vpop.f32.mrb[0].mxu0
    %2562 = vdwg.mxu0
    %v2563 = vadd.f32 %v2071, %v2560
    %v2564 = vxor.u32 %v2563, 2147483648
    %v2565 = vmul.f32 %v2564, 1.442695
    %v2566 = vpow.pop %v2565
    %v2567 = vadd.f32 %v2566, 1.0
    %v2568 = vrcp.pop %v2567
    %v2569 = vmul.f32 1.0, %v2568
    %v2570 = vtanh.pop %v2563
    %v2571 = vmul.f32 %v2569, %v2481
    %2573 = vrot.lane.b32.xlu0 %v2570, 32
    %v2574 = vpop.permute.xlu0 %2573
    %v2576 = vmul.f32 %v2569, %v2574
    %2578 = vrot.lane.b32.xlu0 %v2576, 32
    %v2579 = vpop.permute.xlu0 %2578
    %v2581 = vadd.f32 %v2571, %v2579
    %v2582 = vtanh.pop %v2581
    %2584 = vrot.lane.b32.xlu0 %v2582, 32
    %v2585 = vpop.permute.xlu0 %2584
    %v2587 = vmul.f32 %v2569, %v2585
    %2589 = vrot.lane.b32.xlu0 %v2587, 64
    %v2590 = vpop.permute.xlu0 %2589
    %v2591 = vsel %vm249, %v2590, 0
    %2593 = vmatprep.subr.mxu0 0.0
    %2594 = vmatpush1.msra.mxu0 %v2089
    %2595 = vmatprep.subr.mxu0 0.0
    %2596 = vmatpush1.msra.mxu0 %v2090
    %2597 = vmatprep.subr.mxu0 0.0
    %2598 = vmatpush1.msra.mxu0 %v2091
    %2599 = vmatprep.subr.mxu0 0.0
    %2600 = vmatpush1.msra.mxu0 %v2092
    %2601 = vmatprep.subr.mxu0 0.0
    %2602 = vmatpush1.msra.mxu0 0.0
    %2603 = vmatprep.subr.mxu0 0.0
    %2604 = vmatpush1.msra.mxu0 0.0
    %2605 = vmatprep.subr.mxu0 0.0
    %2606 = vmatpush1.msra.mxu0 0.0
    %2607 = vmatprep.subr.mxu0 0.0
    %2608 = vmatpush1.msra.mxu0 0.0
    %2609 = vmatprep.subr.mxu0 0.0
    %2610 = vmatpush1.msra.mxu0 0.0
    %2611 = vmatprep.subr.mxu0 0.0
    %2612 = vmatpush1.msra.mxu0 0.0
    %2613 = vmatprep.subr.mxu0 0.0
    %2614 = vmatpush1.msra.mxu0 0.0
    %2615 = vmatprep.subr.mxu0 0.0
    %2616 = vmatpush1.msra.mxu0 0.0
    %2617 = vmatprep.subr.mxu0 0.0
    %2618 = vmatpush1.msra.mxu0 0.0
    %2619 = vmatprep.subr.mxu0 0.0
    %2620 = vmatpush1.msra.mxu0 0.0
    %2621 = vmatprep.subr.mxu0 0.0
    %2622 = vmatpush1.msra.mxu0 0.0
    %2623 = vmatprep.subr.mxu0 0.0
    %2624 = vmatpush1.msra.mxu0 0.0
    %2625 = vmatprep.subr.mxu0 0.0
    %2626 = vmatpush1.msra.mxu0 0.0
    %2627 = vmatprep.subr.mxu0 0.0
    %2628 = vmatpush1.msra.mxu0 0.0
    %2629 = vmatprep.subr.mxu0 0.0
    %2630 = vmatpush1.msra.mxu0 0.0
    %2631 = vmatprep.subr.mxu0 0.0
    %2632 = vmatpush1.msra.mxu0 0.0
    %2633 = vmatprep.subr.mxu0 0.0
    %2634 = vmatpush1.msra.mxu0 0.0
    %2635 = vmatprep.subr.mxu0 0.0
    %2636 = vmatpush1.msra.mxu0 0.0
    %2637 = vmatprep.subr.mxu0 0.0
    %2638 = vmatpush1.msra.mxu0 0.0
    %2639 = vmatprep.subr.mxu0 0.0
    %2640 = vmatpush1.msra.mxu0 0.0
    %2641 = vmatprep.subr.mxu0 0.0
    %2642 = vmatpush1.msra.mxu0 0.0
    %2643 = vmatprep.subr.mxu0 0.0
    %2644 = vmatpush1.msra.mxu0 0.0
    %2645 = vmatprep.subr.mxu0 0.0
    %2646 = vmatpush1.msra.mxu0 0.0
    %2647 = vmatprep.subr.mxu0 0.0
    %2648 = vmatpush1.msra.mxu0 0.0
    %2649 = vmatprep.subr.mxu0 0.0
    %2650 = vmatpush1.msra.mxu0 0.0
    %2651 = vmatprep.subr.mxu0 0.0
    %2652 = vmatpush1.msra.mxu0 0.0
    %2653 = vmatprep.subr.mxu0 0.0
    %2654 = vmatpush1.msra.mxu0 0.0
    %2655 = vmatprep.subr.mxu0 0.0
    %2656 = vmatpush1.msra.mxu0 0.0
    %2657 = vmatprep.mubr.f32.mxu0 0.0
    %2658 = vmatmul.mubr.f32.gmra.mrb[0].mxu0 %v2591
    %v2659 = vpop.f32.mrb[0].mxu0
    %v2660 = vadd.f32 0.0, %v2659
    %v2661 = vpop.f32.mrb[0].mxu0
    %2662 = vdwg.mxu0
    %v2663 = vadd.f32 %v2076, %v2660
    %v2664 = vxor.u32 %v2663, 2147483648
    %v2665 = vmul.f32 %v2664, 1.442695
    %v2666 = vpow.pop %v2665
    %v2667 = vadd.f32 %v2666, 1.0
    %v2668 = vrcp.pop %v2667
    %v2669 = vmul.f32 1.0, %v2668
    %v2670 = vtanh.pop %v2663
    %v2671 = vmul.f32 %v2669, %v2581
    %2673 = vrot.lane.b32.xlu0 %v2670, 32
    %v2674 = vpop.permute.xlu0 %2673
    %v2676 = vmul.f32 %v2669, %v2674
    %2678 = vrot.lane.b32.xlu0 %v2676, 32
    %v2679 = vpop.permute.xlu0 %2678
    %v2681 = vadd.f32 %v2671, %v2679
    %v2682 = vtanh.pop %v2681
    %2684 = vrot.lane.b32.xlu0 %v2682, 32
    %v2685 = vpop.permute.xlu0 %2684
    %v2687 = vmul.f32 %v2669, %v2685
    %2689 = vrot.lane.b32.xlu0 %v2687, 64
    %v2690 = vpop.permute.xlu0 %2689
    %v2691 = vsel %vm249, %v2690, 0
    %2693 = vmatprep.subr.mxu0 0.0
    %2694 = vmatpush1.msra.mxu0 %v2089
    %2695 = vmatprep.subr.mxu0 0.0
    %2696 = vmatpush1.msra.mxu0 %v2090
    %2697 = vmatprep.subr.mxu0 0.0
    %2698 = vmatpush1.msra.mxu0 %v2091
    %2699 = vmatprep.subr.mxu0 0.0
    %2700 = vmatpush1.msra.mxu0 %v2092
    %2701 = vmatprep.subr.mxu0 0.0
    %2702 = vmatpush1.msra.mxu0 0.0
    %2703 = vmatprep.subr.mxu0 0.0
    %2704 = vmatpush1.msra.mxu0 0.0
    %2705 = vmatprep.subr.mxu0 0.0
    %2706 = vmatpush1.msra.mxu0 0.0
    %2707 = vmatprep.subr.mxu0 0.0
    %2708 = vmatpush1.msra.mxu0 0.0
    %2709 = vmatprep.subr.mxu0 0.0
    %2710 = vmatpush1.msra.mxu0 0.0
    %2711 = vmatprep.subr.mxu0 0.0
    %2712 = vmatpush1.msra.mxu0 0.0
    %2713 = vmatprep.subr.mxu0 0.0
    %2714 = vmatpush1.msra.mxu0 0.0
    %2715 = vmatprep.subr.mxu0 0.0
    %2716 = vmatpush1.msra.mxu0 0.0
    %2717 = vmatprep.subr.mxu0 0.0
    %2718 = vmatpush1.msra.mxu0 0.0
    %2719 = vmatprep.subr.mxu0 0.0
    %2720 = vmatpush1.msra.mxu0 0.0
    %2721 = vmatprep.subr.mxu0 0.0
    %2722 = vmatpush1.msra.mxu0 0.0
    %2723 = vmatprep.subr.mxu0 0.0
    %2724 = vmatpush1.msra.mxu0 0.0
    %2725 = vmatprep.subr.mxu0 0.0
    %2726 = vmatpush1.msra.mxu0 0.0
    %2727 = vmatprep.subr.mxu0 0.0
    %2728 = vmatpush1.msra.mxu0 0.0
    %2729 = vmatprep.subr.mxu0 0.0
    %2730 = vmatpush1.msra.mxu0 0.0
    %2731 = vmatprep.subr.mxu0 0.0
    %2732 = vmatpush1.msra.mxu0 0.0
    %2733 = vmatprep.subr.mxu0 0.0
    %2734 = vmatpush1.msra.mxu0 0.0
    %2735 = vmatprep.subr.mxu0 0.0
    %2736 = vmatpush1.msra.mxu0 0.0
    %2737 = vmatprep.subr.mxu0 0.0
    %2738 = vmatpush1.msra.mxu0 0.0
    %2739 = vmatprep.subr.mxu0 0.0
    %2740 = vmatpush1.msra.mxu0 0.0
    %2741 = vmatprep.subr.mxu0 0.0
    %2742 = vmatpush1.msra.mxu0 0.0
    %2743 = vmatprep.subr.mxu0 0.0
    %2744 = vmatpush1.msra.mxu0 0.0
    %2745 = vmatprep.subr.mxu0 0.0
    %2746 = vmatpush1.msra.mxu0 0.0
    %2747 = vmatprep.subr.mxu0 0.0
    %2748 = vmatpush1.msra.mxu0 0.0
    %2749 = vmatprep.subr.mxu0 0.0
    %2750 = vmatpush1.msra.mxu0 0.0
    %2751 = vmatprep.subr.mxu0 0.0
    %2752 = vmatpush1.msra.mxu0 0.0
    %2753 = vmatprep.subr.mxu0 0.0
    %2754 = vmatpush1.msra.mxu0 0.0
    %2755 = vmatprep.subr.mxu0 0.0
    %2756 = vmatpush1.msra.mxu0 0.0
    %2757 = vmatprep.mubr.f32.mxu0 0.0
    %2758 = vmatmul.mubr.f32.gmra.mrb[0].mxu0 %v2691
    %v2759 = vpop.f32.mrb[0].mxu0
    %v2760 = vadd.f32 0.0, %v2759
    %v2761 = vpop.f32.mrb[0].mxu0
    %2762 = vdwg.mxu0
    %v2763 = vadd.f32 %v2081, %v2760
    %v2764 = vxor.u32 %v2763, 2147483648
    %v2765 = vmul.f32 %v2764, 1.442695
    %v2766 = vpow.pop %v2765
    %v2767 = vadd.f32 %v2766, 1.0
    %v2768 = vrcp.pop %v2767
    %v2769 = vmul.f32 1.0, %v2768
    %v2770 = vtanh.pop %v2763
    %v2771 = vmul.f32 %v2769, %v2681
    %2773 = vrot.lane.b32.xlu0 %v2770, 32
    %v2774 = vpop.permute.xlu0 %2773
    %v2776 = vmul.f32 %v2769, %v2774
    %2778 = vrot.lane.b32.xlu0 %v2776, 32
    %v2779 = vpop.permute.xlu0 %2778
    %v2781 = vadd.f32 %v2771, %v2779
    %v2782 = vtanh.pop %v2781
    %2784 = vrot.lane.b32.xlu0 %v2782, 32
    %v2785 = vpop.permute.xlu0 %2784
    %v2787 = vmul.f32 %v2769, %v2785
    %2789 = vrot.lane.b32.xlu0 %v2787, 64
    %v2790 = vpop.permute.xlu0 %2789
    %v2791 = vsel %vm249, %v2790, 0
    %2793 = vmatprep.subr.mxu0 0.0
    %2794 = vmatpush1.msra.mxu0 %v2089
    %2795 = vmatprep.subr.mxu0 0.0
    %2796 = vmatpush1.msra.mxu0 %v2090
    %2797 = vmatprep.subr.mxu0 0.0
    %2798 = vmatpush1.msra.mxu0 %v2091
    %2799 = vmatprep.subr.mxu0 0.0
    %2800 = vmatpush1.msra.mxu0 %v2092
    %2801 = vmatprep.subr.mxu0 0.0
    %2802 = vmatpush1.msra.mxu0 0.0
    %2803 = vmatprep.subr.mxu0 0.0
    %2804 = vmatpush1.msra.mxu0 0.0
    %2805 = vmatprep.subr.mxu0 0.0
    %2806 = vmatpush1.msra.mxu0 0.0
    %2807 = vmatprep.subr.mxu0 0.0
    %2808 = vmatpush1.msra.mxu0 0.0
    %2809 = vmatprep.subr.mxu0 0.0
    %2810 = vmatpush1.msra.mxu0 0.0
    %2811 = vmatprep.subr.mxu0 0.0
    %2812 = vmatpush1.msra.mxu0 0.0
    %2813 = vmatprep.subr.mxu0 0.0
    %2814 = vmatpush1.msra.mxu0 0.0
    %2815 = vmatprep.subr.mxu0 0.0
    %2816 = vmatpush1.msra.mxu0 0.0
    %2817 = vmatprep.subr.mxu0 0.0
    %2818 = vmatpush1.msra.mxu0 0.0
    %2819 = vmatprep.subr.mxu0 0.0
    %2820 = vmatpush1.msra.mxu0 0.0
    %2821 = vmatprep.subr.mxu0 0.0
    %2822 = vmatpush1.msra.mxu0 0.0
    %2823 = vmatprep.subr.mxu0 0.0
    %2824 = vmatpush1.msra.mxu0 0.0
    %2825 = vmatprep.subr.mxu0 0.0
    %2826 = vmatpush1.msra.mxu0 0.0
    %2827 = vmatprep.subr.mxu0 0.0
    %2828 = vmatpush1.msra.mxu0 0.0
    %2829 = vmatprep.subr.mxu0 0.0
    %2830 = vmatpush1.msra.mxu0 0.0
    %2831 = vmatprep.subr.mxu0 0.0
    %2832 = vmatpush1.msra.mxu0 0.0
    %2833 = vmatprep.subr.mxu0 0.0
    %2834 = vmatpush1.msra.mxu0 0.0
    %2835 = vmatprep.subr.mxu0 0.0
    %2836 = vmatpush1.msra.mxu0 0.0
    %2837 = vmatprep.subr.mxu0 0.0
    %2838 = vmatpush1.msra.mxu0 0.0
    %2839 = vmatprep.subr.mxu0 0.0
    %2840 = vmatpush1.msra.mxu0 0.0
    %2841 = vmatprep.subr.mxu0 0.0
    %2842 = vmatpush1.msra.mxu0 0.0
    %2843 = vmatprep.subr.mxu0 0.0
    %2844 = vmatpush1.msra.mxu0 0.0
    %2845 = vmatprep.subr.mxu0 0.0
    %2846 = vmatpush1.msra.mxu0 0.0
    %2847 = vmatprep.subr.mxu0 0.0
    %2848 = vmatpush1.msra.mxu0 0.0
    %2849 = vmatprep.subr.mxu0 0.0
    %2850 = vmatpush1.msra.mxu0 0.0
    %2851 = vmatprep.subr.mxu0 0.0
    %2852 = vmatpush1.msra.mxu0 0.0
    %2853 = vmatprep.subr.mxu0 0.0
    %2854 = vmatpush1.msra.mxu0 0.0
    %2855 = vmatprep.subr.mxu0 0.0
    %2856 = vmatpush1.msra.mxu0 0.0
    %2857 = vmatprep.mubr.f32.mxu0 0.0
    %2858 = vmatmul.mubr.f32.gmra.mrb[0].mxu0 %v2791
    %v2859 = vpop.f32.mrb[0].mxu0
    %v2860 = vadd.f32 0.0, %v2859
    %v2861 = vpop.f32.mrb[0].mxu0
    %2862 = vdwg.mxu0
    %v2863 = vadd.f32 %v2086, %v2860
    %v2864 = vxor.u32 %v2863, 2147483648
    %v2865 = vmul.f32 %v2864, 1.442695
    %v2866 = vpow.pop %v2865
    %v2867 = vadd.f32 %v2866, 1.0
    %v2868 = vrcp.pop %v2867
    %v2869 = vmul.f32 1.0, %v2868
    %v2870 = vtanh.pop %v2863
    %v2871 = vmul.f32 %v2869, %v2781
    %2873 = vrot.lane.b32.xlu0 %v2870, 32
    %v2874 = vpop.permute.xlu0 %2873
    %v2876 = vmul.f32 %v2869, %v2874
    %2878 = vrot.lane.b32.xlu0 %v2876, 32
    %v2879 = vpop.permute.xlu0 %2878
    %v2881 = vadd.f32 %v2871, %v2879
    %v2882 = vtanh.pop %v2881
    %2884 = vrot.lane.b32.xlu0 %v2882, 32
    %v2885 = vpop.permute.xlu0 %2884
    %v2887 = vmul.f32 %v2869, %v2885
    %v2888 = vld [vmem:[#allocation8] sm:$0xff]
    %v2889 = vld [vmem:[#allocation8 + $0x8] sm:$0xff]
    %v2890 = vld [vmem:[#allocation8 + $0x10] sm:$0xff]
    %v2891 = vld [vmem:[#allocation8 + $0x18] sm:$0xff]
    %v2892 = vld [vmem:[%s11] sm:$0x1]
    %v2894 = vlaneseq
    %v2895 = vshrl.u32 %v2894, 7
    %v2896 = vsub.s32 0, %v2895
    %v2897 = vrot.slane %v2892, %v2896
    %2900 = vrot.lane.b32.xlu0 %v2887, 64
    %v2901 = vpop.permute.xlu0 %2900
    %v2902 = vsel %vm249, %v2901, 0
    %2904 = vmatprep.subr.mxu0 0.0
    %2905 = vmatpush1.msra.mxu0 %v2888
    %2906 = vmatprep.subr.mxu0 0.0
    %2907 = vmatpush1.msra.mxu0 %v2889
    %2908 = vmatprep.subr.mxu0 0.0
    %2909 = vmatpush1.msra.mxu0 %v2890
    %2910 = vmatprep.subr.mxu0 0.0
    %2911 = vmatpush1.msra.mxu0 %v2891
    %2912 = vmatprep.subr.mxu0 0.0
    %2913 = vmatpush1.msra.mxu0 0.0
    %2914 = vmatprep.subr.mxu0 0.0
    %2915 = vmatpush1.msra.mxu0 0.0
    %2916 = vmatprep.subr.mxu0 0.0
    %2917 = vmatpush1.msra.mxu0 0.0
    %2918 = vmatprep.subr.mxu0 0.0
    %2919 = vmatpush1.msra.mxu0 0.0
    %2920 = vmatprep.subr.mxu0 0.0
    %2921 = vmatpush1.msra.mxu0 0.0
    %2922 = vmatprep.subr.mxu0 0.0
    %2923 = vmatpush1.msra.mxu0 0.0
    %2924 = vmatprep.subr.mxu0 0.0
    %2925 = vmatpush1.msra.mxu0 0.0
    %2926 = vmatprep.subr.mxu0 0.0
    %2927 = vmatpush1.msra.mxu0 0.0
    %2928 = vmatprep.subr.mxu0 0.0
    %2929 = vmatpush1.msra.mxu0 0.0
    %2930 = vmatprep.subr.mxu0 0.0
    %2931 = vmatpush1.msra.mxu0 0.0
    %2932 = vmatprep.subr.mxu0 0.0
    %2933 = vmatpush1.msra.mxu0 0.0
    %2934 = vmatprep.subr.mxu0 0.0
    %2935 = vmatpush1.msra.mxu0 0.0
    %2936 = vmatprep.subr.mxu0 0.0
    %2937 = vmatpush1.msra.mxu0 0.0
    %2938 = vmatprep.subr.mxu0 0.0
    %2939 = vmatpush1.msra.mxu0 0.0
    %2940 = vmatprep.subr.mxu0 0.0
    %2941 = vmatpush1.msra.mxu0 0.0
    %2942 = vmatprep.subr.mxu0 0.0
    %2943 = vmatpush1.msra.mxu0 0.0
    %2944 = vmatprep.subr.mxu0 0.0
    %2945 = vmatpush1.msra.mxu0 0.0
    %2946 = vmatprep.subr.mxu0 0.0
    %2947 = vmatpush1.msra.mxu0 0.0
    %2948 = vmatprep.subr.mxu0 0.0
    %2949 = vmatpush1.msra.mxu0 0.0
    %2950 = vmatprep.subr.mxu0 0.0
    %2951 = vmatpush1.msra.mxu0 0.0
    %2952 = vmatprep.subr.mxu0 0.0
    %2953 = vmatpush1.msra.mxu0 0.0
    %2954 = vmatprep.subr.mxu0 0.0
    %2955 = vmatpush1.msra.mxu0 0.0
    %2956 = vmatprep.subr.mxu0 0.0
    %2957 = vmatpush1.msra.mxu0 0.0
    %2958 = vmatprep.subr.mxu0 0.0
    %2959 = vmatpush1.msra.mxu0 0.0
    %2960 = vmatprep.subr.mxu0 0.0
    %2961 = vmatpush1.msra.mxu0 0.0
    %2962 = vmatprep.subr.mxu0 0.0
    %2963 = vmatpush1.msra.mxu0 0.0
    %2964 = vmatprep.subr.mxu0 0.0
    %2965 = vmatpush1.msra.mxu0 0.0
    %2966 = vmatprep.subr.mxu0 0.0
    %2967 = vmatpush1.msra.mxu0 0.0
    %2968 = vmatprep.mubr.f32.mxu0 0.0
    %2969 = vmatmul.mubr.f32.gmra.mrb[0].mxu0 %v2591
    %v2970 = vpop.f32.mrb[0].mxu0
    %v2971 = vadd.f32 %v2897, %v2970
    %v2972 = vpop.f32.mrb[0].mxu0
    %2973 = vmatprep.mubr.f32.mxu0 0.0
    %2974 = vmatmul.mubr.f32.gmra.mrb[0].mxu0 %v2691
    %v2975 = vpop.f32.mrb[0].mxu0
    %v2976 = vadd.f32 %v2897, %v2975
    %v2977 = vpop.f32.mrb[0].mxu0
    %2978 = vmatprep.mubr.f32.mxu0 0.0
    %2979 = vmatmul.mubr.f32.gmra.mrb[0].mxu0 %v2791
    %v2980 = vpop.f32.mrb[0].mxu0
    %v2981 = vadd.f32 %v2897, %v2980
    %v2982 = vpop.f32.mrb[0].mxu0
    %2983 = vmatprep.mubr.f32.mxu0 0.0
    %2984 = vmatmul.mubr.f32.gmra.mrb[0].mxu0 %v2902
    %v2985 = vpop.f32.mrb[0].mxu0
    %v2986 = vadd.f32 %v2897, %v2985
    %v2987 = vpop.f32.mrb[0].mxu0
    %2988 = vdwg.mxu0
    %2989 = vst [vmem:[#allocation10] sm:$0xff] %v2971
    %2990 = vst [vmem:[#allocation10 + $0x8] sm:$0xff] %v2976
    %2991 = vst [vmem:[#allocation10 + $0x10] sm:$0xff] %v2981
    %2992 = vst [vmem:[#allocation10 + $0x18] sm:$0xff] %v2986
    // Predicated region
    $region66: #{tpu_custom_call.1} parent=1 // pred_check
      _
    $region67: #{tpu_custom_call.1} parent=1 // pred_check_branch
      %2994 = sbr.rel (0) target = $region69
    $region68: #{tpu_custom_call.1} parent=1 // pred_region
      %s2996 = ssub.s32 512, 512
      %2997 = vsyncadd [#allocation4], %s2996
      %s2998 = sshll.u32 [#allocation10], 4
      %s2999 = int_to_ptr.vmem [resolvable:$true] %s2998
      %3004 = dma.vmem_to_hbm [thread:$0]  %s2999, 512, %s12, [#allocation4], 128, 128, 8
    $region69: #{tpu_custom_call.1} parent=1 // pred_fallthru
      _
    // Predicated region
    $region70: #{tpu_custom_call.1} parent=1 // pred_check
      _
    $region71: #{tpu_custom_call.1} parent=1 // pred_check_branch
      %3006 = sbr.rel (0) target = $region73
    $region72: #{tpu_custom_call.1} parent=1 // pred_region
      %3007 = dma.done [#allocation4], 512
    $region73: #{tpu_custom_call.1} parent=1 // pred_fallthru
      _
    %3008 = vsyncpa [#allocation3], 1
    %3009 = vsyncpa [#allocation6], 1
    %3010 = vsyncpa [#allocation9], 1
    %3011 = vsyncpa [#allocation4], 1

</llo_original>
